<compile_context>
chip_gen: v7x
topology: tpu7x:2x2x1
jax: 0.10.0
libtpu: 0.0.40
codegen_flags: <defaults>
</compile_context>

<pallas_src>
import jax
import jax.numpy as jnp
from jax.experimental import pallas as pl
from jax.experimental.pallas import tpu as pltpu

D_MODEL = 128
N_HEADS = 4
D_K = 128          # per-head key dim   (co_attention(d_k=128, ...))
D_V = 128          # per-head value dim
D_FF = 128         # PoswiseFeedForwardNet hidden dim
LN_EPS = 1e-5      # torch.nn.LayerNorm default
HD_K = N_HEADS * D_K   # 512
HD_V = N_HEADS * D_V   # 512
NEG_INF = -1e30


# ----------------------------------------------------------------------------
# In-kernel helpers (traced inside the Pallas kernel bodies)
# ----------------------------------------------------------------------------
def _mm(x_bf16, w_ref, b_ref):
    """y = x @ W + b.  x already bf16 (cast hoisted at call site); weight ref
    has a leading stacked-direction block dim of 1.  f32 accumulation."""
    return (jnp.dot(x_bf16, w_ref[0], preferred_element_type=jnp.float32)
            + b_ref[0].astype(jnp.float32))


def _layernorm(x, gamma, beta):
    mu = jnp.mean(x, axis=-1, keepdims=True)
    var = jnp.mean((x - mu) ** 2, axis=-1, keepdims=True)
    return (x - mu) * jax.lax.rsqrt(var + LN_EPS) * gamma + beta


# ----------------------------------------------------------------------------
# Fused co-attention kernel: grid=(2,) over the two attention directions.
# Step 0: q = v-stream, kv = s-stream (mha_v / ffn_v / encoder for v output).
# Step 1: q = s-stream, kv = v-stream (mha_s / ffn_s / encoder for s output).
# Direction-specific weights arrive pre-selected via per-direction index_maps.
# ----------------------------------------------------------------------------
def _co_attention_kernel(q_ref, kv_ref, kvb_ref,
                         qlin_w, qlin_b, klin_w, klin_b,
                         wq, bq, wk, bk, wv, bv, wo, bo, mln_g, mln_b,
                         w1, b1, w2, b2, fln_g, fln_b,
                         enc_w, enc_b,
                         out_ref, ctx_ref):
    _, b, lq, d = q_ref.shape
    lk = kv_ref.shape[2]
    n = b * lq
    nk = b * lk

    # Input streams, flattened to (B*L, D); single hoisted bf16 cast each.
    q_in = q_ref[0].reshape(n, d).astype(jnp.bfloat16)
    kv_in = kv_ref[0].reshape(nk, d).astype(jnp.bfloat16)

    # linear_v / linear_s projections (which-is-which resolved by index_map).
    q2 = _mm(q_in, qlin_w, qlin_b)           # (n, D)  f32 — residual stream
    kv2 = _mm(kv_in, klin_w, klin_b)         # (nk, D) f32
    q2_bf = q2.astype(jnp.bfloat16)
    kv2_bf = kv2.astype(jnp.bfloat16)

    # Q/K/V projections.  The 1/sqrt(d_k) softmax scale is folded into wq/bq.
    q3 = _mm(q2_bf, wq, bq).reshape(b, lq, HD_K).astype(jnp.bfloat16)
    k3 = _mm(kv2_bf, wk, bk).reshape(b, lk, HD_K).astype(jnp.bfloat16)
    v3 = _mm(kv2_bf, wv, bv).reshape(b, lk, HD_V).astype(jnp.bfloat16)

    kv_bias = kvb_ref[...]                   # (1, 1, lk) additive key-pad mask

    for h in range(N_HEADS):                 # static; lane-aligned 128 slices
        qh = q3[:, :, h * D_K:(h + 1) * D_K]
        kh = k3[:, :, h * D_K:(h + 1) * D_K]
        vh = v3[:, :, h * D_V:(h + 1) * D_V]
        s = jnp.einsum("bqd,bkd->bqk", qh, kh,
                       preferred_element_type=jnp.float32) + kv_bias
        s = s - jnp.max(s, axis=-1, keepdims=True)
        p = jnp.exp(s)
        p = p * pl.reciprocal(jnp.sum(p, axis=-1, keepdims=True), approx=True)
        ctx_h = jnp.einsum("bqk,bkd->bqd", p.astype(jnp.bfloat16), vh,
                           preferred_element_type=jnp.float32)
        # Write each head into a lane-offset slice of the VMEM scratch
        # (avoids the 4-way lane concat; feeds one wide (n, 512) wo matmul).
        ctx_ref[:, h * D_V:(h + 1) * D_V] = ctx_h.reshape(n, D_V).astype(jnp.bfloat16)

    # Output projection + residual + LayerNorm (residual = projected q stream,
    # matching the SVFEND MultiHeadAttention).
    att = _mm(ctx_ref[...], wo, bo)
    z1 = _layernorm(q2 + att, mln_g[0], mln_b[0])

    # Position-wise FFN (Conv1d k=1 == Linear) + residual + LayerNorm,
    # fused with the final modality encoder Linear + ReLU (Dropout = identity).
    z1_bf = z1.astype(jnp.bfloat16)
    h1 = jnp.maximum(_mm(z1_bf, w1, b1), 0.0).astype(jnp.bfloat16)
    y = _mm(h1, w2, b2)
    z2 = _layernorm(z1 + y, fln_g[0], fln_b[0])
    out = jnp.maximum(_mm(z2.astype(jnp.bfloat16), enc_w, enc_b), 0.0)

    out_ref[0] = out.reshape(b, lq, d).astype(out_ref.dtype)


def _dir_spec(shape):
    """Per-direction block: leading stacked axis indexed by the grid step."""
    nd = len(shape)
    return pl.BlockSpec((1,) + tuple(shape[1:]),
                        lambda i: (i,) + (0,) * (nd - 1))


def _swap_spec(shape):
    """Opposite-direction block (the key/value stream of the current step)."""
    nd = len(shape)
    return pl.BlockSpec((1,) + tuple(shape[1:]),
                        lambda i: (1 - i,) + (0,) * (nd - 1))


def _co_attention_fused(v, s, ca, enc_q, enc_kv):
    """v: (B, Lv, D), s: (B, Ls, D) -> (enc_q(co_v), enc_kv(co_s))."""
    b, lv, d = v.shape
    ls = s.shape[1]
    lmax = max(lv, ls)

    # Pad both streams to a common length and stack along a direction axis;
    # padded keys are neutralized by the additive key bias below, padded query
    # rows are sliced off after the kernel.  (Tiny wrapper-side XLA ops.)
    v_pad = v if lv == lmax else jnp.pad(v, ((0, 0), (0, lmax - lv), (0, 0)))
    s_pad = s if ls == lmax else jnp.pad(s, ((0, 0), (0, lmax - ls), (0, 0)))
    x = jnp.stack([v_pad, s_pad], axis=0)                # (2, B, Lmax, D)

    idx = jnp.arange(lmax)
    kv_bias = jnp.stack([
        jnp.where(idx < ls, 0.0, NEG_INF),               # dir 0 attends to s
        jnp.where(idx < lv, 0.0, NEG_INF),               # dir 1 attends to v
    ]).reshape(2, 1, lmax).astype(jnp.float32)

    enc_w = jnp.stack([enc_q["w"], enc_kv["w"]])         # (2, D, D) bf16
    enc_b = jnp.stack([enc_q["b"], enc_kv["b"]])         # (2, 1, D) f32

    stacked_keys = ("wq", "bq", "wk", "bk", "wv", "bv", "wo", "bo",
                    "mha_ln_g", "mha_ln_b",
                    "f_w1", "f_b1", "f_w2", "f_b2", "ffn_ln_g", "ffn_ln_b")

    args = [x, x, kv_bias,
            ca["lin_w"], ca["lin_b"], ca["lin_w"], ca["lin_b"]] \
           + [ca[k] for k in stacked_keys] + [enc_w, enc_b]

    in_specs = [_dir_spec(x.shape), _swap_spec(x.shape), _dir_spec(kv_bias.shape),
                _dir_spec(ca["lin_w"].shape), _dir_spec(ca["lin_b"].shape),
                _swap_spec(ca["lin_w"].shape), _swap_spec(ca["lin_b"].shape)] \
               + [_dir_spec(ca[k].shape) for k in stacked_keys] \
               + [_dir_spec(enc_w.shape), _dir_spec(enc_b.shape)]

    out = pl.pallas_call(
        _co_attention_kernel,
        out_shape=jax.ShapeDtypeStruct((2, b, lmax, d), jnp.float32),
        grid_spec=pltpu.PrefetchScalarGridSpec(
            num_scalar_prefetch=0,
            grid=(2,),
            in_specs=in_specs,
            out_specs=pl.BlockSpec((1, b, lmax, d), lambda i: (i, 0, 0, 0)),
            scratch_shapes=[pltpu.VMEM((b * lmax, HD_V), jnp.bfloat16)]),
        compiler_params=pltpu.CompilerParams(
            dimension_semantics=("parallel",)),
    )(*args)

    return out[0, :, :lv], out[1, :, :ls]


# ----------------------------------------------------------------------------
# Small fused Linear + ReLU kernel for the encoder-only modality paths
# ----------------------------------------------------------------------------
def _encoder_kernel(x_ref, w_ref, b_ref, o_ref):
    b, l, d = x_ref.shape
    dout = w_ref.shape[1]
    x2 = x_ref[...].reshape(b * l, d).astype(jnp.bfloat16)
    y = jnp.maximum(jnp.dot(x2, w_ref[...], preferred_element_type=jnp.float32)
                    + b_ref[...].astype(jnp.float32), 0.0)
    o_ref[...] = y.reshape(b, l, dout).astype(o_ref.dtype)


def _encode(x, p):
    b, l, _ = x.shape
    dout = p["w"].shape[1]
    return pl.pallas_call(
        _encoder_kernel,
        out_shape=jax.ShapeDtypeStruct((b, l, dout), jnp.float32),
    )(x, p["w"], p["b"])


# ----------------------------------------------------------------------------
# Module wrapper
# ----------------------------------------------------------------------------
def invariance_encoder_forward(params, fea_text, fea_comment, fea_intro,
                               fea_img, fea_video, fea_audio, modality_type):
    ca = params["co_attention"]
    if modality_type == "text":
        fea_visual = jnp.concatenate((fea_img, fea_video), axis=1)
        out_v, out_a = _co_attention_fused(fea_visual, fea_audio, ca,
                                           params["visual"], params["audio"])
        return out_v, out_a
    elif modality_type == "video":
        fea_t = jnp.concatenate((fea_text, fea_comment, fea_intro), axis=1)
        out_t, out_a = _co_attention_fused(fea_t, fea_audio, ca,
                                           params["text"], params["audio"])
        return out_t, out_a
    elif modality_type == "audio":
        fea_visual = jnp.concatenate((fea_img, fea_video), axis=1)
        out_v, out_t = _co_attention_fused(fea_visual, fea_text, ca,
                                           params["visual"], params["text"])
        return out_t, out_v
    elif modality_type == "ta":
        fea_visual = jnp.concatenate((fea_img, fea_video), axis=1)
        return _encode(fea_visual, params["visual"]), 0
    elif modality_type == "tv":
        return _encode(fea_audio, params["audio"]), 0
    elif modality_type == "va":
        fea_t = jnp.concatenate((fea_text, fea_comment, fea_intro), axis=1)
        return _encode(fea_t, params["text"]), 0
    else:
        raise ValueError(f"unknown modality_type: {modality_type}")


# ----------------------------------------------------------------------------
# Deterministic parameter initialization (synthetic — not a checkpoint load).
# Direction-specific weights are stored STACKED on a leading axis of size 2
# (index 0 = v-query direction modules, index 1 = s-query direction modules);
# a real checkpoint load would stack the per-module tensors the same way and
# pre-multiply W_Q / b_Q by 1/sqrt(d_k).
# ----------------------------------------------------------------------------
def init_params(key):
    D = D_MODEL
    att_scale = 1.0 / (float(D_K) ** 0.5)
    keys = iter(jax.random.split(key, 64))

    def w1(shape, scale=0.02):
        a = scale * jax.random.normal(next(keys), shape, jnp.float32)
        return a.astype(jnp.bfloat16)

    def w2(shape, scale=0.02, post=1.0):
        a = scale * jax.random.normal(next(keys), (2,) + shape, jnp.float32) * post
        return a.astype(jnp.bfloat16)

    def zeros2(shape):
        return jnp.zeros((2,) + shape, jnp.float32)

    def ones2(shape):
        return jnp.ones((2,) + shape, jnp.float32)

    def enc():
        return dict(w=w1((D, D)), b=jnp.zeros((1, D), jnp.float32))

    co_attention = dict(
        lin_w=w2((D, D)), lin_b=zeros2((1, D)),
        # W_Q / b_Q pre-multiplied by 1/sqrt(d_k) (softmax scale folded in).
        wq=w2((D, HD_K), post=att_scale), bq=zeros2((1, HD_K)),
        wk=w2((D, HD_K)), bk=zeros2((1, HD_K)),
        wv=w2((D, HD_V)), bv=zeros2((1, HD_V)),
        wo=w2((HD_V, D)), bo=zeros2((1, D)),
        mha_ln_g=ones2((1, D)), mha_ln_b=zeros2((1, D)),
        f_w1=w2((D, D_FF)), f_b1=zeros2((1, D_FF)),
        f_w2=w2((D_FF, D)), f_b2=zeros2((1, D)),
        ffn_ln_g=ones2((1, D)), ffn_ln_b=zeros2((1, D)),
    )

    return dict(visual=enc(), audio=enc(), text=enc(),
                co_attention=co_attention)


# ----------------------------------------------------------------------------
if __name__ == "__main__":
    key = jax.random.PRNGKey(0)
    kt, kc, ki, kimg, kvid, ka = jax.random.split(key, 6)

    B, D = 2, D_MODEL
    fea_text = jax.random.normal(kt, (B, 4, D), jnp.float32)
    fea_comment = jax.random.normal(kc, (B, 2, D), jnp.float32)
    fea_intro = jax.random.normal(ki, (B, 2, D), jnp.float32)
    fea_img = jax.random.normal(kimg, (B, 3, D), jnp.float32)
    fea_video = jax.random.normal(kvid, (B, 5, D), jnp.float32)
    fea_audio = jax.random.normal(ka, (B, 8, D), jnp.float32)

    params = init_params(jax.random.PRNGKey(42))

    fwd = jax.jit(invariance_encoder_forward, static_argnames=("modality_type",))

    # Co-attention path ('text'): equal stream lengths (Lv = Ls = 8),
    # one fused 2-step (direction-parallel) kernel.
    out_v, out_a = fwd(params, fea_text, fea_comment, fea_intro,
                       fea_img, fea_video, fea_audio, modality_type="text")
    jax.block_until_ready((out_v, out_a))
    assert out_v.shape == (B, 8, D) and out_a.shape == (B, 8, D)
    assert bool(jnp.all(jnp.isfinite(out_v))) and bool(jnp.all(jnp.isfinite(out_a)))

    # Co-attention path ('audio'): unequal lengths (Lv=8, Ls=4), exercises
    # the padding + key-bias masking path.
    out_t, out_vis = fwd(params, fea_text, fea_comment, fea_intro,
                         fea_img, fea_video, fea_audio, modality_type="audio")
    jax.block_until_ready((out_t, out_vis))
    assert out_t.shape == (B, 4, D) and out_vis.shape == (B, 8, D)
    assert bool(jnp.all(jnp.isfinite(out_t))) and bool(jnp.all(jnp.isfinite(out_vis)))

    # Pure-encoder path ('ta'): single small Linear+ReLU kernel.
    out_ta, _ = fwd(params, fea_text, fea_comment, fea_intro,
                    fea_img, fea_video, fea_audio, modality_type="ta")
    jax.block_until_ready(out_ta)
    assert out_ta.shape == (B, 8, D)

    print("KERNEL_OK")
</pallas_src>

<mosaic_0001>
module attributes {stable_mosaic.version = 11 : i64} {
  func.func @_co_attention_kernel(%arg0: i32, %arg1: memref<1x2x8x128xf32, #tpu.memory_space<vmem>>, %arg2: memref<1x2x8x128xf32, #tpu.memory_space<vmem>>, %arg3: memref<1x1x8xf32, #tpu.memory_space<vmem>>, %arg4: memref<1x128x128xbf16, #tpu.memory_space<vmem>>, %arg5: memref<1x1x128xf32, #tpu.memory_space<vmem>>, %arg6: memref<1x128x128xbf16, #tpu.memory_space<vmem>>, %arg7: memref<1x1x128xf32, #tpu.memory_space<vmem>>, %arg8: memref<1x128x512xbf16, #tpu.memory_space<vmem>>, %arg9: memref<1x1x512xf32, #tpu.memory_space<vmem>>, %arg10: memref<1x128x512xbf16, #tpu.memory_space<vmem>>, %arg11: memref<1x1x512xf32, #tpu.memory_space<vmem>>, %arg12: memref<1x128x512xbf16, #tpu.memory_space<vmem>>, %arg13: memref<1x1x512xf32, #tpu.memory_space<vmem>>, %arg14: memref<1x512x128xbf16, #tpu.memory_space<vmem>>, %arg15: memref<1x1x128xf32, #tpu.memory_space<vmem>>, %arg16: memref<1x1x128xf32, #tpu.memory_space<vmem>>, %arg17: memref<1x1x128xf32, #tpu.memory_space<vmem>>, %arg18: memref<1x128x128xbf16, #tpu.memory_space<vmem>>, %arg19: memref<1x1x128xf32, #tpu.memory_space<vmem>>, %arg20: memref<1x128x128xbf16, #tpu.memory_space<vmem>>, %arg21: memref<1x1x128xf32, #tpu.memory_space<vmem>>, %arg22: memref<1x1x128xf32, #tpu.memory_space<vmem>>, %arg23: memref<1x1x128xf32, #tpu.memory_space<vmem>>, %arg24: memref<1x128x128xbf16, #tpu.memory_space<vmem>>, %arg25: memref<1x1x128xf32, #tpu.memory_space<vmem>>, %arg26: memref<1x2x8x128xf32, #tpu.memory_space<vmem>>, %arg27: memref<16x512xbf16, #tpu.memory_space<vmem>>) attributes {dimension_semantics = [#tpu.dimension_semantics<parallel>], iteration_bounds = array<i64: 2>, scalar_prefetch = 0 : i64, scratch_operands = 1 : i64, tpu.core_type = #tpu.core_type<tc>, window_params = [{transform_indices = @transform_0, window_bounds = array<i64: 1, 2, 8, 128>}, {transform_indices = @transform_1, window_bounds = array<i64: 1, 2, 8, 128>}, {transform_indices = @transform_2, window_bounds = array<i64: 1, 1, 8>}, {transform_indices = @transform_3, window_bounds = array<i64: 1, 128, 128>}, {transform_indices = @transform_4, window_bounds = array<i64: 1, 1, 128>}, {transform_indices = @transform_5, window_bounds = array<i64: 1, 128, 128>}, {transform_indices = @transform_6, window_bounds = array<i64: 1, 1, 128>}, {transform_indices = @transform_7, window_bounds = array<i64: 1, 128, 512>}, {transform_indices = @transform_8, window_bounds = array<i64: 1, 1, 512>}, {transform_indices = @transform_9, window_bounds = array<i64: 1, 128, 512>}, {transform_indices = @transform_10, window_bounds = array<i64: 1, 1, 512>}, {transform_indices = @transform_11, window_bounds = array<i64: 1, 128, 512>}, {transform_indices = @transform_12, window_bounds = array<i64: 1, 1, 512>}, {transform_indices = @transform_13, window_bounds = array<i64: 1, 512, 128>}, {transform_indices = @transform_14, window_bounds = array<i64: 1, 1, 128>}, {transform_indices = @transform_15, window_bounds = array<i64: 1, 1, 128>}, {transform_indices = @transform_16, window_bounds = array<i64: 1, 1, 128>}, {transform_indices = @transform_17, window_bounds = array<i64: 1, 128, 128>}, {transform_indices = @transform_18, window_bounds = array<i64: 1, 1, 128>}, {transform_indices = @transform_19, window_bounds = array<i64: 1, 128, 128>}, {transform_indices = @transform_20, window_bounds = array<i64: 1, 1, 128>}, {transform_indices = @transform_21, window_bounds = array<i64: 1, 1, 128>}, {transform_indices = @transform_22, window_bounds = array<i64: 1, 1, 128>}, {transform_indices = @transform_23, window_bounds = array<i64: 1, 128, 128>}, {transform_indices = @transform_24, window_bounds = array<i64: 1, 1, 128>}, {transform_indices = @transform_25, window_bounds = array<i64: 1, 2, 8, 128>}]} {
    %c0 = arith.constant 0 : index
    %c0_0 = arith.constant 0 : index
    %c0_1 = arith.constant 0 : index
    %c0_2 = arith.constant 0 : index
    %0 = vector.load %arg1[%c0, %c0_0, %c0_1, %c0_2] : memref<1x2x8x128xf32, #tpu.memory_space<vmem>>, vector<1x2x8x128xf32>
    %1 = vector.shape_cast %0 : vector<1x2x8x128xf32> to vector<2x8x128xf32>
    %2 = vector.shape_cast %1 : vector<2x8x128xf32> to vector<16x128xf32>
    %3 = arith.truncf %2 : vector<16x128xf32> to vector<16x128xbf16>
    %c0_3 = arith.constant 0 : index
    %c0_4 = arith.constant 0 : index
    %c0_5 = arith.constant 0 : index
    %c0_6 = arith.constant 0 : index
    %4 = vector.load %arg2[%c0_3, %c0_4, %c0_5, %c0_6] : memref<1x2x8x128xf32, #tpu.memory_space<vmem>>, vector<1x2x8x128xf32>
    %5 = vector.shape_cast %4 : vector<1x2x8x128xf32> to vector<2x8x128xf32>
    %6 = vector.shape_cast %5 : vector<2x8x128xf32> to vector<16x128xf32>
    %7 = arith.truncf %6 : vector<16x128xf32> to vector<16x128xbf16>
    %c0_7 = arith.constant 0 : index
    %c0_8 = arith.constant 0 : index
    %c0_9 = arith.constant 0 : index
    %8 = vector.load %arg4[%c0_7, %c0_8, %c0_9] : memref<1x128x128xbf16, #tpu.memory_space<vmem>>, vector<1x128x128xbf16>
    %9 = vector.shape_cast %8 : vector<1x128x128xbf16> to vector<128x128xbf16>
    %cst = arith.constant dense<0.000000e+00> : vector<16x128xf32>
    %10 = tpu.matmul %3, %9, %cst {dimension_numbers = #tpu.dot_dimension_numbers<[1], [0], [0], [1], [0, 0, 1, 1], [], []>} : vector<16x128xbf16>, vector<128x128xbf16>, vector<16x128xf32> -> vector<16x128xf32>
    %c0_10 = arith.constant 0 : index
    %c0_11 = arith.constant 0 : index
    %c0_12 = arith.constant 0 : index
    %11 = vector.load %arg5[%c0_10, %c0_11, %c0_12] : memref<1x1x128xf32, #tpu.memory_space<vmem>>, vector<1x1x128xf32>
    %12 = vector.shape_cast %11 : vector<1x1x128xf32> to vector<1x128xf32>
    %13 = vector.broadcast %12 : vector<1x128xf32> to vector<16x128xf32>
    %14 = arith.addf %10, %13 : vector<16x128xf32>
    %c0_13 = arith.constant 0 : index
    %c0_14 = arith.constant 0 : index
    %c0_15 = arith.constant 0 : index
    %15 = vector.load %arg6[%c0_13, %c0_14, %c0_15] : memref<1x128x128xbf16, #tpu.memory_space<vmem>>, vector<1x128x128xbf16>
    %16 = vector.shape_cast %15 : vector<1x128x128xbf16> to vector<128x128xbf16>
    %cst_16 = arith.constant dense<0.000000e+00> : vector<16x128xf32>
    %17 = tpu.matmul %7, %16, %cst_16 {dimension_numbers = #tpu.dot_dimension_numbers<[1], [0], [0], [1], [0, 0, 1, 1], [], []>} : vector<16x128xbf16>, vector<128x128xbf16>, vector<16x128xf32> -> vector<16x128xf32>
    %c0_17 = arith.constant 0 : index
    %c0_18 = arith.constant 0 : index
    %c0_19 = arith.constant 0 : index
    %18 = vector.load %arg7[%c0_17, %c0_18, %c0_19] : memref<1x1x128xf32, #tpu.memory_space<vmem>>, vector<1x1x128xf32>
    %19 = vector.shape_cast %18 : vector<1x1x128xf32> to vector<1x128xf32>
    %20 = vector.broadcast %19 : vector<1x128xf32> to vector<16x128xf32>
    %21 = arith.addf %17, %20 : vector<16x128xf32>
    %22 = arith.truncf %14 : vector<16x128xf32> to vector<16x128xbf16>
    %23 = arith.truncf %21 : vector<16x128xf32> to vector<16x128xbf16>
    %c0_20 = arith.constant 0 : index
    %c0_21 = arith.constant 0 : index
    %c0_22 = arith.constant 0 : index
    %24 = vector.load %arg8[%c0_20, %c0_21, %c0_22] : memref<1x128x512xbf16, #tpu.memory_space<vmem>>, vector<1x128x512xbf16>
    %25 = vector.shape_cast %24 : vector<1x128x512xbf16> to vector<128x512xbf16>
    %cst_23 = arith.constant dense<0.000000e+00> : vector<16x512xf32>
    %26 = tpu.matmul %22, %25, %cst_23 {dimension_numbers = #tpu.dot_dimension_numbers<[1], [0], [0], [1], [0, 0, 1, 1], [], []>} : vector<16x128xbf16>, vector<128x512xbf16>, vector<16x512xf32> -> vector<16x512xf32>
    %c0_24 = arith.constant 0 : index
    %c0_25 = arith.constant 0 : index
    %c0_26 = arith.constant 0 : index
    %27 = vector.load %arg9[%c0_24, %c0_25, %c0_26] : memref<1x1x512xf32, #tpu.memory_space<vmem>>, vector<1x1x512xf32>
    %28 = vector.shape_cast %27 : vector<1x1x512xf32> to vector<1x512xf32>
    %29 = vector.broadcast %28 : vector<1x512xf32> to vector<16x512xf32>
    %30 = arith.addf %26, %29 : vector<16x512xf32>
    %31 = vector.shape_cast %30 : vector<16x512xf32> to vector<2x8x512xf32>
    %32 = arith.truncf %31 : vector<2x8x512xf32> to vector<2x8x512xbf16>
    %c0_27 = arith.constant 0 : index
    %c0_28 = arith.constant 0 : index
    %c0_29 = arith.constant 0 : index
    %33 = vector.load %arg10[%c0_27, %c0_28, %c0_29] : memref<1x128x512xbf16, #tpu.memory_space<vmem>>, vector<1x128x512xbf16>
    %34 = vector.shape_cast %33 : vector<1x128x512xbf16> to vector<128x512xbf16>
    %cst_30 = arith.constant dense<0.000000e+00> : vector<16x512xf32>
    %35 = tpu.matmul %23, %34, %cst_30 {dimension_numbers = #tpu.dot_dimension_numbers<[1], [0], [0], [1], [0, 0, 1, 1], [], []>} : vector<16x128xbf16>, vector<128x512xbf16>, vector<16x512xf32> -> vector<16x512xf32>
    %c0_31 = arith.constant 0 : index
    %c0_32 = arith.constant 0 : index
    %c0_33 = arith.constant 0 : index
    %36 = vector.load %arg11[%c0_31, %c0_32, %c0_33] : memref<1x1x512xf32, #tpu.memory_space<vmem>>, vector<1x1x512xf32>
    %37 = vector.shape_cast %36 : vector<1x1x512xf32> to vector<1x512xf32>
    %38 = vector.broadcast %37 : vector<1x512xf32> to vector<16x512xf32>
    %39 = arith.addf %35, %38 : vector<16x512xf32>
    %40 = vector.shape_cast %39 : vector<16x512xf32> to vector<2x8x512xf32>
    %41 = arith.truncf %40 : vector<2x8x512xf32> to vector<2x8x512xbf16>
    %c0_34 = arith.constant 0 : index
    %c0_35 = arith.constant 0 : index
    %c0_36 = arith.constant 0 : index
    %42 = vector.load %arg12[%c0_34, %c0_35, %c0_36] : memref<1x128x512xbf16, #tpu.memory_space<vmem>>, vector<1x128x512xbf16>
    %43 = vector.shape_cast %42 : vector<1x128x512xbf16> to vector<128x512xbf16>
    %cst_37 = arith.constant dense<0.000000e+00> : vector<16x512xf32>
    %44 = tpu.matmul %23, %43, %cst_37 {dimension_numbers = #tpu.dot_dimension_numbers<[1], [0], [0], [1], [0, 0, 1, 1], [], []>} : vector<16x128xbf16>, vector<128x512xbf16>, vector<16x512xf32> -> vector<16x512xf32>
    %c0_38 = arith.constant 0 : index
    %c0_39 = arith.constant 0 : index
    %c0_40 = arith.constant 0 : index
    %45 = vector.load %arg13[%c0_38, %c0_39, %c0_40] : memref<1x1x512xf32, #tpu.memory_space<vmem>>, vector<1x1x512xf32>
    %46 = vector.shape_cast %45 : vector<1x1x512xf32> to vector<1x512xf32>
    %47 = vector.broadcast %46 : vector<1x512xf32> to vector<16x512xf32>
    %48 = arith.addf %44, %47 : vector<16x512xf32>
    %49 = vector.shape_cast %48 : vector<16x512xf32> to vector<2x8x512xf32>
    %50 = arith.truncf %49 : vector<2x8x512xf32> to vector<2x8x512xbf16>
    %c0_41 = arith.constant 0 : index
    %c0_42 = arith.constant 0 : index
    %c0_43 = arith.constant 0 : index
    %51 = vector.load %arg3[%c0_41, %c0_42, %c0_43] : memref<1x1x8xf32, #tpu.memory_space<vmem>>, vector<1x1x8xf32>
    %52 = vector.extract_strided_slice %32 {offsets = [0, 0, 0], sizes = [2, 8, 128], strides = [1, 1, 1]} : vector<2x8x512xbf16> to vector<2x8x128xbf16>
    %53 = vector.extract_strided_slice %41 {offsets = [0, 0, 0], sizes = [2, 8, 128], strides = [1, 1, 1]} : vector<2x8x512xbf16> to vector<2x8x128xbf16>
    %54 = vector.extract_strided_slice %50 {offsets = [0, 0, 0], sizes = [2, 8, 128], strides = [1, 1, 1]} : vector<2x8x512xbf16> to vector<2x8x128xbf16>
    "tpu.trace_start"() <{level = 10 : i32, message = "bqd,bkd->bqk"}> : () -> ()
    %cst_44 = arith.constant dense<0.000000e+00> : vector<2x8x8xf32>
    %55 = tpu.matmul %52, %53, %cst_44 {dimension_numbers = #tpu.dot_dimension_numbers<[2], [2], [1], [1], [0, 0, 0, 1, 1, 1], [0], [0]>} : vector<2x8x128xbf16>, vector<2x8x128xbf16>, vector<2x8x8xf32> -> vector<2x8x8xf32>
    "tpu.trace_stop"() : () -> ()
    %56 = vector.broadcast %51 : vector<1x1x8xf32> to vector<2x8x8xf32>
    %57 = arith.addf %55, %56 : vector<2x8x8xf32>
    %cst_45 = arith.constant dense<0xFF800000> : vector<2x8xf32>
    %58 = vector.multi_reduction <maximumf>, %57, %cst_45 [2] : vector<2x8x8xf32> to vector<2x8xf32>
    %59 = vector.shape_cast %58 : vector<2x8xf32> to vector<2x8x1xf32>
    %60 = vector.broadcast %59 : vector<2x8x1xf32> to vector<2x8x8xf32>
    %61 = arith.subf %57, %60 : vector<2x8x8xf32>
    %62 = math.exp %61 : vector<2x8x8xf32>
    %cst_46 = arith.constant dense<0.000000e+00> : vector<2x8xf32>
    %63 = vector.multi_reduction <add>, %62, %cst_46 [2] : vector<2x8x8xf32> to vector<2x8xf32>
    %64 = vector.shape_cast %63 : vector<2x8xf32> to vector<2x8x1xf32>
    %65 = tpu.reciprocal %64 {approx = true} : vector<2x8x1xf32> -> vector<2x8x1xf32>
    %66 = vector.broadcast %65 : vector<2x8x1xf32> to vector<2x8x8xf32>
    %67 = arith.mulf %62, %66 : vector<2x8x8xf32>
    %68 = arith.truncf %67 : vector<2x8x8xf32> to vector<2x8x8xbf16>
    "tpu.trace_start"() <{level = 10 : i32, message = "bqk,bkd->bqd"}> : () -> ()
    %cst_47 = arith.constant dense<0.000000e+00> : vector<2x8x128xf32>
    %69 = tpu.matmul %68, %54, %cst_47 {dimension_numbers = #tpu.dot_dimension_numbers<[2], [1], [1], [2], [0, 0, 0, 1, 1, 2], [0], [0]>} : vector<2x8x8xbf16>, vector<2x8x128xbf16>, vector<2x8x128xf32> -> vector<2x8x128xf32>
    "tpu.trace_stop"() : () -> ()
    %70 = vector.shape_cast %69 : vector<2x8x128xf32> to vector<16x128xf32>
    %71 = arith.truncf %70 : vector<16x128xf32> to vector<16x128xbf16>
    %c0_48 = arith.constant 0 : index
    %c0_49 = arith.constant 0 : index
    %72 = vector.load %arg27[%c0_48, %c0_49] : memref<16x512xbf16, #tpu.memory_space<vmem>>, vector<16x128xbf16>
    tpu.vector_store %arg27[%c0_48, %c0_49], %71 {strides = array<i32>} : memref<16x512xbf16, #tpu.memory_space<vmem>>, vector<16x128xbf16>,
    %73 = vector.extract_strided_slice %32 {offsets = [0, 0, 128], sizes = [2, 8, 128], strides = [1, 1, 1]} : vector<2x8x512xbf16> to vector<2x8x128xbf16>
    %74 = vector.extract_strided_slice %41 {offsets = [0, 0, 128], sizes = [2, 8, 128], strides = [1, 1, 1]} : vector<2x8x512xbf16> to vector<2x8x128xbf16>
    %75 = vector.extract_strided_slice %50 {offsets = [0, 0, 128], sizes = [2, 8, 128], strides = [1, 1, 1]} : vector<2x8x512xbf16> to vector<2x8x128xbf16>
    "tpu.trace_start"() <{level = 10 : i32, message = "bqd,bkd->bqk"}> : () -> ()
    %cst_50 = arith.constant dense<0.000000e+00> : vector<2x8x8xf32>
    %76 = tpu.matmul %73, %74, %cst_50 {dimension_numbers = #tpu.dot_dimension_numbers<[2], [2], [1], [1], [0, 0, 0, 1, 1, 1], [0], [0]>} : vector<2x8x128xbf16>, vector<2x8x128xbf16>, vector<2x8x8xf32> -> vector<2x8x8xf32>
    "tpu.trace_stop"() : () -> ()
    %77 = vector.broadcast %51 : vector<1x1x8xf32> to vector<2x8x8xf32>
    %78 = arith.addf %76, %77 : vector<2x8x8xf32>
    %cst_51 = arith.constant dense<0xFF800000> : vector<2x8xf32>
    %79 = vector.multi_reduction <maximumf>, %78, %cst_51 [2] : vector<2x8x8xf32> to vector<2x8xf32>
    %80 = vector.shape_cast %79 : vector<2x8xf32> to vector<2x8x1xf32>
    %81 = vector.broadcast %80 : vector<2x8x1xf32> to vector<2x8x8xf32>
    %82 = arith.subf %78, %81 : vector<2x8x8xf32>
    %83 = math.exp %82 : vector<2x8x8xf32>
    %cst_52 = arith.constant dense<0.000000e+00> : vector<2x8xf32>
    %84 = vector.multi_reduction <add>, %83, %cst_52 [2] : vector<2x8x8xf32> to vector<2x8xf32>
    %85 = vector.shape_cast %84 : vector<2x8xf32> to vector<2x8x1xf32>
    %86 = tpu.reciprocal %85 {approx = true} : vector<2x8x1xf32> -> vector<2x8x1xf32>
    %87 = vector.broadcast %86 : vector<2x8x1xf32> to vector<2x8x8xf32>
    %88 = arith.mulf %83, %87 : vector<2x8x8xf32>
    %89 = arith.truncf %88 : vector<2x8x8xf32> to vector<2x8x8xbf16>
    "tpu.trace_start"() <{level = 10 : i32, message = "bqk,bkd->bqd"}> : () -> ()
    %cst_53 = arith.constant dense<0.000000e+00> : vector<2x8x128xf32>
    %90 = tpu.matmul %89, %75, %cst_53 {dimension_numbers = #tpu.dot_dimension_numbers<[2], [1], [1], [2], [0, 0, 0, 1, 1, 2], [0], [0]>} : vector<2x8x8xbf16>, vector<2x8x128xbf16>, vector<2x8x128xf32> -> vector<2x8x128xf32>
    "tpu.trace_stop"() : () -> ()
    %91 = vector.shape_cast %90 : vector<2x8x128xf32> to vector<16x128xf32>
    %92 = arith.truncf %91 : vector<16x128xf32> to vector<16x128xbf16>
    %c0_54 = arith.constant 0 : index
    %c128 = arith.constant 128 : index
    %93 = vector.load %arg27[%c0_54, %c128] : memref<16x512xbf16, #tpu.memory_space<vmem>>, vector<16x128xbf16>
    tpu.vector_store %arg27[%c0_54, %c128], %92 {strides = array<i32>} : memref<16x512xbf16, #tpu.memory_space<vmem>>, vector<16x128xbf16>,
    %94 = vector.extract_strided_slice %32 {offsets = [0, 0, 256], sizes = [2, 8, 128], strides = [1, 1, 1]} : vector<2x8x512xbf16> to vector<2x8x128xbf16>
    %95 = vector.extract_strided_slice %41 {offsets = [0, 0, 256], sizes = [2, 8, 128], strides = [1, 1, 1]} : vector<2x8x512xbf16> to vector<2x8x128xbf16>
    %96 = vector.extract_strided_slice %50 {offsets = [0, 0, 256], sizes = [2, 8, 128], strides = [1, 1, 1]} : vector<2x8x512xbf16> to vector<2x8x128xbf16>
    "tpu.trace_start"() <{level = 10 : i32, message = "bqd,bkd->bqk"}> : () -> ()
    %cst_55 = arith.constant dense<0.000000e+00> : vector<2x8x8xf32>
    %97 = tpu.matmul %94, %95, %cst_55 {dimension_numbers = #tpu.dot_dimension_numbers<[2], [2], [1], [1], [0, 0, 0, 1, 1, 1], [0], [0]>} : vector<2x8x128xbf16>, vector<2x8x128xbf16>, vector<2x8x8xf32> -> vector<2x8x8xf32>
    "tpu.trace_stop"() : () -> ()
    %98 = vector.broadcast %51 : vector<1x1x8xf32> to vector<2x8x8xf32>
    %99 = arith.addf %97, %98 : vector<2x8x8xf32>
    %cst_56 = arith.constant dense<0xFF800000> : vector<2x8xf32>
    %100 = vector.multi_reduction <maximumf>, %99, %cst_56 [2] : vector<2x8x8xf32> to vector<2x8xf32>
    %101 = vector.shape_cast %100 : vector<2x8xf32> to vector<2x8x1xf32>
    %102 = vector.broadcast %101 : vector<2x8x1xf32> to vector<2x8x8xf32>
    %103 = arith.subf %99, %102 : vector<2x8x8xf32>
    %104 = math.exp %103 : vector<2x8x8xf32>
    %cst_57 = arith.constant dense<0.000000e+00> : vector<2x8xf32>
    %105 = vector.multi_reduction <add>, %104, %cst_57 [2] : vector<2x8x8xf32> to vector<2x8xf32>
    %106 = vector.shape_cast %105 : vector<2x8xf32> to vector<2x8x1xf32>
    %107 = tpu.reciprocal %106 {approx = true} : vector<2x8x1xf32> -> vector<2x8x1xf32>
    %108 = vector.broadcast %107 : vector<2x8x1xf32> to vector<2x8x8xf32>
    %109 = arith.mulf %104, %108 : vector<2x8x8xf32>
    %110 = arith.truncf %109 : vector<2x8x8xf32> to vector<2x8x8xbf16>
    "tpu.trace_start"() <{level = 10 : i32, message = "bqk,bkd->bqd"}> : () -> ()
    %cst_58 = arith.constant dense<0.000000e+00> : vector<2x8x128xf32>
    %111 = tpu.matmul %110, %96, %cst_58 {dimension_numbers = #tpu.dot_dimension_numbers<[2], [1], [1], [2], [0, 0, 0, 1, 1, 2], [0], [0]>} : vector<2x8x8xbf16>, vector<2x8x128xbf16>, vector<2x8x128xf32> -> vector<2x8x128xf32>
    "tpu.trace_stop"() : () -> ()
    %112 = vector.shape_cast %111 : vector<2x8x128xf32> to vector<16x128xf32>
    %113 = arith.truncf %112 : vector<16x128xf32> to vector<16x128xbf16>
    %c0_59 = arith.constant 0 : index
    %c256 = arith.constant 256 : index
    %114 = vector.load %arg27[%c0_59, %c256] : memref<16x512xbf16, #tpu.memory_space<vmem>>, vector<16x128xbf16>
    tpu.vector_store %arg27[%c0_59, %c256], %113 {strides = array<i32>} : memref<16x512xbf16, #tpu.memory_space<vmem>>, vector<16x128xbf16>,
    %115 = vector.extract_strided_slice %32 {offsets = [0, 0, 384], sizes = [2, 8, 128], strides = [1, 1, 1]} : vector<2x8x512xbf16> to vector<2x8x128xbf16>
    %116 = vector.extract_strided_slice %41 {offsets = [0, 0, 384], sizes = [2, 8, 128], strides = [1, 1, 1]} : vector<2x8x512xbf16> to vector<2x8x128xbf16>
    %117 = vector.extract_strided_slice %50 {offsets = [0, 0, 384], sizes = [2, 8, 128], strides = [1, 1, 1]} : vector<2x8x512xbf16> to vector<2x8x128xbf16>
    "tpu.trace_start"() <{level = 10 : i32, message = "bqd,bkd->bqk"}> : () -> ()
    %cst_60 = arith.constant dense<0.000000e+00> : vector<2x8x8xf32>
    %118 = tpu.matmul %115, %116, %cst_60 {dimension_numbers = #tpu.dot_dimension_numbers<[2], [2], [1], [1], [0, 0, 0, 1, 1, 1], [0], [0]>} : vector<2x8x128xbf16>, vector<2x8x128xbf16>, vector<2x8x8xf32> -> vector<2x8x8xf32>
    "tpu.trace_stop"() : () -> ()
    %119 = vector.broadcast %51 : vector<1x1x8xf32> to vector<2x8x8xf32>
    %120 = arith.addf %118, %119 : vector<2x8x8xf32>
    %cst_61 = arith.constant dense<0xFF800000> : vector<2x8xf32>
    %121 = vector.multi_reduction <maximumf>, %120, %cst_61 [2] : vector<2x8x8xf32> to vector<2x8xf32>
    %122 = vector.shape_cast %121 : vector<2x8xf32> to vector<2x8x1xf32>
    %123 = vector.broadcast %122 : vector<2x8x1xf32> to vector<2x8x8xf32>
    %124 = arith.subf %120, %123 : vector<2x8x8xf32>
    %125 = math.exp %124 : vector<2x8x8xf32>
    %cst_62 = arith.constant dense<0.000000e+00> : vector<2x8xf32>
    %126 = vector.multi_reduction <add>, %125, %cst_62 [2] : vector<2x8x8xf32> to vector<2x8xf32>
    %127 = vector.shape_cast %126 : vector<2x8xf32> to vector<2x8x1xf32>
    %128 = tpu.reciprocal %127 {approx = true} : vector<2x8x1xf32> -> vector<2x8x1xf32>
    %129 = vector.broadcast %128 : vector<2x8x1xf32> to vector<2x8x8xf32>
    %130 = arith.mulf %125, %129 : vector<2x8x8xf32>
    %131 = arith.truncf %130 : vector<2x8x8xf32> to vector<2x8x8xbf16>
    "tpu.trace_start"() <{level = 10 : i32, message = "bqk,bkd->bqd"}> : () -> ()
    %cst_63 = arith.constant dense<0.000000e+00> : vector<2x8x128xf32>
    %132 = tpu.matmul %131, %117, %cst_63 {dimension_numbers = #tpu.dot_dimension_numbers<[2], [1], [1], [2], [0, 0, 0, 1, 1, 2], [0], [0]>} : vector<2x8x8xbf16>, vector<2x8x128xbf16>, vector<2x8x128xf32> -> vector<2x8x128xf32>
    "tpu.trace_stop"() : () -> ()
    %133 = vector.shape_cast %132 : vector<2x8x128xf32> to vector<16x128xf32>
    %134 = arith.truncf %133 : vector<16x128xf32> to vector<16x128xbf16>
    %c0_64 = arith.constant 0 : index
    %c384 = arith.constant 384 : index
    %135 = vector.load %arg27[%c0_64, %c384] : memref<16x512xbf16, #tpu.memory_space<vmem>>, vector<16x128xbf16>
    tpu.vector_store %arg27[%c0_64, %c384], %134 {strides = array<i32>} : memref<16x512xbf16, #tpu.memory_space<vmem>>, vector<16x128xbf16>,
    %c0_65 = arith.constant 0 : index
    %c0_66 = arith.constant 0 : index
    %136 = vector.load %arg27[%c0_65, %c0_66] : memref<16x512xbf16, #tpu.memory_space<vmem>>, vector<16x512xbf16>
    %c0_67 = arith.constant 0 : index
    %c0_68 = arith.constant 0 : index
    %c0_69 = arith.constant 0 : index
    %137 = vector.load %arg14[%c0_67, %c0_68, %c0_69] : memref<1x512x128xbf16, #tpu.memory_space<vmem>>, vector<1x512x128xbf16>
    %138 = vector.shape_cast %137 : vector<1x512x128xbf16> to vector<512x128xbf16>
    %cst_70 = arith.constant dense<0.000000e+00> : vector<16x128xf32>
    %139 = tpu.matmul %136, %138, %cst_70 {dimension_numbers = #tpu.dot_dimension_numbers<[1], [0], [0], [1], [0, 0, 1, 1], [], []>} : vector<16x512xbf16>, vector<512x128xbf16>, vector<16x128xf32> -> vector<16x128xf32>
    %c0_71 = arith.constant 0 : index
    %c0_72 = arith.constant 0 : index
    %c0_73 = arith.constant 0 : index
    %140 = vector.load %arg15[%c0_71, %c0_72, %c0_73] : memref<1x1x128xf32, #tpu.memory_space<vmem>>, vector<1x1x128xf32>
    %141 = vector.shape_cast %140 : vector<1x1x128xf32> to vector<1x128xf32>
    %142 = vector.broadcast %141 : vector<1x128xf32> to vector<16x128xf32>
    %143 = arith.addf %139, %142 : vector<16x128xf32>
    %144 = arith.addf %14, %143 : vector<16x128xf32>
    %c0_74 = arith.constant 0 : index
    %c0_75 = arith.constant 0 : index
    %c0_76 = arith.constant 0 : index
    %145 = vector.load %arg16[%c0_74, %c0_75, %c0_76] : memref<1x1x128xf32, #tpu.memory_space<vmem>>, vector<1x1x128xf32>
    %146 = vector.shape_cast %145 : vector<1x1x128xf32> to vector<1x128xf32>
    %c0_77 = arith.constant 0 : index
    %c0_78 = arith.constant 0 : index
    %c0_79 = arith.constant 0 : index
    %147 = vector.load %arg17[%c0_77, %c0_78, %c0_79] : memref<1x1x128xf32, #tpu.memory_space<vmem>>, vector<1x1x128xf32>
    %148 = vector.shape_cast %147 : vector<1x1x128xf32> to vector<1x128xf32>
    %cst_80 = arith.constant dense<0.000000e+00> : vector<16xf32>
    %149 = vector.multi_reduction <add>, %144, %cst_80 [1] : vector<16x128xf32> to vector<16xf32>
    %150 = vector.shape_cast %149 : vector<16xf32> to vector<16x1xf32>
    %cst_81 = arith.constant 1.280000e+02 : f32
    %151 = vector.broadcast %cst_81 : f32 to vector<16x1xf32>
    %152 = arith.divf %150, %151 : vector<16x1xf32>
    %153 = vector.broadcast %152 : vector<16x1xf32> to vector<16x128xf32>
    %154 = arith.subf %144, %153 : vector<16x128xf32>
    %155 = arith.mulf %154, %154 : vector<16x128xf32>
    %cst_82 = arith.constant dense<0.000000e+00> : vector<16xf32>
    %156 = vector.multi_reduction <add>, %155, %cst_82 [1] : vector<16x128xf32> to vector<16xf32>
    %157 = vector.shape_cast %156 : vector<16xf32> to vector<16x1xf32>
    %cst_83 = arith.constant 1.280000e+02 : f32
    %158 = vector.broadcast %cst_83 : f32 to vector<16x1xf32>
    %159 = arith.divf %157, %158 : vector<16x1xf32>
    %160 = vector.broadcast %152 : vector<16x1xf32> to vector<16x128xf32>
    %161 = arith.subf %144, %160 : vector<16x128xf32>
    %cst_84 = arith.constant 9.99999974E-6 : f32
    %162 = vector.broadcast %cst_84 : f32 to vector<16x1xf32>
    %163 = arith.addf %159, %162 : vector<16x1xf32>
    %164 = math.rsqrt %163 : vector<16x1xf32>
    %165 = vector.broadcast %164 : vector<16x1xf32> to vector<16x128xf32>
    %166 = arith.mulf %161, %165 : vector<16x128xf32>
    %167 = vector.broadcast %146 : vector<1x128xf32> to vector<16x128xf32>
    %168 = arith.mulf %166, %167 : vector<16x128xf32>
    %169 = vector.broadcast %148 : vector<1x128xf32> to vector<16x128xf32>
    %170 = arith.addf %168, %169 : vector<16x128xf32>
    %171 = arith.truncf %170 : vector<16x128xf32> to vector<16x128xbf16>
    %c0_85 = arith.constant 0 : index
    %c0_86 = arith.constant 0 : index
    %c0_87 = arith.constant 0 : index
    %172 = vector.load %arg18[%c0_85, %c0_86, %c0_87] : memref<1x128x128xbf16, #tpu.memory_space<vmem>>, vector<1x128x128xbf16>
    %173 = vector.shape_cast %172 : vector<1x128x128xbf16> to vector<128x128xbf16>
    %cst_88 = arith.constant dense<0.000000e+00> : vector<16x128xf32>
    %174 = tpu.matmul %171, %173, %cst_88 {dimension_numbers = #tpu.dot_dimension_numbers<[1], [0], [0], [1], [0, 0, 1, 1], [], []>} : vector<16x128xbf16>, vector<128x128xbf16>, vector<16x128xf32> -> vector<16x128xf32>
    %c0_89 = arith.constant 0 : index
    %c0_90 = arith.constant 0 : index
    %c0_91 = arith.constant 0 : index
    %175 = vector.load %arg19[%c0_89, %c0_90, %c0_91] : memref<1x1x128xf32, #tpu.memory_space<vmem>>, vector<1x1x128xf32>
    %176 = vector.shape_cast %175 : vector<1x1x128xf32> to vector<1x128xf32>
    %177 = vector.broadcast %176 : vector<1x128xf32> to vector<16x128xf32>
    %178 = arith.addf %174, %177 : vector<16x128xf32>
    %cst_92 = arith.constant 0.000000e+00 : f32
    %179 = vector.broadcast %cst_92 : f32 to vector<16x128xf32>
    %180 = arith.maximumf %178, %179 : vector<16x128xf32>
    %181 = arith.truncf %180 : vector<16x128xf32> to vector<16x128xbf16>
    %c0_93 = arith.constant 0 : index
    %c0_94 = arith.constant 0 : index
    %c0_95 = arith.constant 0 : index
    %182 = vector.load %arg20[%c0_93, %c0_94, %c0_95] : memref<1x128x128xbf16, #tpu.memory_space<vmem>>, vector<1x128x128xbf16>
    %183 = vector.shape_cast %182 : vector<1x128x128xbf16> to vector<128x128xbf16>
    %cst_96 = arith.constant dense<0.000000e+00> : vector<16x128xf32>
    %184 = tpu.matmul %181, %183, %cst_96 {dimension_numbers = #tpu.dot_dimension_numbers<[1], [0], [0], [1], [0, 0, 1, 1], [], []>} : vector<16x128xbf16>, vector<128x128xbf16>, vector<16x128xf32> -> vector<16x128xf32>
    %c0_97 = arith.constant 0 : index
    %c0_98 = arith.constant 0 : index
    %c0_99 = arith.constant 0 : index
    %185 = vector.load %arg21[%c0_97, %c0_98, %c0_99] : memref<1x1x128xf32, #tpu.memory_space<vmem>>, vector<1x1x128xf32>
    %186 = vector.shape_cast %185 : vector<1x1x128xf32> to vector<1x128xf32>
    %187 = vector.broadcast %186 : vector<1x128xf32> to vector<16x128xf32>
    %188 = arith.addf %184, %187 : vector<16x128xf32>
    %189 = arith.addf %170, %188 : vector<16x128xf32>
    %c0_100 = arith.constant 0 : index
    %c0_101 = arith.constant 0 : index
    %c0_102 = arith.constant 0 : index
    %190 = vector.load %arg22[%c0_100, %c0_101, %c0_102] : memref<1x1x128xf32, #tpu.memory_space<vmem>>, vector<1x1x128xf32>
    %191 = vector.shape_cast %190 : vector<1x1x128xf32> to vector<1x128xf32>
    %c0_103 = arith.constant 0 : index
    %c0_104 = arith.constant 0 : index
    %c0_105 = arith.constant 0 : index
    %192 = vector.load %arg23[%c0_103, %c0_104, %c0_105] : memref<1x1x128xf32, #tpu.memory_space<vmem>>, vector<1x1x128xf32>
    %193 = vector.shape_cast %192 : vector<1x1x128xf32> to vector<1x128xf32>
    %cst_106 = arith.constant dense<0.000000e+00> : vector<16xf32>
    %194 = vector.multi_reduction <add>, %189, %cst_106 [1] : vector<16x128xf32> to vector<16xf32>
    %195 = vector.shape_cast %194 : vector<16xf32> to vector<16x1xf32>
    %cst_107 = arith.constant 1.280000e+02 : f32
    %196 = vector.broadcast %cst_107 : f32 to vector<16x1xf32>
    %197 = arith.divf %195, %196 : vector<16x1xf32>
    %198 = vector.broadcast %197 : vector<16x1xf32> to vector<16x128xf32>
    %199 = arith.subf %189, %198 : vector<16x128xf32>
    %200 = arith.mulf %199, %199 : vector<16x128xf32>
    %cst_108 = arith.constant dense<0.000000e+00> : vector<16xf32>
    %201 = vector.multi_reduction <add>, %200, %cst_108 [1] : vector<16x128xf32> to vector<16xf32>
    %202 = vector.shape_cast %201 : vector<16xf32> to vector<16x1xf32>
    %cst_109 = arith.constant 1.280000e+02 : f32
    %203 = vector.broadcast %cst_109 : f32 to vector<16x1xf32>
    %204 = arith.divf %202, %203 : vector<16x1xf32>
    %205 = vector.broadcast %197 : vector<16x1xf32> to vector<16x128xf32>
    %206 = arith.subf %189, %205 : vector<16x128xf32>
    %cst_110 = arith.constant 9.99999974E-6 : f32
    %207 = vector.broadcast %cst_110 : f32 to vector<16x1xf32>
    %208 = arith.addf %204, %207 : vector<16x1xf32>
    %209 = math.rsqrt %208 : vector<16x1xf32>
    %210 = vector.broadcast %209 : vector<16x1xf32> to vector<16x128xf32>
    %211 = arith.mulf %206, %210 : vector<16x128xf32>
    %212 = vector.broadcast %191 : vector<1x128xf32> to vector<16x128xf32>
    %213 = arith.mulf %211, %212 : vector<16x128xf32>
    %214 = vector.broadcast %193 : vector<1x128xf32> to vector<16x128xf32>
    %215 = arith.addf %213, %214 : vector<16x128xf32>
    %216 = arith.truncf %215 : vector<16x128xf32> to vector<16x128xbf16>
    %c0_111 = arith.constant 0 : index
    %c0_112 = arith.constant 0 : index
    %c0_113 = arith.constant 0 : index
    %217 = vector.load %arg24[%c0_111, %c0_112, %c0_113] : memref<1x128x128xbf16, #tpu.memory_space<vmem>>, vector<1x128x128xbf16>
    %218 = vector.shape_cast %217 : vector<1x128x128xbf16> to vector<128x128xbf16>
    %cst_114 = arith.constant dense<0.000000e+00> : vector<16x128xf32>
    %219 = tpu.matmul %216, %218, %cst_114 {dimension_numbers = #tpu.dot_dimension_numbers<[1], [0], [0], [1], [0, 0, 1, 1], [], []>} : vector<16x128xbf16>, vector<128x128xbf16>, vector<16x128xf32> -> vector<16x128xf32>
    %c0_115 = arith.constant 0 : index
    %c0_116 = arith.constant 0 : index
    %c0_117 = arith.constant 0 : index
    %220 = vector.load %arg25[%c0_115, %c0_116, %c0_117] : memref<1x1x128xf32, #tpu.memory_space<vmem>>, vector<1x1x128xf32>
    %221 = vector.shape_cast %220 : vector<1x1x128xf32> to vector<1x128xf32>
    %222 = vector.broadcast %221 : vector<1x128xf32> to vector<16x128xf32>
    %223 = arith.addf %219, %222 : vector<16x128xf32>
    %cst_118 = arith.constant 0.000000e+00 : f32
    %224 = vector.broadcast %cst_118 : f32 to vector<16x128xf32>
    %225 = arith.maximumf %223, %224 : vector<16x128xf32>
    %226 = vector.shape_cast %225 : vector<16x128xf32> to vector<2x8x128xf32>
    %c0_119 = arith.constant 0 : index
    %c0_120 = arith.constant 0 : index
    %c0_121 = arith.constant 0 : index
    %c0_122 = arith.constant 0 : index
    %227 = vector.load %arg26[%c0_119, %c0_120, %c0_121, %c0_122] : memref<1x2x8x128xf32, #tpu.memory_space<vmem>>, vector<1x2x8x128xf32>
    %228 = vector.shape_cast %227 : vector<1x2x8x128xf32> to vector<2x8x128xf32>
    %229 = vector.shape_cast %226 : vector<2x8x128xf32> to vector<1x2x8x128xf32>
    tpu.vector_store %arg26[%c0_119, %c0_120, %c0_121, %c0_122], %229 {strides = array<i32>} : memref<1x2x8x128xf32, #tpu.memory_space<vmem>>, vector<1x2x8x128xf32>,
    return
  }
  func.func @transform_0(%arg0: i32) -> (i32, i32, i32, i32) {
    %c0_i32 = arith.constant 0 : i32
    %c0_i32_0 = arith.constant 0 : i32
    %c0_i32_1 = arith.constant 0 : i32
    %c0_i32_2 = arith.constant 0 : i32
    return %arg0, %c0_i32, %c0_i32_0, %c0_i32_1 : i32, i32, i32, i32
  }
  func.func @transform_1(%arg0: i32) -> (i32, i32, i32, i32) {
    %c1_i32 = arith.constant 1 : i32
    %0 = arith.subi %c1_i32, %arg0 : i32
    %c0_i32 = arith.constant 0 : i32
    %c0_i32_0 = arith.constant 0 : i32
    %c0_i32_1 = arith.constant 0 : i32
    %c0_i32_2 = arith.constant 0 : i32
    return %0, %c0_i32, %c0_i32_0, %c0_i32_1 : i32, i32, i32, i32
  }
  func.func @transform_2(%arg0: i32) -> (i32, i32, i32) {
    %c0_i32 = arith.constant 0 : i32
    %c0_i32_0 = arith.constant 0 : i32
    %c0_i32_1 = arith.constant 0 : i32
    return %arg0, %c0_i32, %c0_i32_0 : i32, i32, i32
  }
  func.func @transform_3(%arg0: i32) -> (i32, i32, i32) {
    %c0_i32 = arith.constant 0 : i32
    %c0_i32_0 = arith.constant 0 : i32
    %c0_i32_1 = arith.constant 0 : i32
    return %arg0, %c0_i32, %c0_i32_0 : i32, i32, i32
  }
  func.func @transform_4(%arg0: i32) -> (i32, i32, i32) {
    %c0_i32 = arith.constant 0 : i32
    %c0_i32_0 = arith.constant 0 : i32
    %c0_i32_1 = arith.constant 0 : i32
    return %arg0, %c0_i32, %c0_i32_0 : i32, i32, i32
  }
  func.func @transform_5(%arg0: i32) -> (i32, i32, i32) {
    %c1_i32 = arith.constant 1 : i32
    %0 = arith.subi %c1_i32, %arg0 : i32
    %c0_i32 = arith.constant 0 : i32
    %c0_i32_0 = arith.constant 0 : i32
    %c0_i32_1 = arith.constant 0 : i32
    return %0, %c0_i32, %c0_i32_0 : i32, i32, i32
  }
  func.func @transform_6(%arg0: i32) -> (i32, i32, i32) {
    %c1_i32 = arith.constant 1 : i32
    %0 = arith.subi %c1_i32, %arg0 : i32
    %c0_i32 = arith.constant 0 : i32
    %c0_i32_0 = arith.constant 0 : i32
    %c0_i32_1 = arith.constant 0 : i32
    return %0, %c0_i32, %c0_i32_0 : i32, i32, i32
  }
  func.func @transform_7(%arg0: i32) -> (i32, i32, i32) {
    %c0_i32 = arith.constant 0 : i32
    %c0_i32_0 = arith.constant 0 : i32
    %c0_i32_1 = arith.constant 0 : i32
    return %arg0, %c0_i32, %c0_i32_0 : i32, i32, i32
  }
  func.func @transform_8(%arg0: i32) -> (i32, i32, i32) {
    %c0_i32 = arith.constant 0 : i32
    %c0_i32_0 = arith.constant 0 : i32
    %c0_i32_1 = arith.constant 0 : i32
    return %arg0, %c0_i32, %c0_i32_0 : i32, i32, i32
  }
  func.func @transform_9(%arg0: i32) -> (i32, i32, i32) {
    %c0_i32 = arith.constant 0 : i32
    %c0_i32_0 = arith.constant 0 : i32
    %c0_i32_1 = arith.constant 0 : i32
    return %arg0, %c0_i32, %c0_i32_0 : i32, i32, i32
  }
  func.func @transform_10(%arg0: i32) -> (i32, i32, i32) {
    %c0_i32 = arith.constant 0 : i32
    %c0_i32_0 = arith.constant 0 : i32
    %c0_i32_1 = arith.constant 0 : i32
    return %arg0, %c0_i32, %c0_i32_0 : i32, i32, i32
  }
  func.func @transform_11(%arg0: i32) -> (i32, i32, i32) {
    %c0_i32 = arith.constant 0 : i32
    %c0_i32_0 = arith.constant 0 : i32
    %c0_i32_1 = arith.constant 0 : i32
    return %arg0, %c0_i32, %c0_i32_0 : i32, i32, i32
  }
  func.func @transform_12(%arg0: i32) -> (i32, i32, i32) {
    %c0_i32 = arith.constant 0 : i32
    %c0_i32_0 = arith.constant 0 : i32
    %c0_i32_1 = arith.constant 0 : i32
    return %arg0, %c0_i32, %c0_i32_0 : i32, i32, i32
  }
  func.func @transform_13(%arg0: i32) -> (i32, i32, i32) {
    %c0_i32 = arith.constant 0 : i32
    %c0_i32_0 = arith.constant 0 : i32
    %c0_i32_1 = arith.constant 0 : i32
    return %arg0, %c0_i32, %c0_i32_0 : i32, i32, i32
  }
  func.func @transform_14(%arg0: i32) -> (i32, i32, i32) {
    %c0_i32 = arith.constant 0 : i32
    %c0_i32_0 = arith.constant 0 : i32
    %c0_i32_1 = arith.constant 0 : i32
    return %arg0, %c0_i32, %c0_i32_0 : i32, i32, i32
  }
  func.func @transform_15(%arg0: i32) -> (i32, i32, i32) {
    %c0_i32 = arith.constant 0 : i32
    %c0_i32_0 = arith.constant 0 : i32
    %c0_i32_1 = arith.constant 0 : i32
    return %arg0, %c0_i32, %c0_i32_0 : i32, i32, i32
  }
  func.func @transform_16(%arg0: i32) -> (i32, i32, i32) {
    %c0_i32 = arith.constant 0 : i32
    %c0_i32_0 = arith.constant 0 : i32
    %c0_i32_1 = arith.constant 0 : i32
    return %arg0, %c0_i32, %c0_i32_0 : i32, i32, i32
  }
  func.func @transform_17(%arg0: i32) -> (i32, i32, i32) {
    %c0_i32 = arith.constant 0 : i32
    %c0_i32_0 = arith.constant 0 : i32
    %c0_i32_1 = arith.constant 0 : i32
    return %arg0, %c0_i32, %c0_i32_0 : i32, i32, i32
  }
  func.func @transform_18(%arg0: i32) -> (i32, i32, i32) {
    %c0_i32 = arith.constant 0 : i32
    %c0_i32_0 = arith.constant 0 : i32
    %c0_i32_1 = arith.constant 0 : i32
    return %arg0, %c0_i32, %c0_i32_0 : i32, i32, i32
  }
  func.func @transform_19(%arg0: i32) -> (i32, i32, i32) {
    %c0_i32 = arith.constant 0 : i32
    %c0_i32_0 = arith.constant 0 : i32
    %c0_i32_1 = arith.constant 0 : i32
    return %arg0, %c0_i32, %c0_i32_0 : i32, i32, i32
  }
  func.func @transform_20(%arg0: i32) -> (i32, i32, i32) {
    %c0_i32 = arith.constant 0 : i32
    %c0_i32_0 = arith.constant 0 : i32
    %c0_i32_1 = arith.constant 0 : i32
    return %arg0, %c0_i32, %c0_i32_0 : i32, i32, i32
  }
  func.func @transform_21(%arg0: i32) -> (i32, i32, i32) {
    %c0_i32 = arith.constant 0 : i32
    %c0_i32_0 = arith.constant 0 : i32
    %c0_i32_1 = arith.constant 0 : i32
    return %arg0, %c0_i32, %c0_i32_0 : i32, i32, i32
  }
  func.func @transform_22(%arg0: i32) -> (i32, i32, i32) {
    %c0_i32 = arith.constant 0 : i32
    %c0_i32_0 = arith.constant 0 : i32
    %c0_i32_1 = arith.constant 0 : i32
    return %arg0, %c0_i32, %c0_i32_0 : i32, i32, i32
  }
  func.func @transform_23(%arg0: i32) -> (i32, i32, i32) {
    %c0_i32 = arith.constant 0 : i32
    %c0_i32_0 = arith.constant 0 : i32
    %c0_i32_1 = arith.constant 0 : i32
    return %arg0, %c0_i32, %c0_i32_0 : i32, i32, i32
  }
  func.func @transform_24(%arg0: i32) -> (i32, i32, i32) {
    %c0_i32 = arith.constant 0 : i32
    %c0_i32_0 = arith.constant 0 : i32
    %c0_i32_1 = arith.constant 0 : i32
    return %arg0, %c0_i32, %c0_i32_0 : i32, i32, i32
  }
  func.func @transform_25(%arg0: i32) -> (i32, i32, i32, i32) {
    %c0_i32 = arith.constant 0 : i32
    %c0_i32_0 = arith.constant 0 : i32
    %c0_i32_1 = arith.constant 0 : i32
    %c0_i32_2 = arith.constant 0 : i32
    return %arg0, %c0_i32, %c0_i32_0, %c0_i32_1 : i32, i32, i32, i32
  }
}

</mosaic_0001>

<llo_original>
// kernel: invariance_encoder_forward.1
$region0: #{invariance_encoder_forward.1}
  #allocation0 [shape = 'u32[]', space=smem, size = 0x4, offset = 0x4, fixed_abs, tag = 'smem constant byte address 0x4 - core index']
  #allocation1 [shape = 'u32[144,128]{1,0:T(1,128)}', space=vmem, size = 0x12000, scoped, tag = 'internal scratch']
  #allocation2 [shape = 'bf16[16,512]{1,0:T(16,128)(2,1)}', space=vmem, size = 0x4000, scoped, tag = 'scratch operand']
  %s0 = inlined_call_operand.vmem [shape: f32[2,2,8,128], index: 0, kind: input, shape index: {}, may-alias: {0,1}]
  %s1 = inlined_call_operand.vmem [shape: f32[2,2,8,128], index: 1, kind: input, shape index: {}, may-alias: {0,1}]
  %s2 = inlined_call_operand.vmem [shape: f32[2,1,8], index: 2, kind: input, shape index: {}]
  %s3 = inlined_call_operand.vmem [shape: bf16[2,128,128], index: 3, kind: input, shape index: {}, may-alias: {3,5}]
  %s4 = inlined_call_operand.hbm [shape: f32[2,1,128], index: 4, kind: input, shape index: {}, may-alias: {4,6}]
  %s5 = inlined_call_operand.vmem [shape: bf16[2,128,128], index: 5, kind: input, shape index: {}, may-alias: {3,5}]
  %s6 = inlined_call_operand.hbm [shape: f32[2,1,128], index: 6, kind: input, shape index: {}, may-alias: {4,6}]
  %s7 = inlined_call_operand.hbm [shape: bf16[2,128,512], index: 7, kind: input, shape index: {}]
  %s8 = inlined_call_operand.hbm [shape: f32[2,1,512], index: 8, kind: input, shape index: {}]
  %s9 = inlined_call_operand.hbm [shape: bf16[2,128,512], index: 9, kind: input, shape index: {}]
  %s10 = inlined_call_operand.hbm [shape: f32[2,1,512], index: 10, kind: input, shape index: {}]
  %s11 = inlined_call_operand.hbm [shape: bf16[2,128,512], index: 11, kind: input, shape index: {}]
  %s12 = inlined_call_operand.hbm [shape: f32[2,1,512], index: 12, kind: input, shape index: {}]
  %s13 = inlined_call_operand.hbm [shape: bf16[2,512,128], index: 13, kind: input, shape index: {}]
  %s14 = inlined_call_operand.hbm [shape: f32[2,1,128], index: 14, kind: input, shape index: {}]
  %s15 = inlined_call_operand.vmem [shape: f32[2,1,128], index: 15, kind: input, shape index: {}]
  %s16 = inlined_call_operand.hbm [shape: f32[2,1,128], index: 16, kind: input, shape index: {}]
  %s17 = inlined_call_operand.vmem [shape: bf16[2,128,128], index: 17, kind: input, shape index: {}]
  %s18 = inlined_call_operand.hbm [shape: f32[2,1,128], index: 18, kind: input, shape index: {}]
  %s19 = inlined_call_operand.vmem [shape: bf16[2,128,128], index: 19, kind: input, shape index: {}]
  %s20 = inlined_call_operand.hbm [shape: f32[2,1,128], index: 20, kind: input, shape index: {}]
  %s21 = inlined_call_operand.hbm [shape: f32[2,1,128], index: 21, kind: input, shape index: {}]
  %s22 = inlined_call_operand.hbm [shape: f32[2,1,128], index: 22, kind: input, shape index: {}]
  %s23 = inlined_call_operand.vmem [shape: bf16[2,128,128], index: 23, kind: input, shape index: {}]
  %s24 = inlined_call_operand.vmem [shape: f32[2,1,128], index: 24, kind: input, shape index: {}]
  %s25 = inlined_call_operand.vmem [shape: f32[2,2,8,128], index: 25, kind: output, shape index: {}]
  %s26 = sld [smem:[#allocation0]]
  $region193: #{invariance_encoder_forward.1} parent=0
    _
  %s28 = ssub.s32 1, %s26
  %s29 = scalar_select 0, %s28, %s26
  $region1: #{invariance_encoder_forward.1} parent=0
    #allocation3 [shape = 'u8[1024]{0}', space=vmem, size = 0x400, scoped, tag = 'input window, operand 4']
    #allocation4 [shape = 's32[2]{0}', space=sflag, size = 0x8, scoped, tag = 'scoped memory for invariance_encoder_forward.1']
    #allocation5 [shape = 'u8[1024]{0}', space=vmem, size = 0x400, scoped, tag = 'input window, operand 6']
    #allocation6 [shape = 's32[2]{0}', space=sflag, size = 0x8, scoped, tag = 'scoped memory for invariance_encoder_forward.1']
    #allocation7 [shape = 'u8[262144]{0}', space=vmem, size = 0x40000, scoped, tag = 'input window, operand 7']
    #allocation8 [shape = 'u8[4096]{0}', space=vmem, size = 0x1000, scoped, tag = 'input window, operand 8']
    #allocation9 [shape = 's32[2]{0}', space=sflag, size = 0x8, scoped, tag = 'scoped memory for invariance_encoder_forward.1']
    #allocation10 [shape = 'u8[262144]{0}', space=vmem, size = 0x40000, scoped, tag = 'input window, operand 9']
    #allocation11 [shape = 'u8[4096]{0}', space=vmem, size = 0x1000, scoped, tag = 'input window, operand 10']
    #allocation12 [shape = 's32[2]{0}', space=sflag, size = 0x8, scoped, tag = 'scoped memory for invariance_encoder_forward.1']
    #allocation13 [shape = 'u8[262144]{0}', space=vmem, size = 0x40000, scoped, tag = 'input window, operand 11']
    #allocation14 [shape = 'u8[4096]{0}', space=vmem, size = 0x1000, scoped, tag = 'input window, operand 12']
    #allocation15 [shape = 's32[2]{0}', space=sflag, size = 0x8, scoped, tag = 'scoped memory for invariance_encoder_forward.1']
    #allocation16 [shape = 'u8[262144]{0}', space=vmem, size = 0x40000, scoped, tag = 'input window, operand 13']
    #allocation17 [shape = 'u8[1024]{0}', space=vmem, size = 0x400, scoped, tag = 'input window, operand 14']
    #allocation18 [shape = 's32[2]{0}', space=sflag, size = 0x8, scoped, tag = 'scoped memory for invariance_encoder_forward.1']
    #allocation19 [shape = 'u8[1024]{0}', space=vmem, size = 0x400, scoped, tag = 'input window, operand 16']
    #allocation20 [shape = 'u8[1024]{0}', space=vmem, size = 0x400, scoped, tag = 'input window, operand 18']
    #allocation21 [shape = 's32[2]{0}', space=sflag, size = 0x8, scoped, tag = 'scoped memory for invariance_encoder_forward.1']
    #allocation22 [shape = 'u8[1024]{0}', space=vmem, size = 0x400, scoped, tag = 'input window, operand 20']
    #allocation23 [shape = 'u8[1024]{0}', space=vmem, size = 0x400, scoped, tag = 'input window, operand 21']
    #allocation24 [shape = 's32[2]{0}', space=sflag, size = 0x8, scoped, tag = 'scoped memory for invariance_encoder_forward.1']
    #allocation25 [shape = 'u8[1024]{0}', space=vmem, size = 0x400, scoped, tag = 'input window, operand 22']
    %30 = vsyncpa [#allocation4], 0
    %s31 = scalar_lea.sflag [#allocation4], 1
    %32 = vsyncpa %s31, 0
    %33 = vsyncpa [#allocation6], 0
    %s34 = scalar_lea.sflag [#allocation6], 1
    %35 = vsyncpa %s34, 0
    %36 = vsyncpa [#allocation9], 0
    %s37 = scalar_lea.sflag [#allocation9], 1
    %38 = vsyncpa %s37, 0
    %39 = vsyncpa [#allocation12], 0
    %s40 = scalar_lea.sflag [#allocation12], 1
    %41 = vsyncpa %s40, 0
    %42 = vsyncpa [#allocation15], 0
    %s43 = scalar_lea.sflag [#allocation15], 1
    %44 = vsyncpa %s43, 0
    %45 = vsyncpa [#allocation18], 0
    %s46 = scalar_lea.sflag [#allocation18], 1
    %47 = vsyncpa %s46, 0
    %48 = vsyncpa [#allocation21], 0
    %s49 = scalar_lea.sflag [#allocation21], 1
    %50 = vsyncpa %s49, 0
    %51 = vsyncpa [#allocation24], 0
    %s52 = scalar_lea.sflag [#allocation24], 1
    %53 = vsyncpa %s52, 0
    loop: start=0, step=1, limit=4
    $region2: #{invariance_encoder_forward.1} parent=1 // loop_pre_header
      _
    $region3: #{invariance_encoder_forward.1} parent=1 // loop_header
      %s55 = sphi 0, %s59
      %p56 = scmp.ge.s32.totalorder %s55, 4
      %s65 = sphi 0, %s67
      %s68 = sphi 0, %s65
      %s69 = sphi 0, %s68
      %s85 = sphi 0, %s69
      %s93 = sphi 0, %s95
      %s96 = sphi 0, %s93
      %s97 = sphi 0, %s96
      %s113 = sphi 0, %s97
      %s119 = sphi 0, %s121
      %s122 = sphi 0, %s119
      %s123 = sphi 0, %s122
      %s139 = sphi 0, %s123
      %s145 = sphi 0, %s147
      %s148 = sphi 0, %s145
      %s149 = sphi 0, %s148
      %s165 = sphi 0, %s149
      %s171 = sphi 0, %s173
      %s174 = sphi 0, %s171
      %s175 = sphi 0, %s174
      %s191 = sphi 0, %s175
      %s199 = sphi 0, %s201
      %s202 = sphi 0, %s199
      %s203 = sphi 0, %s202
      %s219 = sphi 0, %s203
      %s227 = sphi 0, %s229
      %s230 = sphi 0, %s227
      %s231 = sphi 0, %s230
      %s247 = sphi 0, %s231
      %s253 = sphi 0, %s255
      %s256 = sphi 0, %s253
      %s257 = sphi 0, %s256
      %s273 = sphi 0, %s257
      %s279 = sphi 0, %s281
      %s282 = sphi 0, %s279
      %s283 = sphi 0, %s282
      %s299 = sphi 0, %s283
      %s305 = sphi 0, %s307
      %s308 = sphi 0, %s305
      %s309 = sphi 0, %s308
      %s325 = sphi 0, %s309
      %s331 = sphi 0, %s333
      %s334 = sphi 0, %s331
      %s335 = sphi 0, %s334
      %s351 = sphi 0, %s335
      %s357 = sphi 0, %s359
      %s360 = sphi 0, %s357
      %s361 = sphi 0, %s360
      %s377 = sphi 0, %s361
      %s383 = sphi 0, %s385
      %s386 = sphi 0, %s383
      %s387 = sphi 0, %s386
      %s403 = sphi 0, %s387
      %s409 = sphi 0, %s411
      %s412 = sphi 0, %s409
      %s413 = sphi 0, %s412
      %s429 = sphi 0, %s413
      %s435 = sphi 0, %s437
      %s438 = sphi 0, %s435
      %s439 = sphi 0, %s438
      %s455 = sphi 0, %s439
      %s461 = sphi 0, %s463
      %s464 = sphi 0, %s461
      %s465 = sphi 0, %s464
      %s481 = sphi 0, %s465
      %s487 = sphi 0, %s489
      %s490 = sphi 0, %s487
      %s491 = sphi 0, %s490
      %s507 = sphi 0, %s491
      %s513 = sphi 0, %s515
      %s516 = sphi 0, %s513
      %s517 = sphi 0, %s516
      %s533 = sphi 0, %s517
      %s539 = sphi 0, %s541
      %s542 = sphi 0, %s539
      %s543 = sphi 0, %s542
      %s559 = sphi 0, %s543
      %s565 = sphi 0, %s567
      %s568 = sphi 0, %s565
      %s569 = sphi 0, %s568
      %s585 = sphi 0, %s569
      %s591 = sphi 0, %s593
      %s594 = sphi 0, %s591
      %s595 = sphi 0, %s594
      %s611 = sphi 0, %s595
      %s617 = sphi 0, %s619
      %s620 = sphi 0, %s617
      %s621 = sphi 0, %s620
      %s637 = sphi 0, %s621
      %s643 = sphi 0, %s645
      %s646 = sphi 0, %s643
      %s647 = sphi 0, %s646
      %s663 = sphi 0, %s647
      %s669 = sphi 0, %s671
      %s672 = sphi 0, %s669
      %s673 = sphi 0, %s672
      %s689 = sphi 0, %s673
      %s695 = sphi 0, %s697
      %s698 = sphi 0, %s695
      %s699 = sphi 0, %s698
      %s715 = sphi 0, %s699
      %s721 = sphi 0, %s723
      %s724 = sphi 0, %s721
      %s725 = sphi 0, %s724
      %s741 = sphi 0, %s725
    $region4: #{invariance_encoder_forward.1} parent=1 // loop_header_branch
      %58 = sbr.rel (%p56) target = $region8
    $region5: #{invariance_encoder_forward.1} parent=1 // loop_body
      %s60 = ssub.s32 %s55, 1
      %s61 = ssub.s32 %s55, 2
      %s62 = sadd.s32 %s55, 1
      %s63 = ssub.s32 %s55, %s62
      %p64 = scmp.eq.s32.totalorder %s63, 0
      %s66 = sadd.s32 %s65, 1
      %s67 = scalar_select %p64, %s65, %s66
      %p70 = pneg %p64
      %p71 = scmp.eq.s32.totalorder %s55, 1
      %p72 = por %p70, %p71
      %p73 = scmp.ne.s32.totalorder %s65, %s68
      %p74 = scmp.eq.s32.totalorder %s55, 0
      %p75 = por %p73, %p74
      %p76 = scmp.ne.s32.totalorder %s65, %s68
      %p77 = scmp.eq.s32.totalorder %s60, 1
      %p78 = por %p76, %p77
      %p79 = scmp.ne.s32.totalorder %s68, %s69
      %p80 = scmp.eq.s32.totalorder %s60, 0
      %p81 = por %p79, %p80
      %p82 = scmp.ne.s32.totalorder %s68, %s69
      %p83 = scmp.eq.s32.totalorder %s61, 1
      %p84 = por %p82, %p83
      %p86 = scmp.ne.s32.totalorder %s69, %s85
      %p87 = scmp.eq.s32.totalorder %s61, 0
      %p88 = por %p86, %p87
      %s89 = ssub.s32 1, %s55
      %s90 = ssub.s32 1, %s62
      %s91 = ssub.s32 %s89, %s90
      %p92 = scmp.eq.s32.totalorder %s91, 0
      %s94 = sadd.s32 %s93, 1
      %s95 = scalar_select %p92, %s93, %s94
      %p98 = pneg %p92
      %p99 = scmp.eq.s32.totalorder %s55, 1
      %p100 = por %p98, %p99
      %p101 = scmp.ne.s32.totalorder %s93, %s96
      %p102 = scmp.eq.s32.totalorder %s55, 0
      %p103 = por %p101, %p102
      %p104 = scmp.ne.s32.totalorder %s93, %s96
      %p105 = scmp.eq.s32.totalorder %s60, 1
      %p106 = por %p104, %p105
      %p107 = scmp.ne.s32.totalorder %s96, %s97
      %p108 = scmp.eq.s32.totalorder %s60, 0
      %p109 = por %p107, %p108
      %p110 = scmp.ne.s32.totalorder %s96, %s97
      %p111 = scmp.eq.s32.totalorder %s61, 1
      %p112 = por %p110, %p111
      %p114 = scmp.ne.s32.totalorder %s97, %s113
      %p115 = scmp.eq.s32.totalorder %s61, 0
      %p116 = por %p114, %p115
      %s117 = ssub.s32 %s55, %s62
      %p118 = scmp.eq.s32.totalorder %s117, 0
      %s120 = sadd.s32 %s119, 1
      %s121 = scalar_select %p118, %s119, %s120
      %p124 = pneg %p118
      %p125 = scmp.eq.s32.totalorder %s55, 1
      %p126 = por %p124, %p125
      %p127 = scmp.ne.s32.totalorder %s119, %s122
      %p128 = scmp.eq.s32.totalorder %s55, 0
      %p129 = por %p127, %p128
      %p130 = scmp.ne.s32.totalorder %s119, %s122
      %p131 = scmp.eq.s32.totalorder %s60, 1
      %p132 = por %p130, %p131
      %p133 = scmp.ne.s32.totalorder %s122, %s123
      %p134 = scmp.eq.s32.totalorder %s60, 0
      %p135 = por %p133, %p134
      %p136 = scmp.ne.s32.totalorder %s122, %s123
      %p137 = scmp.eq.s32.totalorder %s61, 1
      %p138 = por %p136, %p137
      %p140 = scmp.ne.s32.totalorder %s123, %s139
      %p141 = scmp.eq.s32.totalorder %s61, 0
      %p142 = por %p140, %p141
      %s143 = ssub.s32 %s55, %s62
      %p144 = scmp.eq.s32.totalorder %s143, 0
      %s146 = sadd.s32 %s145, 1
      %s147 = scalar_select %p144, %s145, %s146
      %p150 = pneg %p144
      %p151 = scmp.eq.s32.totalorder %s55, 1
      %p152 = por %p150, %p151
      %p153 = scmp.ne.s32.totalorder %s145, %s148
      %p154 = scmp.eq.s32.totalorder %s55, 0
      %p155 = por %p153, %p154
      %p156 = scmp.ne.s32.totalorder %s145, %s148
      %p157 = scmp.eq.s32.totalorder %s60, 1
      %p158 = por %p156, %p157
      %p159 = scmp.ne.s32.totalorder %s148, %s149
      %p160 = scmp.eq.s32.totalorder %s60, 0
      %p161 = por %p159, %p160
      %p162 = scmp.ne.s32.totalorder %s148, %s149
      %p163 = scmp.eq.s32.totalorder %s61, 1
      %p164 = por %p162, %p163
      %p166 = scmp.ne.s32.totalorder %s149, %s165
      %p167 = scmp.eq.s32.totalorder %s61, 0
      %p168 = por %p166, %p167
      %s169 = ssub.s32 %s55, %s62
      %p170 = scmp.eq.s32.totalorder %s169, 0
      %s172 = sadd.s32 %s171, 1
      %s173 = scalar_select %p170, %s171, %s172
      %p176 = pneg %p170
      %p177 = scmp.eq.s32.totalorder %s55, 1
      %p178 = por %p176, %p177
      %p179 = scmp.ne.s32.totalorder %s171, %s174
      %p180 = scmp.eq.s32.totalorder %s55, 0
      %p181 = por %p179, %p180
      %p182 = scmp.ne.s32.totalorder %s171, %s174
      %p183 = scmp.eq.s32.totalorder %s60, 1
      %p184 = por %p182, %p183
      %p185 = scmp.ne.s32.totalorder %s174, %s175
      %p186 = scmp.eq.s32.totalorder %s60, 0
      %p187 = por %p185, %p186
      %p188 = scmp.ne.s32.totalorder %s174, %s175
      %p189 = scmp.eq.s32.totalorder %s61, 1
      %p190 = por %p188, %p189
      %p192 = scmp.ne.s32.totalorder %s175, %s191
      %p193 = scmp.eq.s32.totalorder %s61, 0
      %p194 = por %p192, %p193
      %s195 = ssub.s32 1, %s55
      %s196 = ssub.s32 1, %s62
      %s197 = ssub.s32 %s195, %s196
      %p198 = scmp.eq.s32.totalorder %s197, 0
      %s200 = sadd.s32 %s199, 1
      %s201 = scalar_select %p198, %s199, %s200
      %p204 = pneg %p198
      %p205 = scmp.eq.s32.totalorder %s55, 1
      %p206 = por %p204, %p205
      %p207 = scmp.ne.s32.totalorder %s199, %s202
      %p208 = scmp.eq.s32.totalorder %s55, 0
      %p209 = por %p207, %p208
      %p210 = scmp.ne.s32.totalorder %s199, %s202
      %p211 = scmp.eq.s32.totalorder %s60, 1
      %p212 = por %p210, %p211
      %p213 = scmp.ne.s32.totalorder %s202, %s203
      %p214 = scmp.eq.s32.totalorder %s60, 0
      %p215 = por %p213, %p214
      %p216 = scmp.ne.s32.totalorder %s202, %s203
      %p217 = scmp.eq.s32.totalorder %s61, 1
      %p218 = por %p216, %p217
      %p220 = scmp.ne.s32.totalorder %s203, %s219
      %p221 = scmp.eq.s32.totalorder %s61, 0
      %p222 = por %p220, %p221
      %s223 = ssub.s32 1, %s55
      %s224 = ssub.s32 1, %s62
      %s225 = ssub.s32 %s223, %s224
      %p226 = scmp.eq.s32.totalorder %s225, 0
      %s228 = sadd.s32 %s227, 1
      %s229 = scalar_select %p226, %s227, %s228
      %p232 = pneg %p226
      %p233 = scmp.eq.s32.totalorder %s55, 1
      %p234 = por %p232, %p233
      %p235 = scmp.ne.s32.totalorder %s227, %s230
      %p236 = scmp.eq.s32.totalorder %s55, 0
      %p237 = por %p235, %p236
      %p238 = scmp.ne.s32.totalorder %s227, %s230
      %p239 = scmp.eq.s32.totalorder %s60, 1
      %p240 = por %p238, %p239
      %p241 = scmp.ne.s32.totalorder %s230, %s231
      %p242 = scmp.eq.s32.totalorder %s60, 0
      %p243 = por %p241, %p242
      %p244 = scmp.ne.s32.totalorder %s230, %s231
      %p245 = scmp.eq.s32.totalorder %s61, 1
      %p246 = por %p244, %p245
      %p248 = scmp.ne.s32.totalorder %s231, %s247
      %p249 = scmp.eq.s32.totalorder %s61, 0
      %p250 = por %p248, %p249
      %s251 = ssub.s32 %s55, %s62
      %p252 = scmp.eq.s32.totalorder %s251, 0
      %s254 = sadd.s32 %s253, 1
      %s255 = scalar_select %p252, %s253, %s254
      %p258 = pneg %p252
      %p259 = scmp.eq.s32.totalorder %s55, 1
      %p260 = por %p258, %p259
      %p261 = scmp.ne.s32.totalorder %s253, %s256
      %p262 = scmp.eq.s32.totalorder %s55, 0
      %p263 = por %p261, %p262
      %p264 = scmp.ne.s32.totalorder %s253, %s256
      %p265 = scmp.eq.s32.totalorder %s60, 1
      %p266 = por %p264, %p265
      %p267 = scmp.ne.s32.totalorder %s256, %s257
      %p268 = scmp.eq.s32.totalorder %s60, 0
      %p269 = por %p267, %p268
      %p270 = scmp.ne.s32.totalorder %s256, %s257
      %p271 = scmp.eq.s32.totalorder %s61, 1
      %p272 = por %p270, %p271
      %p274 = scmp.ne.s32.totalorder %s257, %s273
      %p275 = scmp.eq.s32.totalorder %s61, 0
      %p276 = por %p274, %p275
      %s277 = ssub.s32 %s55, %s62
      %p278 = scmp.eq.s32.totalorder %s277, 0
      %s280 = sadd.s32 %s279, 1
      %s281 = scalar_select %p278, %s279, %s280
      %p284 = pneg %p278
      %p285 = scmp.eq.s32.totalorder %s55, 1
      %p286 = por %p284, %p285
      %p287 = scmp.ne.s32.totalorder %s279, %s282
      %p288 = scmp.eq.s32.totalorder %s55, 0
      %p289 = por %p287, %p288
      %p290 = scmp.ne.s32.totalorder %s279, %s282
      %p291 = scmp.eq.s32.totalorder %s60, 1
      %p292 = por %p290, %p291
      %p293 = scmp.ne.s32.totalorder %s282, %s283
      %p294 = scmp.eq.s32.totalorder %s60, 0
      %p295 = por %p293, %p294
      %p296 = scmp.ne.s32.totalorder %s282, %s283
      %p297 = scmp.eq.s32.totalorder %s61, 1
      %p298 = por %p296, %p297
      %p300 = scmp.ne.s32.totalorder %s283, %s299
      %p301 = scmp.eq.s32.totalorder %s61, 0
      %p302 = por %p300, %p301
      %s303 = ssub.s32 %s55, %s62
      %p304 = scmp.eq.s32.totalorder %s303, 0
      %s306 = sadd.s32 %s305, 1
      %s307 = scalar_select %p304, %s305, %s306
      %p310 = pneg %p304
      %p311 = scmp.eq.s32.totalorder %s55, 1
      %p312 = por %p310, %p311
      %p313 = scmp.ne.s32.totalorder %s305, %s308
      %p314 = scmp.eq.s32.totalorder %s55, 0
      %p315 = por %p313, %p314
      %p316 = scmp.ne.s32.totalorder %s305, %s308
      %p317 = scmp.eq.s32.totalorder %s60, 1
      %p318 = por %p316, %p317
      %p319 = scmp.ne.s32.totalorder %s308, %s309
      %p320 = scmp.eq.s32.totalorder %s60, 0
      %p321 = por %p319, %p320
      %p322 = scmp.ne.s32.totalorder %s308, %s309
      %p323 = scmp.eq.s32.totalorder %s61, 1
      %p324 = por %p322, %p323
      %p326 = scmp.ne.s32.totalorder %s309, %s325
      %p327 = scmp.eq.s32.totalorder %s61, 0
      %p328 = por %p326, %p327
      %s329 = ssub.s32 %s55, %s62
      %p330 = scmp.eq.s32.totalorder %s329, 0
      %s332 = sadd.s32 %s331, 1
      %s333 = scalar_select %p330, %s331, %s332
      %p336 = pneg %p330
      %p337 = scmp.eq.s32.totalorder %s55, 1
      %p338 = por %p336, %p337
      %p339 = scmp.ne.s32.totalorder %s331, %s334
      %p340 = scmp.eq.s32.totalorder %s55, 0
      %p341 = por %p339, %p340
      %p342 = scmp.ne.s32.totalorder %s331, %s334
      %p343 = scmp.eq.s32.totalorder %s60, 1
      %p344 = por %p342, %p343
      %p345 = scmp.ne.s32.totalorder %s334, %s335
      %p346 = scmp.eq.s32.totalorder %s60, 0
      %p347 = por %p345, %p346
      %p348 = scmp.ne.s32.totalorder %s334, %s335
      %p349 = scmp.eq.s32.totalorder %s61, 1
      %p350 = por %p348, %p349
      %p352 = scmp.ne.s32.totalorder %s335, %s351
      %p353 = scmp.eq.s32.totalorder %s61, 0
      %p354 = por %p352, %p353
      %s355 = ssub.s32 %s55, %s62
      %p356 = scmp.eq.s32.totalorder %s355, 0
      %s358 = sadd.s32 %s357, 1
      %s359 = scalar_select %p356, %s357, %s358
      %p362 = pneg %p356
      %p363 = scmp.eq.s32.totalorder %s55, 1
      %p364 = por %p362, %p363
      %p365 = scmp.ne.s32.totalorder %s357, %s360
      %p366 = scmp.eq.s32.totalorder %s55, 0
      %p367 = por %p365, %p366
      %p368 = scmp.ne.s32.totalorder %s357, %s360
      %p369 = scmp.eq.s32.totalorder %s60, 1
      %p370 = por %p368, %p369
      %p371 = scmp.ne.s32.totalorder %s360, %s361
      %p372 = scmp.eq.s32.totalorder %s60, 0
      %p373 = por %p371, %p372
      %p374 = scmp.ne.s32.totalorder %s360, %s361
      %p375 = scmp.eq.s32.totalorder %s61, 1
      %p376 = por %p374, %p375
      %p378 = scmp.ne.s32.totalorder %s361, %s377
      %p379 = scmp.eq.s32.totalorder %s61, 0
      %p380 = por %p378, %p379
      %s381 = ssub.s32 %s55, %s62
      %p382 = scmp.eq.s32.totalorder %s381, 0
      %s384 = sadd.s32 %s383, 1
      %s385 = scalar_select %p382, %s383, %s384
      %p388 = pneg %p382
      %p389 = scmp.eq.s32.totalorder %s55, 1
      %p390 = por %p388, %p389
      %p391 = scmp.ne.s32.totalorder %s383, %s386
      %p392 = scmp.eq.s32.totalorder %s55, 0
      %p393 = por %p391, %p392
      %p394 = scmp.ne.s32.totalorder %s383, %s386
      %p395 = scmp.eq.s32.totalorder %s60, 1
      %p396 = por %p394, %p395
      %p397 = scmp.ne.s32.totalorder %s386, %s387
      %p398 = scmp.eq.s32.totalorder %s60, 0
      %p399 = por %p397, %p398
      %p400 = scmp.ne.s32.totalorder %s386, %s387
      %p401 = scmp.eq.s32.totalorder %s61, 1
      %p402 = por %p400, %p401
      %p404 = scmp.ne.s32.totalorder %s387, %s403
      %p405 = scmp.eq.s32.totalorder %s61, 0
      %p406 = por %p404, %p405
      %s407 = ssub.s32 %s55, %s62
      %p408 = scmp.eq.s32.totalorder %s407, 0
      %s410 = sadd.s32 %s409, 1
      %s411 = scalar_select %p408, %s409, %s410
      %p414 = pneg %p408
      %p415 = scmp.eq.s32.totalorder %s55, 1
      %p416 = por %p414, %p415
      %p417 = scmp.ne.s32.totalorder %s409, %s412
      %p418 = scmp.eq.s32.totalorder %s55, 0
      %p419 = por %p417, %p418
      %p420 = scmp.ne.s32.totalorder %s409, %s412
      %p421 = scmp.eq.s32.totalorder %s60, 1
      %p422 = por %p420, %p421
      %p423 = scmp.ne.s32.totalorder %s412, %s413
      %p424 = scmp.eq.s32.totalorder %s60, 0
      %p425 = por %p423, %p424
      %p426 = scmp.ne.s32.totalorder %s412, %s413
      %p427 = scmp.eq.s32.totalorder %s61, 1
      %p428 = por %p426, %p427
      %p430 = scmp.ne.s32.totalorder %s413, %s429
      %p431 = scmp.eq.s32.totalorder %s61, 0
      %p432 = por %p430, %p431
      %s433 = ssub.s32 %s55, %s62
      %p434 = scmp.eq.s32.totalorder %s433, 0
      %s436 = sadd.s32 %s435, 1
      %s437 = scalar_select %p434, %s435, %s436
      %p440 = pneg %p434
      %p441 = scmp.eq.s32.totalorder %s55, 1
      %p442 = por %p440, %p441
      %p443 = scmp.ne.s32.totalorder %s435, %s438
      %p444 = scmp.eq.s32.totalorder %s55, 0
      %p445 = por %p443, %p444
      %p446 = scmp.ne.s32.totalorder %s435, %s438
      %p447 = scmp.eq.s32.totalorder %s60, 1
      %p448 = por %p446, %p447
      %p449 = scmp.ne.s32.totalorder %s438, %s439
      %p450 = scmp.eq.s32.totalorder %s60, 0
      %p451 = por %p449, %p450
      %p452 = scmp.ne.s32.totalorder %s438, %s439
      %p453 = scmp.eq.s32.totalorder %s61, 1
      %p454 = por %p452, %p453
      %p456 = scmp.ne.s32.totalorder %s439, %s455
      %p457 = scmp.eq.s32.totalorder %s61, 0
      %p458 = por %p456, %p457
      %s459 = ssub.s32 %s55, %s62
      %p460 = scmp.eq.s32.totalorder %s459, 0
      %s462 = sadd.s32 %s461, 1
      %s463 = scalar_select %p460, %s461, %s462
      %p466 = pneg %p460
      %p467 = scmp.eq.s32.totalorder %s55, 1
      %p468 = por %p466, %p467
      %p469 = scmp.ne.s32.totalorder %s461, %s464
      %p470 = scmp.eq.s32.totalorder %s55, 0
      %p471 = por %p469, %p470
      %p472 = scmp.ne.s32.totalorder %s461, %s464
      %p473 = scmp.eq.s32.totalorder %s60, 1
      %p474 = por %p472, %p473
      %p475 = scmp.ne.s32.totalorder %s464, %s465
      %p476 = scmp.eq.s32.totalorder %s60, 0
      %p477 = por %p475, %p476
      %p478 = scmp.ne.s32.totalorder %s464, %s465
      %p479 = scmp.eq.s32.totalorder %s61, 1
      %p480 = por %p478, %p479
      %p482 = scmp.ne.s32.totalorder %s465, %s481
      %p483 = scmp.eq.s32.totalorder %s61, 0
      %p484 = por %p482, %p483
      %s485 = ssub.s32 %s55, %s62
      %p486 = scmp.eq.s32.totalorder %s485, 0
      %s488 = sadd.s32 %s487, 1
      %s489 = scalar_select %p486, %s487, %s488
      %p492 = pneg %p486
      %p493 = scmp.eq.s32.totalorder %s55, 1
      %p494 = por %p492, %p493
      %p495 = scmp.ne.s32.totalorder %s487, %s490
      %p496 = scmp.eq.s32.totalorder %s55, 0
      %p497 = por %p495, %p496
      %p498 = scmp.ne.s32.totalorder %s487, %s490
      %p499 = scmp.eq.s32.totalorder %s60, 1
      %p500 = por %p498, %p499
      %p501 = scmp.ne.s32.totalorder %s490, %s491
      %p502 = scmp.eq.s32.totalorder %s60, 0
      %p503 = por %p501, %p502
      %p504 = scmp.ne.s32.totalorder %s490, %s491
      %p505 = scmp.eq.s32.totalorder %s61, 1
      %p506 = por %p504, %p505
      %p508 = scmp.ne.s32.totalorder %s491, %s507
      %p509 = scmp.eq.s32.totalorder %s61, 0
      %p510 = por %p508, %p509
      %s511 = ssub.s32 %s55, %s62
      %p512 = scmp.eq.s32.totalorder %s511, 0
      %s514 = sadd.s32 %s513, 1
      %s515 = scalar_select %p512, %s513, %s514
      %p518 = pneg %p512
      %p519 = scmp.eq.s32.totalorder %s55, 1
      %p520 = por %p518, %p519
      %p521 = scmp.ne.s32.totalorder %s513, %s516
      %p522 = scmp.eq.s32.totalorder %s55, 0
      %p523 = por %p521, %p522
      %p524 = scmp.ne.s32.totalorder %s513, %s516
      %p525 = scmp.eq.s32.totalorder %s60, 1
      %p526 = por %p524, %p525
      %p527 = scmp.ne.s32.totalorder %s516, %s517
      %p528 = scmp.eq.s32.totalorder %s60, 0
      %p529 = por %p527, %p528
      %p530 = scmp.ne.s32.totalorder %s516, %s517
      %p531 = scmp.eq.s32.totalorder %s61, 1
      %p532 = por %p530, %p531
      %p534 = scmp.ne.s32.totalorder %s517, %s533
      %p535 = scmp.eq.s32.totalorder %s61, 0
      %p536 = por %p534, %p535
      %s537 = ssub.s32 %s55, %s62
      %p538 = scmp.eq.s32.totalorder %s537, 0
      %s540 = sadd.s32 %s539, 1
      %s541 = scalar_select %p538, %s539, %s540
      %p544 = pneg %p538
      %p545 = scmp.eq.s32.totalorder %s55, 1
      %p546 = por %p544, %p545
      %p547 = scmp.ne.s32.totalorder %s539, %s542
      %p548 = scmp.eq.s32.totalorder %s55, 0
      %p549 = por %p547, %p548
      %p550 = scmp.ne.s32.totalorder %s539, %s542
      %p551 = scmp.eq.s32.totalorder %s60, 1
      %p552 = por %p550, %p551
      %p553 = scmp.ne.s32.totalorder %s542, %s543
      %p554 = scmp.eq.s32.totalorder %s60, 0
      %p555 = por %p553, %p554
      %p556 = scmp.ne.s32.totalorder %s542, %s543
      %p557 = scmp.eq.s32.totalorder %s61, 1
      %p558 = por %p556, %p557
      %p560 = scmp.ne.s32.totalorder %s543, %s559
      %p561 = scmp.eq.s32.totalorder %s61, 0
      %p562 = por %p560, %p561
      %s563 = ssub.s32 %s55, %s62
      %p564 = scmp.eq.s32.totalorder %s563, 0
      %s566 = sadd.s32 %s565, 1
      %s567 = scalar_select %p564, %s565, %s566
      %p570 = pneg %p564
      %p571 = scmp.eq.s32.totalorder %s55, 1
      %p572 = por %p570, %p571
      %p573 = scmp.ne.s32.totalorder %s565, %s568
      %p574 = scmp.eq.s32.totalorder %s55, 0
      %p575 = por %p573, %p574
      %p576 = scmp.ne.s32.totalorder %s565, %s568
      %p577 = scmp.eq.s32.totalorder %s60, 1
      %p578 = por %p576, %p577
      %p579 = scmp.ne.s32.totalorder %s568, %s569
      %p580 = scmp.eq.s32.totalorder %s60, 0
      %p581 = por %p579, %p580
      %p582 = scmp.ne.s32.totalorder %s568, %s569
      %p583 = scmp.eq.s32.totalorder %s61, 1
      %p584 = por %p582, %p583
      %p586 = scmp.ne.s32.totalorder %s569, %s585
      %p587 = scmp.eq.s32.totalorder %s61, 0
      %p588 = por %p586, %p587
      %s589 = ssub.s32 %s55, %s62
      %p590 = scmp.eq.s32.totalorder %s589, 0
      %s592 = sadd.s32 %s591, 1
      %s593 = scalar_select %p590, %s591, %s592
      %p596 = pneg %p590
      %p597 = scmp.eq.s32.totalorder %s55, 1
      %p598 = por %p596, %p597
      %p599 = scmp.ne.s32.totalorder %s591, %s594
      %p600 = scmp.eq.s32.totalorder %s55, 0
      %p601 = por %p599, %p600
      %p602 = scmp.ne.s32.totalorder %s591, %s594
      %p603 = scmp.eq.s32.totalorder %s60, 1
      %p604 = por %p602, %p603
      %p605 = scmp.ne.s32.totalorder %s594, %s595
      %p606 = scmp.eq.s32.totalorder %s60, 0
      %p607 = por %p605, %p606
      %p608 = scmp.ne.s32.totalorder %s594, %s595
      %p609 = scmp.eq.s32.totalorder %s61, 1
      %p610 = por %p608, %p609
      %p612 = scmp.ne.s32.totalorder %s595, %s611
      %p613 = scmp.eq.s32.totalorder %s61, 0
      %p614 = por %p612, %p613
      %s615 = ssub.s32 %s55, %s62
      %p616 = scmp.eq.s32.totalorder %s615, 0
      %s618 = sadd.s32 %s617, 1
      %s619 = scalar_select %p616, %s617, %s618
      %p622 = pneg %p616
      %p623 = scmp.eq.s32.totalorder %s55, 1
      %p624 = por %p622, %p623
      %p625 = scmp.ne.s32.totalorder %s617, %s620
      %p626 = scmp.eq.s32.totalorder %s55, 0
      %p627 = por %p625, %p626
      %p628 = scmp.ne.s32.totalorder %s617, %s620
      %p629 = scmp.eq.s32.totalorder %s60, 1
      %p630 = por %p628, %p629
      %p631 = scmp.ne.s32.totalorder %s620, %s621
      %p632 = scmp.eq.s32.totalorder %s60, 0
      %p633 = por %p631, %p632
      %p634 = scmp.ne.s32.totalorder %s620, %s621
      %p635 = scmp.eq.s32.totalorder %s61, 1
      %p636 = por %p634, %p635
      %p638 = scmp.ne.s32.totalorder %s621, %s637
      %p639 = scmp.eq.s32.totalorder %s61, 0
      %p640 = por %p638, %p639
      %s641 = ssub.s32 %s55, %s62
      %p642 = scmp.eq.s32.totalorder %s641, 0
      %s644 = sadd.s32 %s643, 1
      %s645 = scalar_select %p642, %s643, %s644
      %p648 = pneg %p642
      %p649 = scmp.eq.s32.totalorder %s55, 1
      %p650 = por %p648, %p649
      %p651 = scmp.ne.s32.totalorder %s643, %s646
      %p652 = scmp.eq.s32.totalorder %s55, 0
      %p653 = por %p651, %p652
      %p654 = scmp.ne.s32.totalorder %s643, %s646
      %p655 = scmp.eq.s32.totalorder %s60, 1
      %p656 = por %p654, %p655
      %p657 = scmp.ne.s32.totalorder %s646, %s647
      %p658 = scmp.eq.s32.totalorder %s60, 0
      %p659 = por %p657, %p658
      %p660 = scmp.ne.s32.totalorder %s646, %s647
      %p661 = scmp.eq.s32.totalorder %s61, 1
      %p662 = por %p660, %p661
      %p664 = scmp.ne.s32.totalorder %s647, %s663
      %p665 = scmp.eq.s32.totalorder %s61, 0
      %p666 = por %p664, %p665
      %s667 = ssub.s32 %s55, %s62
      %p668 = scmp.eq.s32.totalorder %s667, 0
      %s670 = sadd.s32 %s669, 1
      %s671 = scalar_select %p668, %s669, %s670
      %p674 = pneg %p668
      %p675 = scmp.eq.s32.totalorder %s55, 1
      %p676 = por %p674, %p675
      %p677 = scmp.ne.s32.totalorder %s669, %s672
      %p678 = scmp.eq.s32.totalorder %s55, 0
      %p679 = por %p677, %p678
      %p680 = scmp.ne.s32.totalorder %s669, %s672
      %p681 = scmp.eq.s32.totalorder %s60, 1
      %p682 = por %p680, %p681
      %p683 = scmp.ne.s32.totalorder %s672, %s673
      %p684 = scmp.eq.s32.totalorder %s60, 0
      %p685 = por %p683, %p684
      %p686 = scmp.ne.s32.totalorder %s672, %s673
      %p687 = scmp.eq.s32.totalorder %s61, 1
      %p688 = por %p686, %p687
      %p690 = scmp.ne.s32.totalorder %s673, %s689
      %p691 = scmp.eq.s32.totalorder %s61, 0
      %p692 = por %p690, %p691
      %s693 = ssub.s32 %s55, %s62
      %p694 = scmp.eq.s32.totalorder %s693, 0
      %s696 = sadd.s32 %s695, 1
      %s697 = scalar_select %p694, %s695, %s696
      %p700 = pneg %p694
      %p701 = scmp.eq.s32.totalorder %s55, 1
      %p702 = por %p700, %p701
      %p703 = scmp.ne.s32.totalorder %s695, %s698
      %p704 = scmp.eq.s32.totalorder %s55, 0
      %p705 = por %p703, %p704
      %p706 = scmp.ne.s32.totalorder %s695, %s698
      %p707 = scmp.eq.s32.totalorder %s60, 1
      %p708 = por %p706, %p707
      %p709 = scmp.ne.s32.totalorder %s698, %s699
      %p710 = scmp.eq.s32.totalorder %s60, 0
      %p711 = por %p709, %p710
      %p712 = scmp.ne.s32.totalorder %s698, %s699
      %p713 = scmp.eq.s32.totalorder %s61, 1
      %p714 = por %p712, %p713
      %p716 = scmp.ne.s32.totalorder %s699, %s715
      %p717 = scmp.eq.s32.totalorder %s61, 0
      %p718 = por %p716, %p717
      %s719 = ssub.s32 %s55, %s62
      %p720 = scmp.eq.s32.totalorder %s719, 0
      %s722 = sadd.s32 %s721, 1
      %s723 = scalar_select %p720, %s721, %s722
      %p726 = pneg %p720
      %p727 = scmp.eq.s32.totalorder %s55, 1
      %p728 = por %p726, %p727
      %p729 = scmp.ne.s32.totalorder %s721, %s724
      %p730 = scmp.eq.s32.totalorder %s55, 0
      %p731 = por %p729, %p730
      %p732 = scmp.ne.s32.totalorder %s721, %s724
      %p733 = scmp.eq.s32.totalorder %s60, 1
      %p734 = por %p732, %p733
      %p735 = scmp.ne.s32.totalorder %s724, %s725
      %p736 = scmp.eq.s32.totalorder %s60, 0
      %p737 = por %p735, %p736
      %p738 = scmp.ne.s32.totalorder %s724, %s725
      %p739 = scmp.eq.s32.totalorder %s61, 1
      %p740 = por %p738, %p739
      %p742 = scmp.ne.s32.totalorder %s725, %s741
      %p743 = scmp.eq.s32.totalorder %s61, 0
      %p744 = por %p742, %p743
      %p745 = scmp.le.s32.totalorder 1, %s55
      %p746 = scmp.lt.s32.totalorder %s55, 3
      %p747 = pnand %p745, %p746
      %p748 = pneg %p747
      // Predicated region
      $region9: #{invariance_encoder_forward.1} parent=5 // pred_check
        _
      $region10: #{invariance_encoder_forward.1} parent=5 // pred_check_branch
        %750 = sbr.rel (%p747) target = $region12
      $region11: #{invariance_encoder_forward.1} parent=5 // pred_region
        %s751 = ssub.s32 %s55, 1
      $region12: #{invariance_encoder_forward.1} parent=5 // pred_fallthru
        _
      %p752 = scmp.lt.s32.totalorder %s55, 2
      // Predicated region
      $region13: #{invariance_encoder_forward.1} parent=5 // pred_check
        %p753 = pneg %p752
      $region14: #{invariance_encoder_forward.1} parent=5 // pred_check_branch
        %755 = sbr.rel (%p753) target = $region16
      $region15: #{invariance_encoder_forward.1} parent=5 // pred_region
        // Predicated region
        $region17: #{invariance_encoder_forward.1} parent=15 // pred_check
          %p756 = pneg %p75
        $region18: #{invariance_encoder_forward.1} parent=15 // pred_check_branch
          %758 = sbr.rel (%p756) target = $region20
        $region19: #{invariance_encoder_forward.1} parent=15 // pred_region
          %p759 = scmp.lt.s32.totalorder %s55, 1
          %s760 = scalar_select %p759, %s55, 1
          %s761 = smul.addr %s760, 2
          %s762 = smul.addr %s761, 8
          %s763 = scalar_lea.vmem %s0, %s762
        $region20: #{invariance_encoder_forward.1} parent=15 // pred_fallthru
          _
        // Predicated region
        $region21: #{invariance_encoder_forward.1} parent=15 // pred_check
          %p764 = pneg %p103
        $region22: #{invariance_encoder_forward.1} parent=15 // pred_check_branch
          %766 = sbr.rel (%p764) target = $region24
        $region23: #{invariance_encoder_forward.1} parent=15 // pred_region
          %s767 = ssub.s32 1, %s55
          %p768 = scmp.lt.s32.totalorder %s767, 1
          %s769 = scalar_select %p768, %s767, 1
          %s770 = smul.addr %s769, 2
          %s771 = smul.addr %s770, 8
          %s772 = scalar_lea.vmem %s1, %s771
          %s773 = ssub.s32 1, %s55
        $region24: #{invariance_encoder_forward.1} parent=15 // pred_fallthru
          _
        // Predicated region
        $region25: #{invariance_encoder_forward.1} parent=15 // pred_check
          %p774 = pneg %p129
        $region26: #{invariance_encoder_forward.1} parent=15 // pred_check_branch
          %776 = sbr.rel (%p774) target = $region28
        $region27: #{invariance_encoder_forward.1} parent=15 // pred_region
          %p777 = scmp.lt.s32.totalorder %s55, 1
          %s778 = scalar_select %p777, %s55, 1
          %s779 = scalar_lea.vmem %s2, %s778
        $region28: #{invariance_encoder_forward.1} parent=15 // pred_fallthru
          _
        // Predicated region
        $region29: #{invariance_encoder_forward.1} parent=15 // pred_check
          %p780 = pneg %p155
        $region30: #{invariance_encoder_forward.1} parent=15 // pred_check_branch
          %782 = sbr.rel (%p780) target = $region32
        $region31: #{invariance_encoder_forward.1} parent=15 // pred_region
          %p783 = scmp.lt.s32.totalorder %s55, 1
          %s784 = scalar_select %p783, %s55, 1
          %s785 = smul.addr %s784, 16
          %s786 = smul.addr %s785, 4
          %s787 = scalar_lea.vmem %s3, %s786
        $region32: #{invariance_encoder_forward.1} parent=15 // pred_fallthru
          _
        // Predicated region
        $region33: #{invariance_encoder_forward.1} parent=15 // pred_check
          %p788 = pneg %p181
        $region34: #{invariance_encoder_forward.1} parent=15 // pred_check_branch
          %790 = sbr.rel (%p788) target = $region36
        $region35: #{invariance_encoder_forward.1} parent=15 // pred_region
          %s791 = sand.u32 %s171, 1
          %s792 = scalar_lea.sflag [#allocation4], %s791
          %s793 = sand.u32 %s171, 1
          %s794 = scalar_lea.vmem [#allocation3], %s793
          %s796 = ssub.s32 16, 16
          %797 = vsyncadd %s792, %s796
          %s798 = smul.addr %s55, 16
          %s799 = scalar_lea.hbm %s4, %s798
          %s801 = sshll.u32 %s794, 4
          %s802 = int_to_ptr.vmem [resolvable:$true] %s801
          %804 = dma.hbm_to_vmem [thread:$0]  %s799, 16, %s802, %s792
        $region36: #{invariance_encoder_forward.1} parent=15 // pred_fallthru
          _
        // Predicated region
        $region37: #{invariance_encoder_forward.1} parent=15 // pred_check
          %p805 = pneg %p209
        $region38: #{invariance_encoder_forward.1} parent=15 // pred_check_branch
          %807 = sbr.rel (%p805) target = $region40
        $region39: #{invariance_encoder_forward.1} parent=15 // pred_region
          %s808 = ssub.s32 1, %s55
          %p809 = scmp.lt.s32.totalorder %s808, 1
          %s810 = scalar_select %p809, %s808, 1
          %s811 = smul.addr %s810, 16
          %s812 = smul.addr %s811, 4
          %s813 = scalar_lea.vmem %s5, %s812
          %s814 = ssub.s32 1, %s55
        $region40: #{invariance_encoder_forward.1} parent=15 // pred_fallthru
          _
        // Predicated region
        $region41: #{invariance_encoder_forward.1} parent=15 // pred_check
          %p815 = pneg %p237
        $region42: #{invariance_encoder_forward.1} parent=15 // pred_check_branch
          %817 = sbr.rel (%p815) target = $region44
        $region43: #{invariance_encoder_forward.1} parent=15 // pred_region
          %s818 = sand.u32 %s55, 1
          %s819 = scalar_lea.sflag [#allocation6], %s818
          %s820 = sand.u32 %s227, 1
          %s821 = scalar_lea.vmem [#allocation5], %s820
          %s822 = ssub.s32 1, %s55
          %s824 = ssub.s32 16, 16
          %825 = vsyncadd %s819, %s824
          %s826 = smul.addr %s822, 16
          %s827 = scalar_lea.hbm %s6, %s826
          %s829 = sshll.u32 %s821, 4
          %s830 = int_to_ptr.vmem [resolvable:$true] %s829
          %832 = dma.hbm_to_vmem [thread:$0]  %s827, 16, %s830, %s819
        $region44: #{invariance_encoder_forward.1} parent=15 // pred_fallthru
          _
        // Predicated region
        $region45: #{invariance_encoder_forward.1} parent=15 // pred_check
          %p833 = pneg %p263
        $region46: #{invariance_encoder_forward.1} parent=15 // pred_check_branch
          %835 = sbr.rel (%p833) target = $region48
        $region47: #{invariance_encoder_forward.1} parent=15 // pred_region
          %s836 = sand.u32 %s55, 1
          %s837 = scalar_lea.sflag [#allocation6], %s836
          %s838 = sand.u32 %s253, 1
          %s839 = smul.addr %s838, 256
          %s840 = scalar_lea.vmem [#allocation7], %s839
          %s842 = ssub.s32 4096, 4096
          %843 = vsyncadd %s837, %s842
          %s844 = smul.addr %s55, 64
          %s845 = smul.addr %s844, 64
          %s846 = scalar_lea.hbm %s7, %s845
          %s847 = sshll.u32 %s840, 4
          %s848 = int_to_ptr.vmem [resolvable:$true] %s847
          %853 = dma.hbm_to_vmem [thread:$0]  %s846, 4096, %s848, %s837, 256, 256, 16
        $region48: #{invariance_encoder_forward.1} parent=15 // pred_fallthru
          _
        // Predicated region
        $region49: #{invariance_encoder_forward.1} parent=15 // pred_check
          %p854 = pneg %p289
        $region50: #{invariance_encoder_forward.1} parent=15 // pred_check_branch
          %856 = sbr.rel (%p854) target = $region52
        $region51: #{invariance_encoder_forward.1} parent=15 // pred_region
          %s857 = sand.u32 %s55, 1
          %s858 = scalar_lea.sflag [#allocation9], %s857
          %s859 = sand.u32 %s279, 1
          %s860 = smul.addr %s859, 4
          %s861 = scalar_lea.vmem [#allocation8], %s860
          %s863 = ssub.s32 64, 64
          %864 = vsyncadd %s858, %s863
          %s865 = smul.addr %s55, 4
          %s866 = smul.addr %s865, 16
          %s867 = scalar_lea.hbm %s8, %s866
          %s869 = sshll.u32 %s861, 4
          %s870 = int_to_ptr.vmem [resolvable:$true] %s869
          %872 = dma.hbm_to_vmem [thread:$0]  %s867, 64, %s870, %s858
        $region52: #{invariance_encoder_forward.1} parent=15 // pred_fallthru
          _
        // Predicated region
        $region53: #{invariance_encoder_forward.1} parent=15 // pred_check
          %p873 = pneg %p315
        $region54: #{invariance_encoder_forward.1} parent=15 // pred_check_branch
          %875 = sbr.rel (%p873) target = $region56
        $region55: #{invariance_encoder_forward.1} parent=15 // pred_region
          %s876 = sand.u32 %s55, 1
          %s877 = scalar_lea.sflag [#allocation9], %s876
          %s878 = sand.u32 %s305, 1
          %s879 = smul.addr %s878, 256
          %s880 = scalar_lea.vmem [#allocation10], %s879
          %s882 = ssub.s32 4096, 4096
          %883 = vsyncadd %s877, %s882
          %s884 = smul.addr %s55, 64
          %s885 = smul.addr %s884, 64
          %s886 = scalar_lea.hbm %s9, %s885
          %s887 = sshll.u32 %s880, 4
          %s888 = int_to_ptr.vmem [resolvable:$true] %s887
          %893 = dma.hbm_to_vmem [thread:$0]  %s886, 4096, %s888, %s877, 256, 256, 16
        $region56: #{invariance_encoder_forward.1} parent=15 // pred_fallthru
          _
        // Predicated region
        $region57: #{invariance_encoder_forward.1} parent=15 // pred_check
          %p894 = pneg %p341
        $region58: #{invariance_encoder_forward.1} parent=15 // pred_check_branch
          %896 = sbr.rel (%p894) target = $region60
        $region59: #{invariance_encoder_forward.1} parent=15 // pred_region
          %s897 = sand.u32 %s55, 1
          %s898 = scalar_lea.sflag [#allocation12], %s897
          %s899 = sand.u32 %s331, 1
          %s900 = smul.addr %s899, 4
          %s901 = scalar_lea.vmem [#allocation11], %s900
          %s903 = ssub.s32 64, 64
          %904 = vsyncadd %s898, %s903
          %s905 = smul.addr %s55, 4
          %s906 = smul.addr %s905, 16
          %s907 = scalar_lea.hbm %s10, %s906
          %s909 = sshll.u32 %s901, 4
          %s910 = int_to_ptr.vmem [resolvable:$true] %s909
          %912 = dma.hbm_to_vmem [thread:$0]  %s907, 64, %s910, %s898
        $region60: #{invariance_encoder_forward.1} parent=15 // pred_fallthru
          _
        // Predicated region
        $region61: #{invariance_encoder_forward.1} parent=15 // pred_check
          %p913 = pneg %p367
        $region62: #{invariance_encoder_forward.1} parent=15 // pred_check_branch
          %915 = sbr.rel (%p913) target = $region64
        $region63: #{invariance_encoder_forward.1} parent=15 // pred_region
          %s916 = sand.u32 %s55, 1
          %s917 = scalar_lea.sflag [#allocation12], %s916
          %s918 = sand.u32 %s357, 1
          %s919 = smul.addr %s918, 256
          %s920 = scalar_lea.vmem [#allocation13], %s919
          %s922 = ssub.s32 4096, 4096
          %923 = vsyncadd %s917, %s922
          %s924 = smul.addr %s55, 64
          %s925 = smul.addr %s924, 64
          %s926 = scalar_lea.hbm %s11, %s925
          %s927 = sshll.u32 %s920, 4
          %s928 = int_to_ptr.vmem [resolvable:$true] %s927
          %933 = dma.hbm_to_vmem [thread:$0]  %s926, 4096, %s928, %s917, 256, 256, 16
        $region64: #{invariance_encoder_forward.1} parent=15 // pred_fallthru
          _
        // Predicated region
        $region65: #{invariance_encoder_forward.1} parent=15 // pred_check
          %p934 = pneg %p393
        $region66: #{invariance_encoder_forward.1} parent=15 // pred_check_branch
          %936 = sbr.rel (%p934) target = $region68
        $region67: #{invariance_encoder_forward.1} parent=15 // pred_region
          %s937 = sand.u32 %s55, 1
          %s938 = scalar_lea.sflag [#allocation15], %s937
          %s939 = sand.u32 %s383, 1
          %s940 = smul.addr %s939, 4
          %s941 = scalar_lea.vmem [#allocation14], %s940
          %s943 = ssub.s32 64, 64
          %944 = vsyncadd %s938, %s943
          %s945 = smul.addr %s55, 4
          %s946 = smul.addr %s945, 16
          %s947 = scalar_lea.hbm %s12, %s946
          %s949 = sshll.u32 %s941, 4
          %s950 = int_to_ptr.vmem [resolvable:$true] %s949
          %952 = dma.hbm_to_vmem [thread:$0]  %s947, 64, %s950, %s938
        $region68: #{invariance_encoder_forward.1} parent=15 // pred_fallthru
          _
        // Predicated region
        $region69: #{invariance_encoder_forward.1} parent=15 // pred_check
          %p953 = pneg %p419
        $region70: #{invariance_encoder_forward.1} parent=15 // pred_check_branch
          %955 = sbr.rel (%p953) target = $region72
        $region71: #{invariance_encoder_forward.1} parent=15 // pred_region
          %s956 = sand.u32 %s55, 1
          %s957 = scalar_lea.sflag [#allocation15], %s956
          %s958 = sand.u32 %s409, 1
          %s959 = smul.addr %s958, 256
          %s960 = scalar_lea.vmem [#allocation16], %s959
          %s962 = ssub.s32 4096, 4096
          %963 = vsyncadd %s957, %s962
          %s964 = smul.addr %s55, 64
          %s965 = smul.addr %s964, 64
          %s966 = scalar_lea.hbm %s13, %s965
          %s967 = sshll.u32 %s960, 4
          %s968 = int_to_ptr.vmem [resolvable:$true] %s967
          %973 = dma.hbm_to_vmem [thread:$0]  %s966, 4096, %s968, %s957, 64, 64, 4
        $region72: #{invariance_encoder_forward.1} parent=15 // pred_fallthru
          _
        // Predicated region
        $region73: #{invariance_encoder_forward.1} parent=15 // pred_check
          %p974 = pneg %p445
        $region74: #{invariance_encoder_forward.1} parent=15 // pred_check_branch
          %976 = sbr.rel (%p974) target = $region76
        $region75: #{invariance_encoder_forward.1} parent=15 // pred_region
          %s977 = sand.u32 %s55, 1
          %s978 = scalar_lea.sflag [#allocation18], %s977
          %s979 = sand.u32 %s435, 1
          %s980 = scalar_lea.vmem [#allocation17], %s979
          %s982 = ssub.s32 16, 16
          %983 = vsyncadd %s978, %s982
          %s984 = smul.addr %s55, 16
          %s985 = scalar_lea.hbm %s14, %s984
          %s987 = sshll.u32 %s980, 4
          %s988 = int_to_ptr.vmem [resolvable:$true] %s987
          %990 = dma.hbm_to_vmem [thread:$0]  %s985, 16, %s988, %s978
        $region76: #{invariance_encoder_forward.1} parent=15 // pred_fallthru
          _
        // Predicated region
        $region77: #{invariance_encoder_forward.1} parent=15 // pred_check
          %p991 = pneg %p471
        $region78: #{invariance_encoder_forward.1} parent=15 // pred_check_branch
          %993 = sbr.rel (%p991) target = $region80
        $region79: #{invariance_encoder_forward.1} parent=15 // pred_region
          %p994 = scmp.lt.s32.totalorder %s55, 1
          %s995 = scalar_select %p994, %s55, 1
          %s996 = scalar_lea.vmem %s15, %s995
        $region80: #{invariance_encoder_forward.1} parent=15 // pred_fallthru
          _
        // Predicated region
        $region81: #{invariance_encoder_forward.1} parent=15 // pred_check
          %p997 = pneg %p497
        $region82: #{invariance_encoder_forward.1} parent=15 // pred_check_branch
          %999 = sbr.rel (%p997) target = $region84
        $region83: #{invariance_encoder_forward.1} parent=15 // pred_region
          %s1000 = sand.u32 %s55, 1
          %s1001 = scalar_lea.sflag [#allocation18], %s1000
          %s1002 = sand.u32 %s487, 1
          %s1003 = scalar_lea.vmem [#allocation19], %s1002
          %s1005 = ssub.s32 16, 16
          %1006 = vsyncadd %s1001, %s1005
          %s1007 = smul.addr %s55, 16
          %s1008 = scalar_lea.hbm %s16, %s1007
          %s1010 = sshll.u32 %s1003, 4
          %s1011 = int_to_ptr.vmem [resolvable:$true] %s1010
          %1013 = dma.hbm_to_vmem [thread:$0]  %s1008, 16, %s1011, %s1001
        $region84: #{invariance_encoder_forward.1} parent=15 // pred_fallthru
          _
        // Predicated region
        $region85: #{invariance_encoder_forward.1} parent=15 // pred_check
          %p1014 = pneg %p523
        $region86: #{invariance_encoder_forward.1} parent=15 // pred_check_branch
          %1016 = sbr.rel (%p1014) target = $region88
        $region87: #{invariance_encoder_forward.1} parent=15 // pred_region
          %p1017 = scmp.lt.s32.totalorder %s55, 1
          %s1018 = scalar_select %p1017, %s55, 1
          %s1019 = smul.addr %s1018, 16
          %s1020 = smul.addr %s1019, 4
          %s1021 = scalar_lea.vmem %s17, %s1020
        $region88: #{invariance_encoder_forward.1} parent=15 // pred_fallthru
          _
        // Predicated region
        $region89: #{invariance_encoder_forward.1} parent=15 // pred_check
          %p1022 = pneg %p549
        $region90: #{invariance_encoder_forward.1} parent=15 // pred_check_branch
          %1024 = sbr.rel (%p1022) target = $region92
        $region91: #{invariance_encoder_forward.1} parent=15 // pred_region
          %s1025 = sand.u32 %s55, 1
          %s1026 = scalar_lea.sflag [#allocation21], %s1025
          %s1027 = sand.u32 %s539, 1
          %s1028 = scalar_lea.vmem [#allocation20], %s1027
          %s1030 = ssub.s32 16, 16
          %1031 = vsyncadd %s1026, %s1030
          %s1032 = smul.addr %s55, 16
          %s1033 = scalar_lea.hbm %s18, %s1032
          %s1035 = sshll.u32 %s1028, 4
          %s1036 = int_to_ptr.vmem [resolvable:$true] %s1035
          %1038 = dma.hbm_to_vmem [thread:$0]  %s1033, 16, %s1036, %s1026
        $region92: #{invariance_encoder_forward.1} parent=15 // pred_fallthru
          _
        // Predicated region
        $region93: #{invariance_encoder_forward.1} parent=15 // pred_check
          %p1039 = pneg %p575
        $region94: #{invariance_encoder_forward.1} parent=15 // pred_check_branch
          %1041 = sbr.rel (%p1039) target = $region96
        $region95: #{invariance_encoder_forward.1} parent=15 // pred_region
          %p1042 = scmp.lt.s32.totalorder %s55, 1
          %s1043 = scalar_select %p1042, %s55, 1
          %s1044 = smul.addr %s1043, 16
          %s1045 = smul.addr %s1044, 4
          %s1046 = scalar_lea.vmem %s19, %s1045
        $region96: #{invariance_encoder_forward.1} parent=15 // pred_fallthru
          _
        // Predicated region
        $region97: #{invariance_encoder_forward.1} parent=15 // pred_check
          %p1047 = pneg %p601
        $region98: #{invariance_encoder_forward.1} parent=15 // pred_check_branch
          %1049 = sbr.rel (%p1047) target = $region100
        $region99: #{invariance_encoder_forward.1} parent=15 // pred_region
          %s1050 = sand.u32 %s55, 1
          %s1051 = scalar_lea.sflag [#allocation21], %s1050
          %s1052 = sand.u32 %s591, 1
          %s1053 = scalar_lea.vmem [#allocation22], %s1052
          %s1055 = ssub.s32 16, 16
          %1056 = vsyncadd %s1051, %s1055
          %s1057 = smul.addr %s55, 16
          %s1058 = scalar_lea.hbm %s20, %s1057
          %s1060 = sshll.u32 %s1053, 4
          %s1061 = int_to_ptr.vmem [resolvable:$true] %s1060
          %1063 = dma.hbm_to_vmem [thread:$0]  %s1058, 16, %s1061, %s1051
        $region100: #{invariance_encoder_forward.1} parent=15 // pred_fallthru
          _
        // Predicated region
        $region101: #{invariance_encoder_forward.1} parent=15 // pred_check
          %p1064 = pneg %p627
        $region102: #{invariance_encoder_forward.1} parent=15 // pred_check_branch
          %1066 = sbr.rel (%p1064) target = $region104
        $region103: #{invariance_encoder_forward.1} parent=15 // pred_region
          %s1067 = sand.u32 %s55, 1
          %s1068 = scalar_lea.sflag [#allocation24], %s1067
          %s1069 = sand.u32 %s617, 1
          %s1070 = scalar_lea.vmem [#allocation23], %s1069
          %s1072 = ssub.s32 16, 16
          %1073 = vsyncadd %s1068, %s1072
          %s1074 = smul.addr %s55, 16
          %s1075 = scalar_lea.hbm %s21, %s1074
          %s1077 = sshll.u32 %s1070, 4
          %s1078 = int_to_ptr.vmem [resolvable:$true] %s1077
          %1080 = dma.hbm_to_vmem [thread:$0]  %s1075, 16, %s1078, %s1068
        $region104: #{invariance_encoder_forward.1} parent=15 // pred_fallthru
          _
        // Predicated region
        $region105: #{invariance_encoder_forward.1} parent=15 // pred_check
          %p1081 = pneg %p653
        $region106: #{invariance_encoder_forward.1} parent=15 // pred_check_branch
          %1083 = sbr.rel (%p1081) target = $region108
        $region107: #{invariance_encoder_forward.1} parent=15 // pred_region
          %s1084 = sand.u32 %s55, 1
          %s1085 = scalar_lea.sflag [#allocation24], %s1084
          %s1086 = sand.u32 %s643, 1
          %s1087 = scalar_lea.vmem [#allocation25], %s1086
          %s1089 = ssub.s32 16, 16
          %1090 = vsyncadd %s1085, %s1089
          %s1091 = smul.addr %s55, 16
          %s1092 = scalar_lea.hbm %s22, %s1091
          %s1094 = sshll.u32 %s1087, 4
          %s1095 = int_to_ptr.vmem [resolvable:$true] %s1094
          %1097 = dma.hbm_to_vmem [thread:$0]  %s1092, 16, %s1095, %s1085
        $region108: #{invariance_encoder_forward.1} parent=15 // pred_fallthru
          _
        // Predicated region
        $region109: #{invariance_encoder_forward.1} parent=15 // pred_check
          %p1098 = pneg %p679
        $region110: #{invariance_encoder_forward.1} parent=15 // pred_check_branch
          %1100 = sbr.rel (%p1098) target = $region112
        $region111: #{invariance_encoder_forward.1} parent=15 // pred_region
          %p1101 = scmp.lt.s32.totalorder %s55, 1
          %s1102 = scalar_select %p1101, %s55, 1
          %s1103 = smul.addr %s1102, 16
          %s1104 = smul.addr %s1103, 4
          %s1105 = scalar_lea.vmem %s23, %s1104
        $region112: #{invariance_encoder_forward.1} parent=15 // pred_fallthru
          _
        // Predicated region
        $region113: #{invariance_encoder_forward.1} parent=15 // pred_check
          %p1106 = pneg %p705
        $region114: #{invariance_encoder_forward.1} parent=15 // pred_check_branch
          %1108 = sbr.rel (%p1106) target = $region116
        $region115: #{invariance_encoder_forward.1} parent=15 // pred_region
          %p1109 = scmp.lt.s32.totalorder %s55, 1
          %s1110 = scalar_select %p1109, %s55, 1
          %s1111 = scalar_lea.vmem %s24, %s1110
        $region116: #{invariance_encoder_forward.1} parent=15 // pred_fallthru
          _
      $region16: #{invariance_encoder_forward.1} parent=5 // pred_fallthru
        _
      %p1112 = scmp.le.s32.totalorder 1, %s55
      %p1113 = scmp.lt.s32.totalorder %s55, 3
      %p1114 = pnand %p1112, %p1113
      %p1115 = pneg %p1114
      // Predicated region
      $region117: #{invariance_encoder_forward.1} parent=5 // pred_check
        _
      $region118: #{invariance_encoder_forward.1} parent=5 // pred_check_branch
        %1117 = sbr.rel (%p1114) target = $region120
      $region119: #{invariance_encoder_forward.1} parent=5 // pred_region
        %s1118 = ssub.s32 %s55, 1
        %s1119 = sand.u32 %s174, 1
        %s1120 = scalar_lea.sflag [#allocation4], %s1119
        %s1121 = sand.u32 %s174, 1
        %s1122 = scalar_lea.vmem [#allocation3], %s1121
        // Predicated region
        $region121: #{invariance_encoder_forward.1} parent=119 // pred_check
          %p1123 = pneg %p187
        $region122: #{invariance_encoder_forward.1} parent=119 // pred_check_branch
          %1125 = sbr.rel (%p1123) target = $region124
        $region123: #{invariance_encoder_forward.1} parent=119 // pred_region
          %1126 = dma.done %s1120, 16
        $region124: #{invariance_encoder_forward.1} parent=119 // pred_fallthru
          _
        %s1127 = sand.u32 %s60, 1
        %s1128 = scalar_lea.sflag [#allocation6], %s1127
        %s1129 = sand.u32 %s230, 1
        %s1130 = scalar_lea.vmem [#allocation5], %s1129
        // Predicated region
        $region125: #{invariance_encoder_forward.1} parent=119 // pred_check
          %p1131 = pneg %p243
        $region126: #{invariance_encoder_forward.1} parent=119 // pred_check_branch
          %1133 = sbr.rel (%p1131) target = $region128
        $region127: #{invariance_encoder_forward.1} parent=119 // pred_region
          %1134 = dma.done %s1128, 16
        $region128: #{invariance_encoder_forward.1} parent=119 // pred_fallthru
          _
        %s1135 = sand.u32 %s60, 1
        %s1136 = scalar_lea.sflag [#allocation6], %s1135
        %s1137 = sand.u32 %s256, 1
        %s1138 = smul.addr %s1137, 256
        %s1139 = scalar_lea.vmem [#allocation7], %s1138
        // Predicated region
        $region129: #{invariance_encoder_forward.1} parent=119 // pred_check
          %p1140 = pneg %p269
        $region130: #{invariance_encoder_forward.1} parent=119 // pred_check_branch
          %1142 = sbr.rel (%p1140) target = $region132
        $region131: #{invariance_encoder_forward.1} parent=119 // pred_region
          %1143 = dma.done %s1136, 4096
        $region132: #{invariance_encoder_forward.1} parent=119 // pred_fallthru
          _
        %s1144 = sand.u32 %s60, 1
        %s1145 = scalar_lea.sflag [#allocation9], %s1144
        %s1146 = sand.u32 %s282, 1
        %s1147 = smul.addr %s1146, 4
        %s1148 = scalar_lea.vmem [#allocation8], %s1147
        // Predicated region
        $region133: #{invariance_encoder_forward.1} parent=119 // pred_check
          %p1149 = pneg %p295
        $region134: #{invariance_encoder_forward.1} parent=119 // pred_check_branch
          %1151 = sbr.rel (%p1149) target = $region136
        $region135: #{invariance_encoder_forward.1} parent=119 // pred_region
          %1152 = dma.done %s1145, 64
        $region136: #{invariance_encoder_forward.1} parent=119 // pred_fallthru
          _
        %s1153 = sand.u32 %s60, 1
        %s1154 = scalar_lea.sflag [#allocation9], %s1153
        %s1155 = sand.u32 %s308, 1
        %s1156 = smul.addr %s1155, 256
        %s1157 = scalar_lea.vmem [#allocation10], %s1156
        // Predicated region
        $region137: #{invariance_encoder_forward.1} parent=119 // pred_check
          %p1158 = pneg %p321
        $region138: #{invariance_encoder_forward.1} parent=119 // pred_check_branch
          %1160 = sbr.rel (%p1158) target = $region140
        $region139: #{invariance_encoder_forward.1} parent=119 // pred_region
          %1161 = dma.done %s1154, 4096
        $region140: #{invariance_encoder_forward.1} parent=119 // pred_fallthru
          _
        %s1162 = sand.u32 %s60, 1
        %s1163 = scalar_lea.sflag [#allocation12], %s1162
        %s1164 = sand.u32 %s334, 1
        %s1165 = smul.addr %s1164, 4
        %s1166 = scalar_lea.vmem [#allocation11], %s1165
        // Predicated region
        $region141: #{invariance_encoder_forward.1} parent=119 // pred_check
          %p1167 = pneg %p347
        $region142: #{invariance_encoder_forward.1} parent=119 // pred_check_branch
          %1169 = sbr.rel (%p1167) target = $region144
        $region143: #{invariance_encoder_forward.1} parent=119 // pred_region
          %1170 = dma.done %s1163, 64
        $region144: #{invariance_encoder_forward.1} parent=119 // pred_fallthru
          _
        %s1171 = sand.u32 %s60, 1
        %s1172 = scalar_lea.sflag [#allocation12], %s1171
        %s1173 = sand.u32 %s360, 1
        %s1174 = smul.addr %s1173, 256
        %s1175 = scalar_lea.vmem [#allocation13], %s1174
        // Predicated region
        $region145: #{invariance_encoder_forward.1} parent=119 // pred_check
          %p1176 = pneg %p373
        $region146: #{invariance_encoder_forward.1} parent=119 // pred_check_branch
          %1178 = sbr.rel (%p1176) target = $region148
        $region147: #{invariance_encoder_forward.1} parent=119 // pred_region
          %1179 = dma.done %s1172, 4096
        $region148: #{invariance_encoder_forward.1} parent=119 // pred_fallthru
          _
        %s1180 = sand.u32 %s60, 1
        %s1181 = scalar_lea.sflag [#allocation15], %s1180
        %s1182 = sand.u32 %s386, 1
        %s1183 = smul.addr %s1182, 4
        %s1184 = scalar_lea.vmem [#allocation14], %s1183
        // Predicated region
        $region149: #{invariance_encoder_forward.1} parent=119 // pred_check
          %p1185 = pneg %p399
        $region150: #{invariance_encoder_forward.1} parent=119 // pred_check_branch
          %1187 = sbr.rel (%p1185) target = $region152
        $region151: #{invariance_encoder_forward.1} parent=119 // pred_region
          %1188 = dma.done %s1181, 64
        $region152: #{invariance_encoder_forward.1} parent=119 // pred_fallthru
          _
        %s1189 = sand.u32 %s60, 1
        %s1190 = scalar_lea.sflag [#allocation15], %s1189
        %s1191 = sand.u32 %s412, 1
        %s1192 = smul.addr %s1191, 256
        %s1193 = scalar_lea.vmem [#allocation16], %s1192
        // Predicated region
        $region153: #{invariance_encoder_forward.1} parent=119 // pred_check
          %p1194 = pneg %p425
        $region154: #{invariance_encoder_forward.1} parent=119 // pred_check_branch
          %1196 = sbr.rel (%p1194) target = $region156
        $region155: #{invariance_encoder_forward.1} parent=119 // pred_region
          %1197 = dma.done %s1190, 4096
        $region156: #{invariance_encoder_forward.1} parent=119 // pred_fallthru
          _
        %s1198 = sand.u32 %s60, 1
        %s1199 = scalar_lea.sflag [#allocation18], %s1198
        %s1200 = sand.u32 %s438, 1
        %s1201 = scalar_lea.vmem [#allocation17], %s1200
        // Predicated region
        $region157: #{invariance_encoder_forward.1} parent=119 // pred_check
          %p1202 = pneg %p451
        $region158: #{invariance_encoder_forward.1} parent=119 // pred_check_branch
          %1204 = sbr.rel (%p1202) target = $region160
        $region159: #{invariance_encoder_forward.1} parent=119 // pred_region
          %1205 = dma.done %s1199, 16
        $region160: #{invariance_encoder_forward.1} parent=119 // pred_fallthru
          _
        %s1206 = sand.u32 %s60, 1
        %s1207 = scalar_lea.sflag [#allocation18], %s1206
        %s1208 = sand.u32 %s490, 1
        %s1209 = scalar_lea.vmem [#allocation19], %s1208
        // Predicated region
        $region161: #{invariance_encoder_forward.1} parent=119 // pred_check
          %p1210 = pneg %p503
        $region162: #{invariance_encoder_forward.1} parent=119 // pred_check_branch
          %1212 = sbr.rel (%p1210) target = $region164
        $region163: #{invariance_encoder_forward.1} parent=119 // pred_region
          %1213 = dma.done %s1207, 16
        $region164: #{invariance_encoder_forward.1} parent=119 // pred_fallthru
          _
        %s1214 = sand.u32 %s60, 1
        %s1215 = scalar_lea.sflag [#allocation21], %s1214
        %s1216 = sand.u32 %s542, 1
        %s1217 = scalar_lea.vmem [#allocation20], %s1216
        // Predicated region
        $region165: #{invariance_encoder_forward.1} parent=119 // pred_check
          %p1218 = pneg %p555
        $region166: #{invariance_encoder_forward.1} parent=119 // pred_check_branch
          %1220 = sbr.rel (%p1218) target = $region168
        $region167: #{invariance_encoder_forward.1} parent=119 // pred_region
          %1221 = dma.done %s1215, 16
        $region168: #{invariance_encoder_forward.1} parent=119 // pred_fallthru
          _
        %s1222 = sand.u32 %s60, 1
        %s1223 = scalar_lea.sflag [#allocation21], %s1222
        %s1224 = sand.u32 %s594, 1
        %s1225 = scalar_lea.vmem [#allocation22], %s1224
        // Predicated region
        $region169: #{invariance_encoder_forward.1} parent=119 // pred_check
          %p1226 = pneg %p607
        $region170: #{invariance_encoder_forward.1} parent=119 // pred_check_branch
          %1228 = sbr.rel (%p1226) target = $region172
        $region171: #{invariance_encoder_forward.1} parent=119 // pred_region
          %1229 = dma.done %s1223, 16
        $region172: #{invariance_encoder_forward.1} parent=119 // pred_fallthru
          _
        %s1230 = sand.u32 %s60, 1
        %s1231 = scalar_lea.sflag [#allocation24], %s1230
        %s1232 = sand.u32 %s620, 1
        %s1233 = scalar_lea.vmem [#allocation23], %s1232
        // Predicated region
        $region173: #{invariance_encoder_forward.1} parent=119 // pred_check
          %p1234 = pneg %p633
        $region174: #{invariance_encoder_forward.1} parent=119 // pred_check_branch
          %1236 = sbr.rel (%p1234) target = $region176
        $region175: #{invariance_encoder_forward.1} parent=119 // pred_region
          %1237 = dma.done %s1231, 16
        $region176: #{invariance_encoder_forward.1} parent=119 // pred_fallthru
          _
        %s1238 = sand.u32 %s60, 1
        %s1239 = scalar_lea.sflag [#allocation24], %s1238
        %s1240 = sand.u32 %s646, 1
        %s1241 = scalar_lea.vmem [#allocation25], %s1240
        // Predicated region
        $region177: #{invariance_encoder_forward.1} parent=119 // pred_check
          %p1242 = pneg %p659
        $region178: #{invariance_encoder_forward.1} parent=119 // pred_check_branch
          %1244 = sbr.rel (%p1242) target = $region180
        $region179: #{invariance_encoder_forward.1} parent=119 // pred_region
          %1245 = dma.done %s1239, 16
        $region180: #{invariance_encoder_forward.1} parent=119 // pred_fallthru
          _
        %p1246 = scmp.lt.s32.totalorder %s60, 1
        %s1247 = scalar_select %p1246, %s60, 1
        %s1248 = smul.addr %s1247, 2
        %s1249 = smul.addr %s1248, 8
        %s1250 = scalar_lea.vmem %s0, %s1249
        %p1251 = pneg %p81
        %p1252 = pneg %p78
        %s1253 = ssub.s32 1, %s60
        %p1254 = scmp.lt.s32.totalorder %s1253, 1
        %s1255 = scalar_select %p1254, %s1253, 1
        %s1256 = smul.addr %s1255, 2
        %s1257 = smul.addr %s1256, 8
        %s1258 = scalar_lea.vmem %s1, %s1257
        %p1259 = pneg %p109
        %p1260 = pneg %p106
        %p1261 = scmp.lt.s32.totalorder %s60, 1
        %s1262 = scalar_select %p1261, %s60, 1
        %s1263 = scalar_lea.vmem %s2, %s1262
        %p1264 = pneg %p135
        %p1265 = pneg %p132
        %p1266 = scmp.lt.s32.totalorder %s60, 1
        %s1267 = scalar_select %p1266, %s60, 1
        %s1268 = smul.addr %s1267, 16
        %s1269 = smul.addr %s1268, 4
        %s1270 = scalar_lea.vmem %s3, %s1269
        %p1271 = pneg %p161
        %p1272 = pneg %p158
        %s1273 = sand.u32 %s174, 1
        %s1274 = scalar_lea.sflag [#allocation4], %s1273
        %s1275 = sand.u32 %s174, 1
        %s1276 = scalar_lea.vmem [#allocation3], %s1275
        %p1277 = pneg %p187
        %p1278 = pneg %p184
        %s1279 = ssub.s32 1, %s60
        %p1280 = scmp.lt.s32.totalorder %s1279, 1
        %s1281 = scalar_select %p1280, %s1279, 1
        %s1282 = smul.addr %s1281, 16
        %s1283 = smul.addr %s1282, 4
        %s1284 = scalar_lea.vmem %s5, %s1283
        %p1285 = pneg %p215
        %p1286 = pneg %p212
        %s1287 = sand.u32 %s60, 1
        %s1288 = scalar_lea.sflag [#allocation6], %s1287
        %s1289 = sand.u32 %s230, 1
        %s1290 = scalar_lea.vmem [#allocation5], %s1289
        %p1291 = pneg %p243
        %p1292 = pneg %p240
        %s1293 = sand.u32 %s60, 1
        %s1294 = scalar_lea.sflag [#allocation6], %s1293
        %s1295 = sand.u32 %s256, 1
        %s1296 = smul.addr %s1295, 256
        %s1297 = scalar_lea.vmem [#allocation7], %s1296
        %p1298 = pneg %p269
        %p1299 = pneg %p266
        %s1300 = sand.u32 %s60, 1
        %s1301 = scalar_lea.sflag [#allocation9], %s1300
        %s1302 = sand.u32 %s282, 1
        %s1303 = smul.addr %s1302, 4
        %s1304 = scalar_lea.vmem [#allocation8], %s1303
        %p1305 = pneg %p295
        %p1306 = pneg %p292
        %s1307 = sand.u32 %s60, 1
        %s1308 = scalar_lea.sflag [#allocation9], %s1307
        %s1309 = sand.u32 %s308, 1
        %s1310 = smul.addr %s1309, 256
        %s1311 = scalar_lea.vmem [#allocation10], %s1310
        %p1312 = pneg %p321
        %p1313 = pneg %p318
        %s1314 = sand.u32 %s60, 1
        %s1315 = scalar_lea.sflag [#allocation12], %s1314
        %s1316 = sand.u32 %s334, 1
        %s1317 = smul.addr %s1316, 4
        %s1318 = scalar_lea.vmem [#allocation11], %s1317
        %p1319 = pneg %p347
        %p1320 = pneg %p344
        %s1321 = sand.u32 %s60, 1
        %s1322 = scalar_lea.sflag [#allocation12], %s1321
        %s1323 = sand.u32 %s360, 1
        %s1324 = smul.addr %s1323, 256
        %s1325 = scalar_lea.vmem [#allocation13], %s1324
        %p1326 = pneg %p373
        %p1327 = pneg %p370
        %s1328 = sand.u32 %s60, 1
        %s1329 = scalar_lea.sflag [#allocation15], %s1328
        %s1330 = sand.u32 %s386, 1
        %s1331 = smul.addr %s1330, 4
        %s1332 = scalar_lea.vmem [#allocation14], %s1331
        %p1333 = pneg %p399
        %p1334 = pneg %p396
        %s1335 = sand.u32 %s60, 1
        %s1336 = scalar_lea.sflag [#allocation15], %s1335
        %s1337 = sand.u32 %s412, 1
        %s1338 = smul.addr %s1337, 256
        %s1339 = scalar_lea.vmem [#allocation16], %s1338
        %p1340 = pneg %p425
        %p1341 = pneg %p422
        %s1342 = sand.u32 %s60, 1
        %s1343 = scalar_lea.sflag [#allocation18], %s1342
        %s1344 = sand.u32 %s438, 1
        %s1345 = scalar_lea.vmem [#allocation17], %s1344
        %p1346 = pneg %p451
        %p1347 = pneg %p448
        %p1348 = scmp.lt.s32.totalorder %s60, 1
        %s1349 = scalar_select %p1348, %s60, 1
        %s1350 = scalar_lea.vmem %s15, %s1349
        %p1351 = pneg %p477
        %p1352 = pneg %p474
        %s1353 = sand.u32 %s60, 1
        %s1354 = scalar_lea.sflag [#allocation18], %s1353
        %s1355 = sand.u32 %s490, 1
        %s1356 = scalar_lea.vmem [#allocation19], %s1355
        %p1357 = pneg %p503
        %p1358 = pneg %p500
        %p1359 = scmp.lt.s32.totalorder %s60, 1
        %s1360 = scalar_select %p1359, %s60, 1
        %s1361 = smul.addr %s1360, 16
        %s1362 = smul.addr %s1361, 4
        %s1363 = scalar_lea.vmem %s17, %s1362
        %p1364 = pneg %p529
        %p1365 = pneg %p526
        %s1366 = sand.u32 %s60, 1
        %s1367 = scalar_lea.sflag [#allocation21], %s1366
        %s1368 = sand.u32 %s542, 1
        %s1369 = scalar_lea.vmem [#allocation20], %s1368
        %p1370 = pneg %p555
        %p1371 = pneg %p552
        %p1372 = scmp.lt.s32.totalorder %s60, 1
        %s1373 = scalar_select %p1372, %s60, 1
        %s1374 = smul.addr %s1373, 16
        %s1375 = smul.addr %s1374, 4
        %s1376 = scalar_lea.vmem %s19, %s1375
        %p1377 = pneg %p581
        %p1378 = pneg %p578
        %s1379 = sand.u32 %s60, 1
        %s1380 = scalar_lea.sflag [#allocation21], %s1379
        %s1381 = sand.u32 %s594, 1
        %s1382 = scalar_lea.vmem [#allocation22], %s1381
        %p1383 = pneg %p607
        %p1384 = pneg %p604
        %s1385 = sand.u32 %s60, 1
        %s1386 = scalar_lea.sflag [#allocation24], %s1385
        %s1387 = sand.u32 %s620, 1
        %s1388 = scalar_lea.vmem [#allocation23], %s1387
        %p1389 = pneg %p633
        %p1390 = pneg %p630
        %s1391 = sand.u32 %s60, 1
        %s1392 = scalar_lea.sflag [#allocation24], %s1391
        %s1393 = sand.u32 %s646, 1
        %s1394 = scalar_lea.vmem [#allocation25], %s1393
        %p1395 = pneg %p659
        %p1396 = pneg %p656
        %p1397 = scmp.lt.s32.totalorder %s60, 1
        %s1398 = scalar_select %p1397, %s60, 1
        %s1399 = smul.addr %s1398, 16
        %s1400 = smul.addr %s1399, 4
        %s1401 = scalar_lea.vmem %s23, %s1400
        %p1402 = pneg %p685
        %p1403 = pneg %p682
        %p1404 = scmp.lt.s32.totalorder %s60, 1
        %s1405 = scalar_select %p1404, %s60, 1
        %s1406 = scalar_lea.vmem %s24, %s1405
        %p1407 = pneg %p711
        %p1408 = pneg %p708
        %p1409 = pneg %p737
        %p1410 = pneg %p734
        %p1411 = scmp.lt.s32.totalorder %s60, 1
        %s1412 = scalar_select %p1411, %s60, 1
        %s1413 = smul.addr %s1412, 2
        %s1414 = smul.addr %s1413, 8
        %s1415 = scalar_lea.vmem %s25, %s1414
        %p1416 = scmp.lt.s32.totalorder %s60, 1
        %s1417 = scalar_select %p1416, %s60, 1
        %s1418 = smul.addr %s1417, 2
        %s1419 = smul.addr %s1418, 8
        %s1420 = scalar_lea.vmem %s0, %s1419
        %s1421 = ssub.s32 1, %s60
        %p1422 = scmp.lt.s32.totalorder %s1421, 1
        %s1423 = scalar_select %p1422, %s1421, 1
        %s1424 = smul.addr %s1423, 2
        %s1425 = smul.addr %s1424, 8
        %s1426 = scalar_lea.vmem %s1, %s1425
        %s1427 = ssub.s32 1, %s60
        %p1428 = scmp.lt.s32.totalorder %s60, 1
        %s1429 = scalar_select %p1428, %s60, 1
        %s1430 = scalar_lea.vmem %s2, %s1429
        %p1431 = scmp.lt.s32.totalorder %s60, 1
        %s1432 = scalar_select %p1431, %s60, 1
        %s1433 = smul.addr %s1432, 16
        %s1434 = smul.addr %s1433, 4
        %s1435 = scalar_lea.vmem %s3, %s1434
        %s1436 = ssub.s32 1, %s60
        %p1437 = scmp.lt.s32.totalorder %s1436, 1
        %s1438 = scalar_select %p1437, %s1436, 1
        %s1439 = smul.addr %s1438, 16
        %s1440 = smul.addr %s1439, 4
        %s1441 = scalar_lea.vmem %s5, %s1440
        %s1442 = ssub.s32 1, %s60
        %s1443 = ssub.s32 1, %s60
        %p1444 = scmp.lt.s32.totalorder %s60, 1
        %s1445 = scalar_select %p1444, %s60, 1
        %s1446 = scalar_lea.vmem %s15, %s1445
        %p1447 = scmp.lt.s32.totalorder %s60, 1
        %s1448 = scalar_select %p1447, %s60, 1
        %s1449 = smul.addr %s1448, 16
        %s1450 = smul.addr %s1449, 4
        %s1451 = scalar_lea.vmem %s17, %s1450
        %p1452 = scmp.lt.s32.totalorder %s60, 1
        %s1453 = scalar_select %p1452, %s60, 1
        %s1454 = smul.addr %s1453, 16
        %s1455 = smul.addr %s1454, 4
        %s1456 = scalar_lea.vmem %s19, %s1455
        %p1457 = scmp.lt.s32.totalorder %s60, 1
        %s1458 = scalar_select %p1457, %s60, 1
        %s1459 = smul.addr %s1458, 16
        %s1460 = smul.addr %s1459, 4
        %s1461 = scalar_lea.vmem %s23, %s1460
        %p1462 = scmp.lt.s32.totalorder %s60, 1
        %s1463 = scalar_select %p1462, %s60, 1
        %s1464 = scalar_lea.vmem %s24, %s1463
        %p1465 = scmp.lt.s32.totalorder %s60, 1
        %s1466 = scalar_select %p1465, %s60, 1
        %s1467 = smul.addr %s1466, 2
        %s1468 = smul.addr %s1467, 8
        %s1469 = scalar_lea.vmem %s25, %s1468
        %v1471 = vld [vmem:[%s1420] sm:$0xff]
        %v1472 = vld [vmem:[%s1420 + $0x8] sm:$0xff]
        %v1473 = vpack.c.bf16 %v1472, %v1471
        %v1474 = vld [vmem:[%s1426] sm:$0xff]
        %v1475 = vld [vmem:[%s1426 + $0x8] sm:$0xff]
        %v1476 = vpack.c.bf16 %v1475, %v1474
        %v1477 = vld [vmem:[%s1435] sm:$0xf]
        %v1478 = vld [vmem:[%s1435 + $0x4] sm:$0xf]
        %v1479 = vld [vmem:[%s1435 + $0x8] sm:$0xf]
        %v1480 = vld [vmem:[%s1435 + $0xc] sm:$0xf]
        %v1481 = vld [vmem:[%s1435 + $0x10] sm:$0xf]
        %v1482 = vld [vmem:[%s1435 + $0x14] sm:$0xf]
        %v1483 = vld [vmem:[%s1435 + $0x18] sm:$0xf]
        %v1484 = vld [vmem:[%s1435 + $0x1c] sm:$0xf]
        %v1485 = vld [vmem:[%s1435 + $0x20] sm:$0xf]
        %v1486 = vld [vmem:[%s1435 + $0x24] sm:$0xf]
        %v1487 = vld [vmem:[%s1435 + $0x28] sm:$0xf]
        %v1488 = vld [vmem:[%s1435 + $0x2c] sm:$0xf]
        %v1489 = vld [vmem:[%s1435 + $0x30] sm:$0xf]
        %v1490 = vld [vmem:[%s1435 + $0x34] sm:$0xf]
        %v1491 = vld [vmem:[%s1435 + $0x38] sm:$0xf]
        %v1492 = vld [vmem:[%s1435 + $0x3c] sm:$0xf]
        %v1493 = vld [vmem:[%s1122] sm:$0x1]
        %v1495 = vlaneseq
        %v1496 = vshrl.u32 %v1495, 7
        %v1497 = vsub.s32 0, %v1496
        %v1498 = vrot.slane %v1493, %v1497
        %v1516 = vunpack.c.l.b16 %v1477
        %v1517 = vunpack.c.l.b16 %v1478
        %v1518 = vunpack.c.l.b16 %v1479
        %v1519 = vunpack.c.l.b16 %v1480
        %v1520 = vunpack.c.l.b16 %v1481
        %v1521 = vunpack.c.l.b16 %v1482
        %v1522 = vunpack.c.l.b16 %v1483
        %v1523 = vunpack.c.l.b16 %v1484
        %v1524 = vunpack.c.l.b16 %v1485
        %v1525 = vunpack.c.l.b16 %v1486
        %v1526 = vunpack.c.l.b16 %v1487
        %v1527 = vunpack.c.l.b16 %v1488
        %v1528 = vunpack.c.l.b16 %v1489
        %v1529 = vunpack.c.l.b16 %v1490
        %v1530 = vunpack.c.l.b16 %v1491
        %v1531 = vunpack.c.l.b16 %v1492
        %v1532 = vpack.c.b16 %v1517, %v1516
        %v1533 = vpack.c.b16 %v1519, %v1518
        %v1534 = vpack.c.b16 %v1521, %v1520
        %v1535 = vpack.c.b16 %v1523, %v1522
        %v1536 = vpack.c.b16 %v1525, %v1524
        %v1537 = vpack.c.b16 %v1527, %v1526
        %v1538 = vpack.c.b16 %v1529, %v1528
        %v1539 = vpack.c.b16 %v1531, %v1530
        %1548 = vmatprep.subr.bf16.mxu0 0
        %1549 = vmatpush1.bf16.msra.mxu0 %v1532
        %1550 = vmatprep.subr.bf16.mxu0 0
        %1551 = vmatpush1.bf16.msra.mxu0 %v1533
        %1552 = vmatprep.subr.bf16.mxu0 0
        %1553 = vmatpush1.bf16.msra.mxu0 %v1534
        %1554 = vmatprep.subr.bf16.mxu0 0
        %1555 = vmatpush1.bf16.msra.mxu0 %v1535
        %1556 = vmatprep.subr.bf16.mxu0 0
        %1557 = vmatpush1.bf16.msra.mxu0 %v1536
        %1558 = vmatprep.subr.bf16.mxu0 0
        %1559 = vmatpush1.bf16.msra.mxu0 %v1537
        %1560 = vmatprep.subr.bf16.mxu0 0
        %1561 = vmatpush1.bf16.msra.mxu0 %v1538
        %1562 = vmatprep.subr.bf16.mxu0 0
        %1563 = vmatpush1.bf16.msra.mxu0 %v1539
        %1564 = vmatprep.subr.bf16.mxu0 0
        %1565 = vmatpush1.bf16.msra.mxu0 0
        %1566 = vmatprep.subr.bf16.mxu0 0
        %1567 = vmatpush1.bf16.msra.mxu0 0
        %1568 = vmatprep.subr.bf16.mxu0 0
        %1569 = vmatpush1.bf16.msra.mxu0 0
        %1570 = vmatprep.subr.bf16.mxu0 0
        %1571 = vmatpush1.bf16.msra.mxu0 0
        %1572 = vmatprep.subr.bf16.mxu0 0
        %1573 = vmatpush1.bf16.msra.mxu0 0
        %1574 = vmatprep.subr.bf16.mxu0 0
        %1575 = vmatpush1.bf16.msra.mxu0 0
        %1576 = vmatprep.subr.bf16.mxu0 0
        %1577 = vmatpush1.bf16.msra.mxu0 0
        %1578 = vmatprep.subr.bf16.mxu0 0
        %1579 = vmatpush1.bf16.msra.mxu0 0
        %1580 = vmatprep.mubr.bf16.mxu0 0
        %1581 = vmatmul.mubr.bf16.gmra.mrb[0].mxu0 %v1473
        %v1582 = vpop.f32.mrb[0].mxu0
        %v1583 = vadd.f32 %v1498, %v1582
        %v1584 = vpop.f32.mrb[0].mxu0
        %v1585 = vpop.f32.mrb[0].mxu0
        %v1586 = vadd.f32 %v1498, %v1585
        %v1587 = vpop.f32.mrb[0].mxu0
        %1588 = vdwg.mxu0
        %v1589 = vld [vmem:[%s1441] sm:$0xf]
        %v1590 = vld [vmem:[%s1441 + $0x4] sm:$0xf]
        %v1591 = vld [vmem:[%s1441 + $0x8] sm:$0xf]
        %v1592 = vld [vmem:[%s1441 + $0xc] sm:$0xf]
        %v1593 = vld [vmem:[%s1441 + $0x10] sm:$0xf]
        %v1594 = vld [vmem:[%s1441 + $0x14] sm:$0xf]
        %v1595 = vld [vmem:[%s1441 + $0x18] sm:$0xf]
        %v1596 = vld [vmem:[%s1441 + $0x1c] sm:$0xf]
        %v1597 = vld [vmem:[%s1441 + $0x20] sm:$0xf]
        %v1598 = vld [vmem:[%s1441 + $0x24] sm:$0xf]
        %v1599 = vld [vmem:[%s1441 + $0x28] sm:$0xf]
        %v1600 = vld [vmem:[%s1441 + $0x2c] sm:$0xf]
        %v1601 = vld [vmem:[%s1441 + $0x30] sm:$0xf]
        %v1602 = vld [vmem:[%s1441 + $0x34] sm:$0xf]
        %v1603 = vld [vmem:[%s1441 + $0x38] sm:$0xf]
        %v1604 = vld [vmem:[%s1441 + $0x3c] sm:$0xf]
        %v1605 = vld [vmem:[%s1130] sm:$0x1]
        %v1607 = vlaneseq
        %v1608 = vshrl.u32 %v1607, 7
        %v1609 = vsub.s32 0, %v1608
        %v1610 = vrot.slane %v1605, %v1609
        %v1628 = vunpack.c.l.b16 %v1589
        %v1629 = vunpack.c.l.b16 %v1590
        %v1630 = vunpack.c.l.b16 %v1591
        %v1631 = vunpack.c.l.b16 %v1592
        %v1632 = vunpack.c.l.b16 %v1593
        %v1633 = vunpack.c.l.b16 %v1594
        %v1634 = vunpack.c.l.b16 %v1595
        %v1635 = vunpack.c.l.b16 %v1596
        %v1636 = vunpack.c.l.b16 %v1597
        %v1637 = vunpack.c.l.b16 %v1598
        %v1638 = vunpack.c.l.b16 %v1599
        %v1639 = vunpack.c.l.b16 %v1600
        %v1640 = vunpack.c.l.b16 %v1601
        %v1641 = vunpack.c.l.b16 %v1602
        %v1642 = vunpack.c.l.b16 %v1603
        %v1643 = vunpack.c.l.b16 %v1604
        %v1644 = vpack.c.b16 %v1629, %v1628
        %v1645 = vpack.c.b16 %v1631, %v1630
        %v1646 = vpack.c.b16 %v1633, %v1632
        %v1647 = vpack.c.b16 %v1635, %v1634
        %v1648 = vpack.c.b16 %v1637, %v1636
        %v1649 = vpack.c.b16 %v1639, %v1638
        %v1650 = vpack.c.b16 %v1641, %v1640
        %v1651 = vpack.c.b16 %v1643, %v1642
        %1660 = vmatprep.subr.bf16.mxu0 0
        %1661 = vmatpush1.bf16.msra.mxu0 %v1644
        %1662 = vmatprep.subr.bf16.mxu0 0
        %1663 = vmatpush1.bf16.msra.mxu0 %v1645
        %1664 = vmatprep.subr.bf16.mxu0 0
        %1665 = vmatpush1.bf16.msra.mxu0 %v1646
        %1666 = vmatprep.subr.bf16.mxu0 0
        %1667 = vmatpush1.bf16.msra.mxu0 %v1647
        %1668 = vmatprep.subr.bf16.mxu0 0
        %1669 = vmatpush1.bf16.msra.mxu0 %v1648
        %1670 = vmatprep.subr.bf16.mxu0 0
        %1671 = vmatpush1.bf16.msra.mxu0 %v1649
        %1672 = vmatprep.subr.bf16.mxu0 0
        %1673 = vmatpush1.bf16.msra.mxu0 %v1650
        %1674 = vmatprep.subr.bf16.mxu0 0
        %1675 = vmatpush1.bf16.msra.mxu0 %v1651
        %1676 = vmatprep.subr.bf16.mxu0 0
        %1677 = vmatpush1.bf16.msra.mxu0 0
        %1678 = vmatprep.subr.bf16.mxu0 0
        %1679 = vmatpush1.bf16.msra.mxu0 0
        %1680 = vmatprep.subr.bf16.mxu0 0
        %1681 = vmatpush1.bf16.msra.mxu0 0
        %1682 = vmatprep.subr.bf16.mxu0 0
        %1683 = vmatpush1.bf16.msra.mxu0 0
        %1684 = vmatprep.subr.bf16.mxu0 0
        %1685 = vmatpush1.bf16.msra.mxu0 0
        %1686 = vmatprep.subr.bf16.mxu0 0
        %1687 = vmatpush1.bf16.msra.mxu0 0
        %1688 = vmatprep.subr.bf16.mxu0 0
        %1689 = vmatpush1.bf16.msra.mxu0 0
        %1690 = vmatprep.subr.bf16.mxu0 0
        %1691 = vmatpush1.bf16.msra.mxu0 0
        %1692 = vmatprep.mubr.bf16.mxu0 0
        %1693 = vmatmul.mubr.bf16.gmra.mrb[0].mxu0 %v1476
        %v1694 = vpop.f32.mrb[0].mxu0
        %v1695 = vadd.f32 %v1610, %v1694
        %v1696 = vpop.f32.mrb[0].mxu0
        %v1697 = vpop.f32.mrb[0].mxu0
        %v1698 = vadd.f32 %v1610, %v1697
        %v1699 = vpop.f32.mrb[0].mxu0
        %1700 = vdwg.mxu0
        %v1701 = vpack.c.bf16 %v1586, %v1583
        %v1702 = vpack.c.bf16 %v1698, %v1695
        %v1703 = vld [vmem:[%s1139] sm:$0xff]
        %v1704 = vld [vmem:[%s1139 + $0x8] sm:$0xff]
        %v1705 = vld [vmem:[%s1139 + $0x10] sm:$0xff]
        %v1706 = vld [vmem:[%s1139 + $0x18] sm:$0xff]
        %v1707 = vld [vmem:[%s1139 + $0x20] sm:$0xff]
        %v1708 = vld [vmem:[%s1139 + $0x28] sm:$0xff]
        %v1709 = vld [vmem:[%s1139 + $0x30] sm:$0xff]
        %v1710 = vld [vmem:[%s1139 + $0x38] sm:$0xff]
        %v1711 = vld [vmem:[%s1139 + $0x40] sm:$0xff]
        %v1712 = vld [vmem:[%s1139 + $0x48] sm:$0xff]
        %v1713 = vld [vmem:[%s1139 + $0x50] sm:$0xff]
        %v1714 = vld [vmem:[%s1139 + $0x58] sm:$0xff]
        %v1715 = vld [vmem:[%s1139 + $0x60] sm:$0xff]
        %v1716 = vld [vmem:[%s1139 + $0x68] sm:$0xff]
        %v1717 = vld [vmem:[%s1139 + $0x70] sm:$0xff]
        %v1718 = vld [vmem:[%s1139 + $0x78] sm:$0xff]
        %v1719 = vld [vmem:[%s1139 + $0x80] sm:$0xff]
        %v1720 = vld [vmem:[%s1139 + $0x88] sm:$0xff]
        %v1721 = vld [vmem:[%s1139 + $0x90] sm:$0xff]
        %v1722 = vld [vmem:[%s1139 + $0x98] sm:$0xff]
        %v1723 = vld [vmem:[%s1139 + $0xa0] sm:$0xff]
        %v1724 = vld [vmem:[%s1139 + $0xa8] sm:$0xff]
        %v1725 = vld [vmem:[%s1139 + $0xb0] sm:$0xff]
        %v1726 = vld [vmem:[%s1139 + $0xb8] sm:$0xff]
        %v1727 = vld [vmem:[%s1139 + $0xc0] sm:$0xff]
        %v1728 = vld [vmem:[%s1139 + $0xc8] sm:$0xff]
        %v1729 = vld [vmem:[%s1139 + $0xd0] sm:$0xff]
        %v1730 = vld [vmem:[%s1139 + $0xd8] sm:$0xff]
        %v1731 = vld [vmem:[%s1139 + $0xe0] sm:$0xff]
        %v1732 = vld [vmem:[%s1139 + $0xe8] sm:$0xff]
        %v1733 = vld [vmem:[%s1139 + $0xf0] sm:$0xff]
        %v1734 = vld [vmem:[%s1139 + $0xf8] sm:$0xff]
        %v1735 = vld [vmem:[%s1148] sm:$0xf]
        %v1737 = vlaneseq
        %v1738 = vshrl.u32 %v1737, 7
        %v1739 = vsub.s32 0, %v1738
        %v1740 = vrot.slane %v1735, %v1739
        %v1741 = vlaneseq
        %v1742 = vshrl.u32 %v1741, 7
        %v1743 = vsub.s32 1, %v1742
        %v1744 = vrot.slane %v1735, %v1743
        %v1745 = vlaneseq
        %v1746 = vshrl.u32 %v1745, 7
        %v1747 = vsub.s32 2, %v1746
        %v1748 = vrot.slane %v1735, %v1747
        %v1749 = vlaneseq
        %v1750 = vshrl.u32 %v1749, 7
        %v1751 = vsub.s32 3, %v1750
        %v1752 = vrot.slane %v1735, %v1751
        %v1789 = vunpack.c.l.b16 %v1703
        %v1790 = vunpack.c.h.b16 %v1703
        %v1791 = vunpack.c.l.b16 %v1704
        %v1792 = vunpack.c.h.b16 %v1704
        %v1793 = vunpack.c.l.b16 %v1705
        %v1794 = vunpack.c.h.b16 %v1705
        %v1795 = vunpack.c.l.b16 %v1706
        %v1796 = vunpack.c.h.b16 %v1706
        %v1797 = vunpack.c.l.b16 %v1707
        %v1798 = vunpack.c.h.b16 %v1707
        %v1799 = vunpack.c.l.b16 %v1708
        %v1800 = vunpack.c.h.b16 %v1708
        %v1801 = vunpack.c.l.b16 %v1709
        %v1802 = vunpack.c.h.b16 %v1709
        %v1803 = vunpack.c.l.b16 %v1710
        %v1804 = vunpack.c.h.b16 %v1710
        %v1805 = vunpack.c.l.b16 %v1711
        %v1806 = vunpack.c.h.b16 %v1711
        %v1807 = vunpack.c.l.b16 %v1712
        %v1808 = vunpack.c.h.b16 %v1712
        %v1809 = vunpack.c.l.b16 %v1713
        %v1810 = vunpack.c.h.b16 %v1713
        %v1811 = vunpack.c.l.b16 %v1714
        %v1812 = vunpack.c.h.b16 %v1714
        %v1813 = vunpack.c.l.b16 %v1715
        %v1814 = vunpack.c.h.b16 %v1715
        %v1815 = vunpack.c.l.b16 %v1716
        %v1816 = vunpack.c.h.b16 %v1716
        %v1817 = vunpack.c.l.b16 %v1717
        %v1818 = vunpack.c.h.b16 %v1717
        %v1819 = vunpack.c.l.b16 %v1718
        %v1820 = vunpack.c.h.b16 %v1718
        %v1821 = vunpack.c.l.b16 %v1719
        %v1822 = vunpack.c.h.b16 %v1719
        %v1823 = vunpack.c.l.b16 %v1720
        %v1824 = vunpack.c.h.b16 %v1720
        %v1825 = vunpack.c.l.b16 %v1721
        %v1826 = vunpack.c.h.b16 %v1721
        %v1827 = vunpack.c.l.b16 %v1722
        %v1828 = vunpack.c.h.b16 %v1722
        %v1829 = vunpack.c.l.b16 %v1723
        %v1830 = vunpack.c.h.b16 %v1723
        %v1831 = vunpack.c.l.b16 %v1724
        %v1832 = vunpack.c.h.b16 %v1724
        %v1833 = vunpack.c.l.b16 %v1725
        %v1834 = vunpack.c.h.b16 %v1725
        %v1835 = vunpack.c.l.b16 %v1726
        %v1836 = vunpack.c.h.b16 %v1726
        %v1837 = vunpack.c.l.b16 %v1727
        %v1838 = vunpack.c.h.b16 %v1727
        %v1839 = vunpack.c.l.b16 %v1728
        %v1840 = vunpack.c.h.b16 %v1728
        %v1841 = vunpack.c.l.b16 %v1729
        %v1842 = vunpack.c.h.b16 %v1729
        %v1843 = vunpack.c.l.b16 %v1730
        %v1844 = vunpack.c.h.b16 %v1730
        %v1845 = vunpack.c.l.b16 %v1731
        %v1846 = vunpack.c.h.b16 %v1731
        %v1847 = vunpack.c.l.b16 %v1732
        %v1848 = vunpack.c.h.b16 %v1732
        %v1849 = vunpack.c.l.b16 %v1733
        %v1850 = vunpack.c.h.b16 %v1733
        %v1851 = vunpack.c.l.b16 %v1734
        %v1852 = vunpack.c.h.b16 %v1734
        %v1853 = vpack.c.b16 %v1793, %v1789
        %v1854 = vpack.c.b16 %v1794, %v1790
        %v1855 = vpack.c.b16 %v1795, %v1791
        %v1856 = vpack.c.b16 %v1796, %v1792
        %v1857 = vpack.c.b16 %v1801, %v1797
        %v1858 = vpack.c.b16 %v1802, %v1798
        %v1859 = vpack.c.b16 %v1803, %v1799
        %v1860 = vpack.c.b16 %v1804, %v1800
        %v1861 = vpack.c.b16 %v1809, %v1805
        %v1862 = vpack.c.b16 %v1810, %v1806
        %v1863 = vpack.c.b16 %v1811, %v1807
        %v1864 = vpack.c.b16 %v1812, %v1808
        %v1865 = vpack.c.b16 %v1817, %v1813
        %v1866 = vpack.c.b16 %v1818, %v1814
        %v1867 = vpack.c.b16 %v1819, %v1815
        %v1868 = vpack.c.b16 %v1820, %v1816
        %v1869 = vpack.c.b16 %v1825, %v1821
        %v1870 = vpack.c.b16 %v1826, %v1822
        %v1871 = vpack.c.b16 %v1827, %v1823
        %v1872 = vpack.c.b16 %v1828, %v1824
        %v1873 = vpack.c.b16 %v1833, %v1829
        %v1874 = vpack.c.b16 %v1834, %v1830
        %v1875 = vpack.c.b16 %v1835, %v1831
        %v1876 = vpack.c.b16 %v1836, %v1832
        %v1877 = vpack.c.b16 %v1841, %v1837
        %v1878 = vpack.c.b16 %v1842, %v1838
        %v1879 = vpack.c.b16 %v1843, %v1839
        %v1880 = vpack.c.b16 %v1844, %v1840
        %v1881 = vpack.c.b16 %v1849, %v1845
        %v1882 = vpack.c.b16 %v1850, %v1846
        %v1883 = vpack.c.b16 %v1851, %v1847
        %v1884 = vpack.c.b16 %v1852, %v1848
        %1917 = vmatprep.subr.bf16.mxu0 %v1854
        %1918 = vmatpush1.bf16.msra.mxu0 %v1853
        %1919 = vmatprep.subr.bf16.mxu0 %v1858
        %1920 = vmatpush1.bf16.msra.mxu0 %v1857
        %1921 = vmatprep.subr.bf16.mxu0 %v1862
        %1922 = vmatpush1.bf16.msra.mxu0 %v1861
        %1923 = vmatprep.subr.bf16.mxu0 %v1866
        %1924 = vmatpush1.bf16.msra.mxu0 %v1865
        %1925 = vmatprep.subr.bf16.mxu0 %v1870
        %1926 = vmatpush1.bf16.msra.mxu0 %v1869
        %1927 = vmatprep.subr.bf16.mxu0 %v1874
        %1928 = vmatpush1.bf16.msra.mxu0 %v1873
        %1929 = vmatprep.subr.bf16.mxu0 %v1878
        %1930 = vmatpush1.bf16.msra.mxu0 %v1877
        %1931 = vmatprep.subr.bf16.mxu0 %v1882
        %1932 = vmatpush1.bf16.msra.mxu0 %v1881
        %1933 = vmatprep.subr.bf16.mxu0 0
        %1934 = vmatpush1.bf16.msra.mxu0 0
        %1935 = vmatprep.subr.bf16.mxu0 0
        %1936 = vmatpush1.bf16.msra.mxu0 0
        %1937 = vmatprep.subr.bf16.mxu0 0
        %1938 = vmatpush1.bf16.msra.mxu0 0
        %1939 = vmatprep.subr.bf16.mxu0 0
        %1940 = vmatpush1.bf16.msra.mxu0 0
        %1941 = vmatprep.subr.bf16.mxu0 0
        %1942 = vmatpush1.bf16.msra.mxu0 0
        %1943 = vmatprep.subr.bf16.mxu0 0
        %1944 = vmatpush1.bf16.msra.mxu0 0
        %1945 = vmatprep.subr.bf16.mxu0 0
        %1946 = vmatpush1.bf16.msra.mxu0 0
        %1947 = vmatprep.subr.bf16.mxu0 0
        %1948 = vmatpush1.bf16.msra.mxu0 0
        %1949 = vmatprep.mubr.bf16.mxu0 0
        %1950 = vmatmul.mubr.bf16.gmra.mrb[0].mxu0 %v1701
        %v1951 = vpop.f32.mrb[0].mxu0
        %v1952 = vadd.f32 %v1740, %v1951
        %v1953 = vpop.f32.mrb[0].mxu0
        %v1954 = vadd.f32 %v1744, %v1953
        %v1955 = vpop.f32.mrb[0].mxu0
        %v1956 = vadd.f32 %v1740, %v1955
        %v1957 = vpop.f32.mrb[0].mxu0
        %v1958 = vadd.f32 %v1744, %v1957
        %1959 = vdwg.mxu0
        %1960 = vmatprep.subr.bf16.mxu0 %v1856
        %1961 = vmatpush1.bf16.msra.mxu0 %v1855
        %1962 = vmatprep.subr.bf16.mxu0 %v1860
        %1963 = vmatpush1.bf16.msra.mxu0 %v1859
        %1964 = vmatprep.subr.bf16.mxu0 %v1864
        %1965 = vmatpush1.bf16.msra.mxu0 %v1863
        %1966 = vmatprep.subr.bf16.mxu0 %v1868
        %1967 = vmatpush1.bf16.msra.mxu0 %v1867
        %1968 = vmatprep.subr.bf16.mxu0 %v1872
        %1969 = vmatpush1.bf16.msra.mxu0 %v1871
        %1970 = vmatprep.subr.bf16.mxu0 %v1876
        %1971 = vmatpush1.bf16.msra.mxu0 %v1875
        %1972 = vmatprep.subr.bf16.mxu0 %v1880
        %1973 = vmatpush1.bf16.msra.mxu0 %v1879
        %1974 = vmatprep.subr.bf16.mxu0 %v1884
        %1975 = vmatpush1.bf16.msra.mxu0 %v1883
        %1976 = vmatprep.subr.bf16.mxu0 0
        %1977 = vmatpush1.bf16.msra.mxu0 0
        %1978 = vmatprep.subr.bf16.mxu0 0
        %1979 = vmatpush1.bf16.msra.mxu0 0
        %1980 = vmatprep.subr.bf16.mxu0 0
        %1981 = vmatpush1.bf16.msra.mxu0 0
        %1982 = vmatprep.subr.bf16.mxu0 0
        %1983 = vmatpush1.bf16.msra.mxu0 0
        %1984 = vmatprep.subr.bf16.mxu0 0
        %1985 = vmatpush1.bf16.msra.mxu0 0
        %1986 = vmatprep.subr.bf16.mxu0 0
        %1987 = vmatpush1.bf16.msra.mxu0 0
        %1988 = vmatprep.subr.bf16.mxu0 0
        %1989 = vmatpush1.bf16.msra.mxu0 0
        %1990 = vmatprep.subr.bf16.mxu0 0
        %1991 = vmatpush1.bf16.msra.mxu0 0
        %1992 = vmatprep.mubr.bf16.mxu0 0
        %1993 = vmatmul.mubr.bf16.gmra.mrb[0].mxu0 %v1701
        %v1994 = vpop.f32.mrb[0].mxu0
        %v1995 = vadd.f32 %v1748, %v1994
        %v1996 = vpop.f32.mrb[0].mxu0
        %v1997 = vadd.f32 %v1752, %v1996
        %v1998 = vpop.f32.mrb[0].mxu0
        %v1999 = vadd.f32 %v1748, %v1998
        %v2000 = vpop.f32.mrb[0].mxu0
        %v2001 = vadd.f32 %v1752, %v2000
        %2002 = vdwg.mxu0
        %v2003 = vpack.c.bf16 %v1952, %v1952
        %v2004 = vpack.c.bf16 %v1954, %v1954
        %v2005 = vpack.c.bf16 %v1995, %v1995
        %v2006 = vpack.c.bf16 %v1997, %v1997
        %v2007 = vpack.c.bf16 %v1956, %v1956
        %v2008 = vpack.c.bf16 %v1958, %v1958
        %v2009 = vpack.c.bf16 %v1999, %v1999
        %v2010 = vpack.c.bf16 %v2001, %v2001
        %v2011 = vld [vmem:[%s1157] sm:$0xff]
        %v2012 = vld [vmem:[%s1157 + $0x8] sm:$0xff]
        %v2013 = vld [vmem:[%s1157 + $0x10] sm:$0xff]
        %v2014 = vld [vmem:[%s1157 + $0x18] sm:$0xff]
        %v2015 = vld [vmem:[%s1157 + $0x20] sm:$0xff]
        %v2016 = vld [vmem:[%s1157 + $0x28] sm:$0xff]
        %v2017 = vld [vmem:[%s1157 + $0x30] sm:$0xff]
        %v2018 = vld [vmem:[%s1157 + $0x38] sm:$0xff]
        %v2019 = vld [vmem:[%s1157 + $0x40] sm:$0xff]
        %v2020 = vld [vmem:[%s1157 + $0x48] sm:$0xff]
        %v2021 = vld [vmem:[%s1157 + $0x50] sm:$0xff]
        %v2022 = vld [vmem:[%s1157 + $0x58] sm:$0xff]
        %v2023 = vld [vmem:[%s1157 + $0x60] sm:$0xff]
        %v2024 = vld [vmem:[%s1157 + $0x68] sm:$0xff]
        %v2025 = vld [vmem:[%s1157 + $0x70] sm:$0xff]
        %v2026 = vld [vmem:[%s1157 + $0x78] sm:$0xff]
        %v2027 = vld [vmem:[%s1157 + $0x80] sm:$0xff]
        %v2028 = vld [vmem:[%s1157 + $0x88] sm:$0xff]
        %v2029 = vld [vmem:[%s1157 + $0x90] sm:$0xff]
        %v2030 = vld [vmem:[%s1157 + $0x98] sm:$0xff]
        %v2031 = vld [vmem:[%s1157 + $0xa0] sm:$0xff]
        %v2032 = vld [vmem:[%s1157 + $0xa8] sm:$0xff]
        %v2033 = vld [vmem:[%s1157 + $0xb0] sm:$0xff]
        %v2034 = vld [vmem:[%s1157 + $0xb8] sm:$0xff]
        %v2035 = vld [vmem:[%s1157 + $0xc0] sm:$0xff]
        %v2036 = vld [vmem:[%s1157 + $0xc8] sm:$0xff]
        %v2037 = vld [vmem:[%s1157 + $0xd0] sm:$0xff]
        %v2038 = vld [vmem:[%s1157 + $0xd8] sm:$0xff]
        %v2039 = vld [vmem:[%s1157 + $0xe0] sm:$0xff]
        %v2040 = vld [vmem:[%s1157 + $0xe8] sm:$0xff]
        %v2041 = vld [vmem:[%s1157 + $0xf0] sm:$0xff]
        %v2042 = vld [vmem:[%s1157 + $0xf8] sm:$0xff]
        %v2043 = vld [vmem:[%s1166] sm:$0xf]
        %v2045 = vlaneseq
        %v2046 = vshrl.u32 %v2045, 7
        %v2047 = vsub.s32 0, %v2046
        %v2048 = vrot.slane %v2043, %v2047
        %v2049 = vlaneseq
        %v2050 = vshrl.u32 %v2049, 7
        %v2051 = vsub.s32 1, %v2050
        %v2052 = vrot.slane %v2043, %v2051
        %v2053 = vlaneseq
        %v2054 = vshrl.u32 %v2053, 7
        %v2055 = vsub.s32 2, %v2054
        %v2056 = vrot.slane %v2043, %v2055
        %v2057 = vlaneseq
        %v2058 = vshrl.u32 %v2057, 7
        %v2059 = vsub.s32 3, %v2058
        %v2060 = vrot.slane %v2043, %v2059
        %v2097 = vunpack.c.l.b16 %v2011
        %v2098 = vunpack.c.h.b16 %v2011
        %v2099 = vunpack.c.l.b16 %v2012
        %v2100 = vunpack.c.h.b16 %v2012
        %v2101 = vunpack.c.l.b16 %v2013
        %v2102 = vunpack.c.h.b16 %v2013
        %v2103 = vunpack.c.l.b16 %v2014
        %v2104 = vunpack.c.h.b16 %v2014
        %v2105 = vunpack.c.l.b16 %v2015
        %v2106 = vunpack.c.h.b16 %v2015
        %v2107 = vunpack.c.l.b16 %v2016
        %v2108 = vunpack.c.h.b16 %v2016
        %v2109 = vunpack.c.l.b16 %v2017
        %v2110 = vunpack.c.h.b16 %v2017
        %v2111 = vunpack.c.l.b16 %v2018
        %v2112 = vunpack.c.h.b16 %v2018
        %v2113 = vunpack.c.l.b16 %v2019
        %v2114 = vunpack.c.h.b16 %v2019
        %v2115 = vunpack.c.l.b16 %v2020
        %v2116 = vunpack.c.h.b16 %v2020
        %v2117 = vunpack.c.l.b16 %v2021
        %v2118 = vunpack.c.h.b16 %v2021
        %v2119 = vunpack.c.l.b16 %v2022
        %v2120 = vunpack.c.h.b16 %v2022
        %v2121 = vunpack.c.l.b16 %v2023
        %v2122 = vunpack.c.h.b16 %v2023
        %v2123 = vunpack.c.l.b16 %v2024
        %v2124 = vunpack.c.h.b16 %v2024
        %v2125 = vunpack.c.l.b16 %v2025
        %v2126 = vunpack.c.h.b16 %v2025
        %v2127 = vunpack.c.l.b16 %v2026
        %v2128 = vunpack.c.h.b16 %v2026
        %v2129 = vunpack.c.l.b16 %v2027
        %v2130 = vunpack.c.h.b16 %v2027
        %v2131 = vunpack.c.l.b16 %v2028
        %v2132 = vunpack.c.h.b16 %v2028
        %v2133 = vunpack.c.l.b16 %v2029
        %v2134 = vunpack.c.h.b16 %v2029
        %v2135 = vunpack.c.l.b16 %v2030
        %v2136 = vunpack.c.h.b16 %v2030
        %v2137 = vunpack.c.l.b16 %v2031
        %v2138 = vunpack.c.h.b16 %v2031
        %v2139 = vunpack.c.l.b16 %v2032
        %v2140 = vunpack.c.h.b16 %v2032
        %v2141 = vunpack.c.l.b16 %v2033
        %v2142 = vunpack.c.h.b16 %v2033
        %v2143 = vunpack.c.l.b16 %v2034
        %v2144 = vunpack.c.h.b16 %v2034
        %v2145 = vunpack.c.l.b16 %v2035
        %v2146 = vunpack.c.h.b16 %v2035
        %v2147 = vunpack.c.l.b16 %v2036
        %v2148 = vunpack.c.h.b16 %v2036
        %v2149 = vunpack.c.l.b16 %v2037
        %v2150 = vunpack.c.h.b16 %v2037
        %v2151 = vunpack.c.l.b16 %v2038
        %v2152 = vunpack.c.h.b16 %v2038
        %v2153 = vunpack.c.l.b16 %v2039
        %v2154 = vunpack.c.h.b16 %v2039
        %v2155 = vunpack.c.l.b16 %v2040
        %v2156 = vunpack.c.h.b16 %v2040
        %v2157 = vunpack.c.l.b16 %v2041
        %v2158 = vunpack.c.h.b16 %v2041
        %v2159 = vunpack.c.l.b16 %v2042
        %v2160 = vunpack.c.h.b16 %v2042
        %v2161 = vpack.c.b16 %v2101, %v2097
        %v2162 = vpack.c.b16 %v2102, %v2098
        %v2163 = vpack.c.b16 %v2103, %v2099
        %v2164 = vpack.c.b16 %v2104, %v2100
        %v2165 = vpack.c.b16 %v2109, %v2105
        %v2166 = vpack.c.b16 %v2110, %v2106
        %v2167 = vpack.c.b16 %v2111, %v2107
        %v2168 = vpack.c.b16 %v2112, %v2108
        %v2169 = vpack.c.b16 %v2117, %v2113
        %v2170 = vpack.c.b16 %v2118, %v2114
        %v2171 = vpack.c.b16 %v2119, %v2115
        %v2172 = vpack.c.b16 %v2120, %v2116
        %v2173 = vpack.c.b16 %v2125, %v2121
        %v2174 = vpack.c.b16 %v2126, %v2122
        %v2175 = vpack.c.b16 %v2127, %v2123
        %v2176 = vpack.c.b16 %v2128, %v2124
        %v2177 = vpack.c.b16 %v2133, %v2129
        %v2178 = vpack.c.b16 %v2134, %v2130
        %v2179 = vpack.c.b16 %v2135, %v2131
        %v2180 = vpack.c.b16 %v2136, %v2132
        %v2181 = vpack.c.b16 %v2141, %v2137
        %v2182 = vpack.c.b16 %v2142, %v2138
        %v2183 = vpack.c.b16 %v2143, %v2139
        %v2184 = vpack.c.b16 %v2144, %v2140
        %v2185 = vpack.c.b16 %v2149, %v2145
        %v2186 = vpack.c.b16 %v2150, %v2146
        %v2187 = vpack.c.b16 %v2151, %v2147
        %v2188 = vpack.c.b16 %v2152, %v2148
        %v2189 = vpack.c.b16 %v2157, %v2153
        %v2190 = vpack.c.b16 %v2158, %v2154
        %v2191 = vpack.c.b16 %v2159, %v2155
        %v2192 = vpack.c.b16 %v2160, %v2156
        %2225 = vmatprep.subr.bf16.mxu0 %v2162
        %2226 = vmatpush1.bf16.msra.mxu0 %v2161
        %2227 = vmatprep.subr.bf16.mxu0 %v2166
        %2228 = vmatpush1.bf16.msra.mxu0 %v2165
        %2229 = vmatprep.subr.bf16.mxu0 %v2170
        %2230 = vmatpush1.bf16.msra.mxu0 %v2169
        %2231 = vmatprep.subr.bf16.mxu0 %v2174
        %2232 = vmatpush1.bf16.msra.mxu0 %v2173
        %2233 = vmatprep.subr.bf16.mxu0 %v2178
        %2234 = vmatpush1.bf16.msra.mxu0 %v2177
        %2235 = vmatprep.subr.bf16.mxu0 %v2182
        %2236 = vmatpush1.bf16.msra.mxu0 %v2181
        %2237 = vmatprep.subr.bf16.mxu0 %v2186
        %2238 = vmatpush1.bf16.msra.mxu0 %v2185
        %2239 = vmatprep.subr.bf16.mxu0 %v2190
        %2240 = vmatpush1.bf16.msra.mxu0 %v2189
        %2241 = vmatprep.subr.bf16.mxu0 0
        %2242 = vmatpush1.bf16.msra.mxu0 0
        %2243 = vmatprep.subr.bf16.mxu0 0
        %2244 = vmatpush1.bf16.msra.mxu0 0
        %2245 = vmatprep.subr.bf16.mxu0 0
        %2246 = vmatpush1.bf16.msra.mxu0 0
        %2247 = vmatprep.subr.bf16.mxu0 0
        %2248 = vmatpush1.bf16.msra.mxu0 0
        %2249 = vmatprep.subr.bf16.mxu0 0
        %2250 = vmatpush1.bf16.msra.mxu0 0
        %2251 = vmatprep.subr.bf16.mxu0 0
        %2252 = vmatpush1.bf16.msra.mxu0 0
        %2253 = vmatprep.subr.bf16.mxu0 0
        %2254 = vmatpush1.bf16.msra.mxu0 0
        %2255 = vmatprep.subr.bf16.mxu0 0
        %2256 = vmatpush1.bf16.msra.mxu0 0
        %2257 = vmatprep.mubr.bf16.mxu0 0
        %2258 = vmatmul.mubr.bf16.gmra.mrb[0].mxu0 %v1702
        %v2259 = vpop.f32.mrb[0].mxu0
        %v2260 = vadd.f32 %v2048, %v2259
        %v2261 = vpop.f32.mrb[0].mxu0
        %v2262 = vadd.f32 %v2052, %v2261
        %v2263 = vpop.f32.mrb[0].mxu0
        %v2264 = vadd.f32 %v2048, %v2263
        %v2265 = vpop.f32.mrb[0].mxu0
        %v2266 = vadd.f32 %v2052, %v2265
        %2267 = vdwg.mxu0
        %2268 = vmatprep.subr.bf16.mxu0 %v2164
        %2269 = vmatpush1.bf16.msra.mxu0 %v2163
        %2270 = vmatprep.subr.bf16.mxu0 %v2168
        %2271 = vmatpush1.bf16.msra.mxu0 %v2167
        %2272 = vmatprep.subr.bf16.mxu0 %v2172
        %2273 = vmatpush1.bf16.msra.mxu0 %v2171
        %2274 = vmatprep.subr.bf16.mxu0 %v2176
        %2275 = vmatpush1.bf16.msra.mxu0 %v2175
        %2276 = vmatprep.subr.bf16.mxu0 %v2180
        %2277 = vmatpush1.bf16.msra.mxu0 %v2179
        %2278 = vmatprep.subr.bf16.mxu0 %v2184
        %2279 = vmatpush1.bf16.msra.mxu0 %v2183
        %2280 = vmatprep.subr.bf16.mxu0 %v2188
        %2281 = vmatpush1.bf16.msra.mxu0 %v2187
        %2282 = vmatprep.subr.bf16.mxu0 %v2192
        %2283 = vmatpush1.bf16.msra.mxu0 %v2191
        %2284 = vmatprep.subr.bf16.mxu0 0
        %2285 = vmatpush1.bf16.msra.mxu0 0
        %2286 = vmatprep.subr.bf16.mxu0 0
        %2287 = vmatpush1.bf16.msra.mxu0 0
        %2288 = vmatprep.subr.bf16.mxu0 0
        %2289 = vmatpush1.bf16.msra.mxu0 0
        %2290 = vmatprep.subr.bf16.mxu0 0
        %2291 = vmatpush1.bf16.msra.mxu0 0
        %2292 = vmatprep.subr.bf16.mxu0 0
        %2293 = vmatpush1.bf16.msra.mxu0 0
        %2294 = vmatprep.subr.bf16.mxu0 0
        %2295 = vmatpush1.bf16.msra.mxu0 0
        %2296 = vmatprep.subr.bf16.mxu0 0
        %2297 = vmatpush1.bf16.msra.mxu0 0
        %2298 = vmatprep.subr.bf16.mxu0 0
        %2299 = vmatpush1.bf16.msra.mxu0 0
        %2300 = vmatprep.mubr.bf16.mxu0 0
        %2301 = vmatmul.mubr.bf16.gmra.mrb[0].mxu0 %v1702
        %v2302 = vpop.f32.mrb[0].mxu0
        %v2303 = vadd.f32 %v2056, %v2302
        %v2304 = vpop.f32.mrb[0].mxu0
        %v2305 = vadd.f32 %v2060, %v2304
        %v2306 = vpop.f32.mrb[0].mxu0
        %v2307 = vadd.f32 %v2056, %v2306
        %v2308 = vpop.f32.mrb[0].mxu0
        %v2309 = vadd.f32 %v2060, %v2308
        %2310 = vdwg.mxu0
        %v2311 = vpack.c.bf16 %v2260, %v2260
        %v2312 = vpack.c.bf16 %v2262, %v2262
        %v2313 = vpack.c.bf16 %v2303, %v2303
        %v2314 = vpack.c.bf16 %v2305, %v2305
        %v2315 = vpack.c.bf16 %v2264, %v2264
        %v2316 = vpack.c.bf16 %v2266, %v2266
        %v2317 = vpack.c.bf16 %v2307, %v2307
        %v2318 = vpack.c.bf16 %v2309, %v2309
        %v2319 = vld [vmem:[%s1175] sm:$0xff]
        %v2320 = vld [vmem:[%s1175 + $0x8] sm:$0xff]
        %v2321 = vld [vmem:[%s1175 + $0x10] sm:$0xff]
        %v2322 = vld [vmem:[%s1175 + $0x18] sm:$0xff]
        %v2323 = vld [vmem:[%s1175 + $0x20] sm:$0xff]
        %v2324 = vld [vmem:[%s1175 + $0x28] sm:$0xff]
        %v2325 = vld [vmem:[%s1175 + $0x30] sm:$0xff]
        %v2326 = vld [vmem:[%s1175 + $0x38] sm:$0xff]
        %v2327 = vld [vmem:[%s1175 + $0x40] sm:$0xff]
        %v2328 = vld [vmem:[%s1175 + $0x48] sm:$0xff]
        %v2329 = vld [vmem:[%s1175 + $0x50] sm:$0xff]
        %v2330 = vld [vmem:[%s1175 + $0x58] sm:$0xff]
        %v2331 = vld [vmem:[%s1175 + $0x60] sm:$0xff]
        %v2332 = vld [vmem:[%s1175 + $0x68] sm:$0xff]
        %v2333 = vld [vmem:[%s1175 + $0x70] sm:$0xff]
        %v2334 = vld [vmem:[%s1175 + $0x78] sm:$0xff]
        %v2335 = vld [vmem:[%s1175 + $0x80] sm:$0xff]
        %v2336 = vld [vmem:[%s1175 + $0x88] sm:$0xff]
        %v2337 = vld [vmem:[%s1175 + $0x90] sm:$0xff]
        %v2338 = vld [vmem:[%s1175 + $0x98] sm:$0xff]
        %v2339 = vld [vmem:[%s1175 + $0xa0] sm:$0xff]
        %v2340 = vld [vmem:[%s1175 + $0xa8] sm:$0xff]
        %v2341 = vld [vmem:[%s1175 + $0xb0] sm:$0xff]
        %v2342 = vld [vmem:[%s1175 + $0xb8] sm:$0xff]
        %v2343 = vld [vmem:[%s1175 + $0xc0] sm:$0xff]
        %v2344 = vld [vmem:[%s1175 + $0xc8] sm:$0xff]
        %v2345 = vld [vmem:[%s1175 + $0xd0] sm:$0xff]
        %v2346 = vld [vmem:[%s1175 + $0xd8] sm:$0xff]
        %v2347 = vld [vmem:[%s1175 + $0xe0] sm:$0xff]
        %v2348 = vld [vmem:[%s1175 + $0xe8] sm:$0xff]
        %v2349 = vld [vmem:[%s1175 + $0xf0] sm:$0xff]
        %v2350 = vld [vmem:[%s1175 + $0xf8] sm:$0xff]
        %v2351 = vld [vmem:[%s1184] sm:$0xf]
        %v2353 = vlaneseq
        %v2354 = vshrl.u32 %v2353, 7
        %v2355 = vsub.s32 0, %v2354
        %v2356 = vrot.slane %v2351, %v2355
        %v2357 = vlaneseq
        %v2358 = vshrl.u32 %v2357, 7
        %v2359 = vsub.s32 1, %v2358
        %v2360 = vrot.slane %v2351, %v2359
        %v2361 = vlaneseq
        %v2362 = vshrl.u32 %v2361, 7
        %v2363 = vsub.s32 2, %v2362
        %v2364 = vrot.slane %v2351, %v2363
        %v2365 = vlaneseq
        %v2366 = vshrl.u32 %v2365, 7
        %v2367 = vsub.s32 3, %v2366
        %v2368 = vrot.slane %v2351, %v2367
        %v2405 = vunpack.c.l.b16 %v2319
        %v2406 = vunpack.c.h.b16 %v2319
        %v2407 = vunpack.c.l.b16 %v2320
        %v2408 = vunpack.c.h.b16 %v2320
        %v2409 = vunpack.c.l.b16 %v2321
        %v2410 = vunpack.c.h.b16 %v2321
        %v2411 = vunpack.c.l.b16 %v2322
        %v2412 = vunpack.c.h.b16 %v2322
        %v2413 = vunpack.c.l.b16 %v2323
        %v2414 = vunpack.c.h.b16 %v2323
        %v2415 = vunpack.c.l.b16 %v2324
        %v2416 = vunpack.c.h.b16 %v2324
        %v2417 = vunpack.c.l.b16 %v2325
        %v2418 = vunpack.c.h.b16 %v2325
        %v2419 = vunpack.c.l.b16 %v2326
        %v2420 = vunpack.c.h.b16 %v2326
        %v2421 = vunpack.c.l.b16 %v2327
        %v2422 = vunpack.c.h.b16 %v2327
        %v2423 = vunpack.c.l.b16 %v2328
        %v2424 = vunpack.c.h.b16 %v2328
        %v2425 = vunpack.c.l.b16 %v2329
        %v2426 = vunpack.c.h.b16 %v2329
        %v2427 = vunpack.c.l.b16 %v2330
        %v2428 = vunpack.c.h.b16 %v2330
        %v2429 = vunpack.c.l.b16 %v2331
        %v2430 = vunpack.c.h.b16 %v2331
        %v2431 = vunpack.c.l.b16 %v2332
        %v2432 = vunpack.c.h.b16 %v2332
        %v2433 = vunpack.c.l.b16 %v2333
        %v2434 = vunpack.c.h.b16 %v2333
        %v2435 = vunpack.c.l.b16 %v2334
        %v2436 = vunpack.c.h.b16 %v2334
        %v2437 = vunpack.c.l.b16 %v2335
        %v2438 = vunpack.c.h.b16 %v2335
        %v2439 = vunpack.c.l.b16 %v2336
        %v2440 = vunpack.c.h.b16 %v2336
        %v2441 = vunpack.c.l.b16 %v2337
        %v2442 = vunpack.c.h.b16 %v2337
        %v2443 = vunpack.c.l.b16 %v2338
        %v2444 = vunpack.c.h.b16 %v2338
        %v2445 = vunpack.c.l.b16 %v2339
        %v2446 = vunpack.c.h.b16 %v2339
        %v2447 = vunpack.c.l.b16 %v2340
        %v2448 = vunpack.c.h.b16 %v2340
        %v2449 = vunpack.c.l.b16 %v2341
        %v2450 = vunpack.c.h.b16 %v2341
        %v2451 = vunpack.c.l.b16 %v2342
        %v2452 = vunpack.c.h.b16 %v2342
        %v2453 = vunpack.c.l.b16 %v2343
        %v2454 = vunpack.c.h.b16 %v2343
        %v2455 = vunpack.c.l.b16 %v2344
        %v2456 = vunpack.c.h.b16 %v2344
        %v2457 = vunpack.c.l.b16 %v2345
        %v2458 = vunpack.c.h.b16 %v2345
        %v2459 = vunpack.c.l.b16 %v2346
        %v2460 = vunpack.c.h.b16 %v2346
        %v2461 = vunpack.c.l.b16 %v2347
        %v2462 = vunpack.c.h.b16 %v2347
        %v2463 = vunpack.c.l.b16 %v2348
        %v2464 = vunpack.c.h.b16 %v2348
        %v2465 = vunpack.c.l.b16 %v2349
        %v2466 = vunpack.c.h.b16 %v2349
        %v2467 = vunpack.c.l.b16 %v2350
        %v2468 = vunpack.c.h.b16 %v2350
        %v2469 = vpack.c.b16 %v2409, %v2405
        %v2470 = vpack.c.b16 %v2410, %v2406
        %v2471 = vpack.c.b16 %v2411, %v2407
        %v2472 = vpack.c.b16 %v2412, %v2408
        %v2473 = vpack.c.b16 %v2417, %v2413
        %v2474 = vpack.c.b16 %v2418, %v2414
        %v2475 = vpack.c.b16 %v2419, %v2415
        %v2476 = vpack.c.b16 %v2420, %v2416
        %v2477 = vpack.c.b16 %v2425, %v2421
        %v2478 = vpack.c.b16 %v2426, %v2422
        %v2479 = vpack.c.b16 %v2427, %v2423
        %v2480 = vpack.c.b16 %v2428, %v2424
        %v2481 = vpack.c.b16 %v2433, %v2429
        %v2482 = vpack.c.b16 %v2434, %v2430
        %v2483 = vpack.c.b16 %v2435, %v2431
        %v2484 = vpack.c.b16 %v2436, %v2432
        %v2485 = vpack.c.b16 %v2441, %v2437
        %v2486 = vpack.c.b16 %v2442, %v2438
        %v2487 = vpack.c.b16 %v2443, %v2439
        %v2488 = vpack.c.b16 %v2444, %v2440
        %v2489 = vpack.c.b16 %v2449, %v2445
        %v2490 = vpack.c.b16 %v2450, %v2446
        %v2491 = vpack.c.b16 %v2451, %v2447
        %v2492 = vpack.c.b16 %v2452, %v2448
        %v2493 = vpack.c.b16 %v2457, %v2453
        %v2494 = vpack.c.b16 %v2458, %v2454
        %v2495 = vpack.c.b16 %v2459, %v2455
        %v2496 = vpack.c.b16 %v2460, %v2456
        %v2497 = vpack.c.b16 %v2465, %v2461
        %v2498 = vpack.c.b16 %v2466, %v2462
        %v2499 = vpack.c.b16 %v2467, %v2463
        %v2500 = vpack.c.b16 %v2468, %v2464
        %2533 = vmatprep.subr.bf16.mxu0 %v2470
        %2534 = vmatpush1.bf16.msra.mxu0 %v2469
        %2535 = vmatprep.subr.bf16.mxu0 %v2474
        %2536 = vmatpush1.bf16.msra.mxu0 %v2473
        %2537 = vmatprep.subr.bf16.mxu0 %v2478
        %2538 = vmatpush1.bf16.msra.mxu0 %v2477
        %2539 = vmatprep.subr.bf16.mxu0 %v2482
        %2540 = vmatpush1.bf16.msra.mxu0 %v2481
        %2541 = vmatprep.subr.bf16.mxu0 %v2486
        %2542 = vmatpush1.bf16.msra.mxu0 %v2485
        %2543 = vmatprep.subr.bf16.mxu0 %v2490
        %2544 = vmatpush1.bf16.msra.mxu0 %v2489
        %2545 = vmatprep.subr.bf16.mxu0 %v2494
        %2546 = vmatpush1.bf16.msra.mxu0 %v2493
        %2547 = vmatprep.subr.bf16.mxu0 %v2498
        %2548 = vmatpush1.bf16.msra.mxu0 %v2497
        %2549 = vmatprep.subr.bf16.mxu0 0
        %2550 = vmatpush1.bf16.msra.mxu0 0
        %2551 = vmatprep.subr.bf16.mxu0 0
        %2552 = vmatpush1.bf16.msra.mxu0 0
        %2553 = vmatprep.subr.bf16.mxu0 0
        %2554 = vmatpush1.bf16.msra.mxu0 0
        %2555 = vmatprep.subr.bf16.mxu0 0
        %2556 = vmatpush1.bf16.msra.mxu0 0
        %2557 = vmatprep.subr.bf16.mxu0 0
        %2558 = vmatpush1.bf16.msra.mxu0 0
        %2559 = vmatprep.subr.bf16.mxu0 0
        %2560 = vmatpush1.bf16.msra.mxu0 0
        %2561 = vmatprep.subr.bf16.mxu0 0
        %2562 = vmatpush1.bf16.msra.mxu0 0
        %2563 = vmatprep.subr.bf16.mxu0 0
        %2564 = vmatpush1.bf16.msra.mxu0 0
        %2565 = vmatprep.mubr.bf16.mxu0 0
        %2566 = vmatmul.mubr.bf16.gmra.mrb[0].mxu0 %v1702
        %v2567 = vpop.f32.mrb[0].mxu0
        %v2568 = vadd.f32 %v2356, %v2567
        %v2569 = vpop.f32.mrb[0].mxu0
        %v2570 = vadd.f32 %v2360, %v2569
        %v2571 = vpop.f32.mrb[0].mxu0
        %v2572 = vadd.f32 %v2356, %v2571
        %v2573 = vpop.f32.mrb[0].mxu0
        %v2574 = vadd.f32 %v2360, %v2573
        %2575 = vdwg.mxu0
        %2576 = vmatprep.subr.bf16.mxu0 %v2472
        %2577 = vmatpush1.bf16.msra.mxu0 %v2471
        %2578 = vmatprep.subr.bf16.mxu0 %v2476
        %2579 = vmatpush1.bf16.msra.mxu0 %v2475
        %2580 = vmatprep.subr.bf16.mxu0 %v2480
        %2581 = vmatpush1.bf16.msra.mxu0 %v2479
        %2582 = vmatprep.subr.bf16.mxu0 %v2484
        %2583 = vmatpush1.bf16.msra.mxu0 %v2483
        %2584 = vmatprep.subr.bf16.mxu0 %v2488
        %2585 = vmatpush1.bf16.msra.mxu0 %v2487
        %2586 = vmatprep.subr.bf16.mxu0 %v2492
        %2587 = vmatpush1.bf16.msra.mxu0 %v2491
        %2588 = vmatprep.subr.bf16.mxu0 %v2496
        %2589 = vmatpush1.bf16.msra.mxu0 %v2495
        %2590 = vmatprep.subr.bf16.mxu0 %v2500
        %2591 = vmatpush1.bf16.msra.mxu0 %v2499
        %2592 = vmatprep.subr.bf16.mxu0 0
        %2593 = vmatpush1.bf16.msra.mxu0 0
        %2594 = vmatprep.subr.bf16.mxu0 0
        %2595 = vmatpush1.bf16.msra.mxu0 0
        %2596 = vmatprep.subr.bf16.mxu0 0
        %2597 = vmatpush1.bf16.msra.mxu0 0
        %2598 = vmatprep.subr.bf16.mxu0 0
        %2599 = vmatpush1.bf16.msra.mxu0 0
        %2600 = vmatprep.subr.bf16.mxu0 0
        %2601 = vmatpush1.bf16.msra.mxu0 0
        %2602 = vmatprep.subr.bf16.mxu0 0
        %2603 = vmatpush1.bf16.msra.mxu0 0
        %2604 = vmatprep.subr.bf16.mxu0 0
        %2605 = vmatpush1.bf16.msra.mxu0 0
        %2606 = vmatprep.subr.bf16.mxu0 0
        %2607 = vmatpush1.bf16.msra.mxu0 0
        %2608 = vmatprep.mubr.bf16.mxu0 0
        %2609 = vmatmul.mubr.bf16.gmra.mrb[0].mxu0 %v1702
        %v2610 = vpop.f32.mrb[0].mxu0
        %v2611 = vadd.f32 %v2364, %v2610
        %v2612 = vpop.f32.mrb[0].mxu0
        %v2613 = vadd.f32 %v2368, %v2612
        %v2614 = vpop.f32.mrb[0].mxu0
        %v2615 = vadd.f32 %v2364, %v2614
        %v2616 = vpop.f32.mrb[0].mxu0
        %v2617 = vadd.f32 %v2368, %v2616
        %2618 = vdwg.mxu0
        %v2619 = vpack.c.bf16 %v2568, %v2568
        %v2620 = vpack.c.bf16 %v2570, %v2570
        %v2621 = vpack.c.bf16 %v2611, %v2611
        %v2622 = vpack.c.bf16 %v2613, %v2613
        %v2623 = vpack.c.bf16 %v2572, %v2572
        %v2624 = vpack.c.bf16 %v2574, %v2574
        %v2625 = vpack.c.bf16 %v2615, %v2615
        %v2626 = vpack.c.bf16 %v2617, %v2617
        %v2627 = vld [vmem:[%s1430] sm:$0x1]
        %v2629 = vlaneseq
        %v2630 = vshrl.u32 %v2629, 7
        %v2631 = vsub.s32 0, %v2630
        %v2632 = vrot.slane %v2627, %v2631
        %2634 = vmatprep.subr.bf16.mxu0 0
        %2635 = vmatpush1.bf16.xpose.msra.mxu0 %v2311
        %2636 = vmatprep.subr.bf16.mxu0 0
        %2637 = vmatpush1.bf16.xpose.msra.mxu0 0
        %2638 = vmatprep.subr.bf16.mxu0 0
        %2639 = vmatpush1.bf16.xpose.msra.mxu0 0
        %2640 = vmatprep.subr.bf16.mxu0 0
        %2641 = vmatpush1.bf16.xpose.msra.mxu0 0
        %2642 = vmatprep.subr.bf16.mxu0 0
        %2643 = vmatpush1.bf16.xpose.msra.mxu0 0
        %2644 = vmatprep.subr.bf16.mxu0 0
        %2645 = vmatpush1.bf16.xpose.msra.mxu0 0
        %2646 = vmatprep.subr.bf16.mxu0 0
        %2647 = vmatpush1.bf16.xpose.msra.mxu0 0
        %2648 = vmatprep.subr.bf16.mxu0 0
        %2649 = vmatpush1.bf16.xpose.msra.mxu0 0
        %2650 = vmatprep.subr.bf16.mxu0 0
        %2651 = vmatpush1.bf16.xpose.msra.mxu0 0
        %2652 = vmatprep.subr.bf16.mxu0 0
        %2653 = vmatpush1.bf16.xpose.msra.mxu0 0
        %2654 = vmatprep.subr.bf16.mxu0 0
        %2655 = vmatpush1.bf16.xpose.msra.mxu0 0
        %2656 = vmatprep.subr.bf16.mxu0 0
        %2657 = vmatpush1.bf16.xpose.msra.mxu0 0
        %2658 = vmatprep.subr.bf16.mxu0 0
        %2659 = vmatpush1.bf16.xpose.msra.mxu0 0
        %2660 = vmatprep.subr.bf16.mxu0 0
        %2661 = vmatpush1.bf16.xpose.msra.mxu0 0
        %2662 = vmatprep.subr.bf16.mxu0 0
        %2663 = vmatpush1.bf16.xpose.msra.mxu0 0
        %2664 = vmatprep.subr.bf16.mxu0 0
        %2665 = vmatpush1.bf16.xpose.msra.mxu0 0
        %2666 = vmatprep.mubr.bf16.mxu0 0
        %2667 = vmatmul.mubr.bf16.gmra.mrb[0].mxu0 %v2003
        %v2668 = vpop.f32.mrb[0].mxu0
        %v2669 = vadd.f32 %v2632, %v2668
        %v2670 = vpop.f32.mrb[0].mxu0
        %v2671 = vpop.f32.mrb[0].mxu0
        %v2672 = vpop.f32.mrb[0].mxu0
        %2673 = vdwg.mxu0
        %2674 = vmatprep.subr.bf16.mxu0 0
        %2675 = vmatpush1.bf16.xpose.msra.mxu0 %v2315
        %2676 = vmatprep.subr.bf16.mxu0 0
        %2677 = vmatpush1.bf16.xpose.msra.mxu0 0
        %2678 = vmatprep.subr.bf16.mxu0 0
        %2679 = vmatpush1.bf16.xpose.msra.mxu0 0
        %2680 = vmatprep.subr.bf16.mxu0 0
        %2681 = vmatpush1.bf16.xpose.msra.mxu0 0
        %2682 = vmatprep.subr.bf16.mxu0 0
        %2683 = vmatpush1.bf16.xpose.msra.mxu0 0
        %2684 = vmatprep.subr.bf16.mxu0 0
        %2685 = vmatpush1.bf16.xpose.msra.mxu0 0
        %2686 = vmatprep.subr.bf16.mxu0 0
        %2687 = vmatpush1.bf16.xpose.msra.mxu0 0
        %2688 = vmatprep.subr.bf16.mxu0 0
        %2689 = vmatpush1.bf16.xpose.msra.mxu0 0
        %2690 = vmatprep.subr.bf16.mxu0 0
        %2691 = vmatpush1.bf16.xpose.msra.mxu0 0
        %2692 = vmatprep.subr.bf16.mxu0 0
        %2693 = vmatpush1.bf16.xpose.msra.mxu0 0
        %2694 = vmatprep.subr.bf16.mxu0 0
        %2695 = vmatpush1.bf16.xpose.msra.mxu0 0
        %2696 = vmatprep.subr.bf16.mxu0 0
        %2697 = vmatpush1.bf16.xpose.msra.mxu0 0
        %2698 = vmatprep.subr.bf16.mxu0 0
        %2699 = vmatpush1.bf16.xpose.msra.mxu0 0
        %2700 = vmatprep.subr.bf16.mxu0 0
        %2701 = vmatpush1.bf16.xpose.msra.mxu0 0
        %2702 = vmatprep.subr.bf16.mxu0 0
        %2703 = vmatpush1.bf16.xpose.msra.mxu0 0
        %2704 = vmatprep.subr.bf16.mxu0 0
        %2705 = vmatpush1.bf16.xpose.msra.mxu0 0
        %2706 = vmatprep.mubr.bf16.mxu0 0
        %2707 = vmatmul.mubr.bf16.gmra.mrb[0].mxu0 %v2007
        %v2708 = vpop.f32.mrb[0].mxu0
        %v2709 = vadd.f32 %v2632, %v2708
        %v2710 = vpop.f32.mrb[0].mxu0
        %v2711 = vpop.f32.mrb[0].mxu0
        %v2712 = vpop.f32.mrb[0].mxu0
        %2713 = vdwg.mxu0
        %vm2714 = vcmask 64512
        %v2715 = vsel %vm2714, %v2669, -inf
        %2716 = vmax.xlane.f32.xlu0 %v2715
        %v2717 = vpop.xlane.xlu0 %2716
        %v2718 = vsel %vm2714, %v2709, -inf
        %2719 = vmax.xlane.f32.xlu0 %v2718
        %v2720 = vpop.xlane.xlu0 %2719
        %v2721 = vsub.f32 %v2669, %v2717
        %v2722 = vsub.f32 %v2709, %v2720
        %v2723 = vmul.f32 %v2721, 1.442695
        %v2724 = vpow.pop %v2723
        %v2725 = vmul.f32 %v2722, 1.442695
        %v2726 = vpow.pop %v2725
        %v2727 = vsel %vm2714, %v2724, 0.0
        %2728 = vadd.xlane.f32.xlu0 %v2727
        %v2729 = vpop.xlane.xlu0 %2728
        %v2730 = vsel %vm2714, %v2726, 0.0
        %2731 = vadd.xlane.f32.xlu0 %v2730
        %v2732 = vpop.xlane.xlu0 %2731
        %v2733 = vrcp.pop %v2729
        %v2734 = vrcp.pop %v2732
        %v2735 = vmul.f32 %v2724, %v2733
        %v2736 = vmul.f32 %v2726, %v2734
        %v2737 = vpack.c.bf16 %v2735, %v2735
        %v2738 = vpack.c.bf16 %v2736, %v2736
        %v2740 = vsel %vm2714, %v2737, 0
        %vm2742 = vcmask 1043456
        %v2744 = vsel %vm2742, %v2619, 0
        %2746 = vmatprep.subr.bf16.mxu0 0
        %2747 = vmatpush1.bf16.msra.mxu0 %v2744
        %2748 = vmatprep.subr.bf16.mxu0 0
        %2749 = vmatpush1.bf16.msra.mxu0 0
        %2750 = vmatprep.subr.bf16.mxu0 0
        %2751 = vmatpush1.bf16.msra.mxu0 0
        %2752 = vmatprep.subr.bf16.mxu0 0
        %2753 = vmatpush1.bf16.msra.mxu0 0
        %2754 = vmatprep.subr.bf16.mxu0 0
        %2755 = vmatpush1.bf16.msra.mxu0 0
        %2756 = vmatprep.subr.bf16.mxu0 0
        %2757 = vmatpush1.bf16.msra.mxu0 0
        %2758 = vmatprep.subr.bf16.mxu0 0
        %2759 = vmatpush1.bf16.msra.mxu0 0
        %2760 = vmatprep.subr.bf16.mxu0 0
        %2761 = vmatpush1.bf16.msra.mxu0 0
        %2762 = vmatprep.subr.bf16.mxu0 0
        %2763 = vmatpush1.bf16.msra.mxu0 0
        %2764 = vmatprep.subr.bf16.mxu0 0
        %2765 = vmatpush1.bf16.msra.mxu0 0
        %2766 = vmatprep.subr.bf16.mxu0 0
        %2767 = vmatpush1.bf16.msra.mxu0 0
        %2768 = vmatprep.subr.bf16.mxu0 0
        %2769 = vmatpush1.bf16.msra.mxu0 0
        %2770 = vmatprep.subr.bf16.mxu0 0
        %2771 = vmatpush1.bf16.msra.mxu0 0
        %2772 = vmatprep.subr.bf16.mxu0 0
        %2773 = vmatpush1.bf16.msra.mxu0 0
        %2774 = vmatprep.subr.bf16.mxu0 0
        %2775 = vmatpush1.bf16.msra.mxu0 0
        %2776 = vmatprep.subr.bf16.mxu0 0
        %2777 = vmatpush1.bf16.msra.mxu0 0
        %2778 = vmatprep.mubr.bf16.mxu0 0
        %2779 = vmatmul.mubr.bf16.gmra.mrb[0].mxu0 %v2740
        %v2780 = vpop.f32.mrb[0].mxu0
        %v2781 = vadd.f32 0.0, %v2780
        %v2782 = vpop.f32.mrb[0].mxu0
        %v2783 = vpop.f32.mrb[0].mxu0
        %v2784 = vpop.f32.mrb[0].mxu0
        %2785 = vdwg.mxu0
        %v2787 = vsel %vm2714, %v2738, 0
        %v2790 = vsel %vm2742, %v2623, 0
        %2792 = vmatprep.subr.bf16.mxu0 0
        %2793 = vmatpush1.bf16.msra.mxu0 %v2790
        %2794 = vmatprep.subr.bf16.mxu0 0
        %2795 = vmatpush1.bf16.msra.mxu0 0
        %2796 = vmatprep.subr.bf16.mxu0 0
        %2797 = vmatpush1.bf16.msra.mxu0 0
        %2798 = vmatprep.subr.bf16.mxu0 0
        %2799 = vmatpush1.bf16.msra.mxu0 0
        %2800 = vmatprep.subr.bf16.mxu0 0
        %2801 = vmatpush1.bf16.msra.mxu0 0
        %2802 = vmatprep.subr.bf16.mxu0 0
        %2803 = vmatpush1.bf16.msra.mxu0 0
        %2804 = vmatprep.subr.bf16.mxu0 0
        %2805 = vmatpush1.bf16.msra.mxu0 0
        %2806 = vmatprep.subr.bf16.mxu0 0
        %2807 = vmatpush1.bf16.msra.mxu0 0
        %2808 = vmatprep.subr.bf16.mxu0 0
        %2809 = vmatpush1.bf16.msra.mxu0 0
        %2810 = vmatprep.subr.bf16.mxu0 0
        %2811 = vmatpush1.bf16.msra.mxu0 0
        %2812 = vmatprep.subr.bf16.mxu0 0
        %2813 = vmatpush1.bf16.msra.mxu0 0
        %2814 = vmatprep.subr.bf16.mxu0 0
        %2815 = vmatpush1.bf16.msra.mxu0 0
        %2816 = vmatprep.subr.bf16.mxu0 0
        %2817 = vmatpush1.bf16.msra.mxu0 0
        %2818 = vmatprep.subr.bf16.mxu0 0
        %2819 = vmatpush1.bf16.msra.mxu0 0
        %2820 = vmatprep.subr.bf16.mxu0 0
        %2821 = vmatpush1.bf16.msra.mxu0 0
        %2822 = vmatprep.subr.bf16.mxu0 0
        %2823 = vmatpush1.bf16.msra.mxu0 0
        %2824 = vmatprep.mubr.bf16.mxu0 0
        %2825 = vmatmul.mubr.bf16.gmra.mrb[0].mxu0 %v2787
        %v2826 = vpop.f32.mrb[0].mxu0
        %v2827 = vadd.f32 0.0, %v2826
        %v2828 = vpop.f32.mrb[0].mxu0
        %v2829 = vpop.f32.mrb[0].mxu0
        %v2830 = vpop.f32.mrb[0].mxu0
        %2831 = vdwg.mxu0
        %v2832 = vpack.c.bf16 %v2827, %v2781
        %2833 = vst [vmem:[#allocation2] sm:$0xff] %v2832
        %2834 = vmatprep.subr.bf16.mxu0 0
        %2835 = vmatpush1.bf16.xpose.msra.mxu0 %v2312
        %2836 = vmatprep.subr.bf16.mxu0 0
        %2837 = vmatpush1.bf16.xpose.msra.mxu0 0
        %2838 = vmatprep.subr.bf16.mxu0 0
        %2839 = vmatpush1.bf16.xpose.msra.mxu0 0
        %2840 = vmatprep.subr.bf16.mxu0 0
        %2841 = vmatpush1.bf16.xpose.msra.mxu0 0
        %2842 = vmatprep.subr.bf16.mxu0 0
        %2843 = vmatpush1.bf16.xpose.msra.mxu0 0
        %2844 = vmatprep.subr.bf16.mxu0 0
        %2845 = vmatpush1.bf16.xpose.msra.mxu0 0
        %2846 = vmatprep.subr.bf16.mxu0 0
        %2847 = vmatpush1.bf16.xpose.msra.mxu0 0
        %2848 = vmatprep.subr.bf16.mxu0 0
        %2849 = vmatpush1.bf16.xpose.msra.mxu0 0
        %2850 = vmatprep.subr.bf16.mxu0 0
        %2851 = vmatpush1.bf16.xpose.msra.mxu0 0
        %2852 = vmatprep.subr.bf16.mxu0 0
        %2853 = vmatpush1.bf16.xpose.msra.mxu0 0
        %2854 = vmatprep.subr.bf16.mxu0 0
        %2855 = vmatpush1.bf16.xpose.msra.mxu0 0
        %2856 = vmatprep.subr.bf16.mxu0 0
        %2857 = vmatpush1.bf16.xpose.msra.mxu0 0
        %2858 = vmatprep.subr.bf16.mxu0 0
        %2859 = vmatpush1.bf16.xpose.msra.mxu0 0
        %2860 = vmatprep.subr.bf16.mxu0 0
        %2861 = vmatpush1.bf16.xpose.msra.mxu0 0
        %2862 = vmatprep.subr.bf16.mxu0 0
        %2863 = vmatpush1.bf16.xpose.msra.mxu0 0
        %2864 = vmatprep.subr.bf16.mxu0 0
        %2865 = vmatpush1.bf16.xpose.msra.mxu0 0
        %2866 = vmatprep.mubr.bf16.mxu0 0
        %2867 = vmatmul.mubr.bf16.gmra.mrb[0].mxu0 %v2004
        %v2868 = vpop.f32.mrb[0].mxu0
        %v2869 = vadd.f32 %v2632, %v2868
        %v2870 = vpop.f32.mrb[0].mxu0
        %v2871 = vpop.f32.mrb[0].mxu0
        %v2872 = vpop.f32.mrb[0].mxu0
        %2873 = vdwg.mxu0
        %2874 = vmatprep.subr.bf16.mxu0 0
        %2875 = vmatpush1.bf16.xpose.msra.mxu0 %v2316
        %2876 = vmatprep.subr.bf16.mxu0 0
        %2877 = vmatpush1.bf16.xpose.msra.mxu0 0
        %2878 = vmatprep.subr.bf16.mxu0 0
        %2879 = vmatpush1.bf16.xpose.msra.mxu0 0
        %2880 = vmatprep.subr.bf16.mxu0 0
        %2881 = vmatpush1.bf16.xpose.msra.mxu0 0
        %2882 = vmatprep.subr.bf16.mxu0 0
        %2883 = vmatpush1.bf16.xpose.msra.mxu0 0
        %2884 = vmatprep.subr.bf16.mxu0 0
        %2885 = vmatpush1.bf16.xpose.msra.mxu0 0
        %2886 = vmatprep.subr.bf16.mxu0 0
        %2887 = vmatpush1.bf16.xpose.msra.mxu0 0
        %2888 = vmatprep.subr.bf16.mxu0 0
        %2889 = vmatpush1.bf16.xpose.msra.mxu0 0
        %2890 = vmatprep.subr.bf16.mxu0 0
        %2891 = vmatpush1.bf16.xpose.msra.mxu0 0
        %2892 = vmatprep.subr.bf16.mxu0 0
        %2893 = vmatpush1.bf16.xpose.msra.mxu0 0
        %2894 = vmatprep.subr.bf16.mxu0 0
        %2895 = vmatpush1.bf16.xpose.msra.mxu0 0
        %2896 = vmatprep.subr.bf16.mxu0 0
        %2897 = vmatpush1.bf16.xpose.msra.mxu0 0
        %2898 = vmatprep.subr.bf16.mxu0 0
        %2899 = vmatpush1.bf16.xpose.msra.mxu0 0
        %2900 = vmatprep.subr.bf16.mxu0 0
        %2901 = vmatpush1.bf16.xpose.msra.mxu0 0
        %2902 = vmatprep.subr.bf16.mxu0 0
        %2903 = vmatpush1.bf16.xpose.msra.mxu0 0
        %2904 = vmatprep.subr.bf16.mxu0 0
        %2905 = vmatpush1.bf16.xpose.msra.mxu0 0
        %2906 = vmatprep.mubr.bf16.mxu0 0
        %2907 = vmatmul.mubr.bf16.gmra.mrb[0].mxu0 %v2008
        %v2908 = vpop.f32.mrb[0].mxu0
        %v2909 = vadd.f32 %v2632, %v2908
        %v2910 = vpop.f32.mrb[0].mxu0
        %v2911 = vpop.f32.mrb[0].mxu0
        %v2912 = vpop.f32.mrb[0].mxu0
        %2913 = vdwg.mxu0
        %v2914 = vsel %vm2714, %v2869, -inf
        %2915 = vmax.xlane.f32.xlu0 %v2914
        %v2916 = vpop.xlane.xlu0 %2915
        %v2917 = vsel %vm2714, %v2909, -inf
        %2918 = vmax.xlane.f32.xlu0 %v2917
        %v2919 = vpop.xlane.xlu0 %2918
        %v2920 = vsub.f32 %v2869, %v2916
        %v2921 = vsub.f32 %v2909, %v2919
        %v2922 = vmul.f32 %v2920, 1.442695
        %v2923 = vpow.pop %v2922
        %v2924 = vmul.f32 %v2921, 1.442695
        %v2925 = vpow.pop %v2924
        %v2926 = vsel %vm2714, %v2923, 0.0
        %2927 = vadd.xlane.f32.xlu0 %v2926
        %v2928 = vpop.xlane.xlu0 %2927
        %v2929 = vsel %vm2714, %v2925, 0.0
        %2930 = vadd.xlane.f32.xlu0 %v2929
        %v2931 = vpop.xlane.xlu0 %2930
        %v2932 = vrcp.pop %v2928
        %v2933 = vrcp.pop %v2931
        %v2934 = vmul.f32 %v2923, %v2932
        %v2935 = vmul.f32 %v2925, %v2933
        %v2936 = vpack.c.bf16 %v2934, %v2934
        %v2937 = vpack.c.bf16 %v2935, %v2935
        %v2939 = vsel %vm2714, %v2936, 0
        %v2942 = vsel %vm2742, %v2620, 0
        %2944 = vmatprep.subr.bf16.mxu0 0
        %2945 = vmatpush1.bf16.msra.mxu0 %v2942
        %2946 = vmatprep.subr.bf16.mxu0 0
        %2947 = vmatpush1.bf16.msra.mxu0 0
        %2948 = vmatprep.subr.bf16.mxu0 0
        %2949 = vmatpush1.bf16.msra.mxu0 0
        %2950 = vmatprep.subr.bf16.mxu0 0
        %2951 = vmatpush1.bf16.msra.mxu0 0
        %2952 = vmatprep.subr.bf16.mxu0 0
        %2953 = vmatpush1.bf16.msra.mxu0 0
        %2954 = vmatprep.subr.bf16.mxu0 0
        %2955 = vmatpush1.bf16.msra.mxu0 0
        %2956 = vmatprep.subr.bf16.mxu0 0
        %2957 = vmatpush1.bf16.msra.mxu0 0
        %2958 = vmatprep.subr.bf16.mxu0 0
        %2959 = vmatpush1.bf16.msra.mxu0 0
        %2960 = vmatprep.subr.bf16.mxu0 0
        %2961 = vmatpush1.bf16.msra.mxu0 0
        %2962 = vmatprep.subr.bf16.mxu0 0
        %2963 = vmatpush1.bf16.msra.mxu0 0
        %2964 = vmatprep.subr.bf16.mxu0 0
        %2965 = vmatpush1.bf16.msra.mxu0 0
        %2966 = vmatprep.subr.bf16.mxu0 0
        %2967 = vmatpush1.bf16.msra.mxu0 0
        %2968 = vmatprep.subr.bf16.mxu0 0
        %2969 = vmatpush1.bf16.msra.mxu0 0
        %2970 = vmatprep.subr.bf16.mxu0 0
        %2971 = vmatpush1.bf16.msra.mxu0 0
        %2972 = vmatprep.subr.bf16.mxu0 0
        %2973 = vmatpush1.bf16.msra.mxu0 0
        %2974 = vmatprep.subr.bf16.mxu0 0
        %2975 = vmatpush1.bf16.msra.mxu0 0
        %2976 = vmatprep.mubr.bf16.mxu0 0
        %2977 = vmatmul.mubr.bf16.gmra.mrb[0].mxu0 %v2939
        %v2978 = vpop.f32.mrb[0].mxu0
        %v2979 = vadd.f32 0.0, %v2978
        %v2980 = vpop.f32.mrb[0].mxu0
        %v2981 = vpop.f32.mrb[0].mxu0
        %v2982 = vpop.f32.mrb[0].mxu0
        %2983 = vdwg.mxu0
        %v2985 = vsel %vm2714, %v2937, 0
        %v2988 = vsel %vm2742, %v2624, 0
        %2990 = vmatprep.subr.bf16.mxu0 0
        %2991 = vmatpush1.bf16.msra.mxu0 %v2988
        %2992 = vmatprep.subr.bf16.mxu0 0
        %2993 = vmatpush1.bf16.msra.mxu0 0
        %2994 = vmatprep.subr.bf16.mxu0 0
        %2995 = vmatpush1.bf16.msra.mxu0 0
        %2996 = vmatprep.subr.bf16.mxu0 0
        %2997 = vmatpush1.bf16.msra.mxu0 0
        %2998 = vmatprep.subr.bf16.mxu0 0
        %2999 = vmatpush1.bf16.msra.mxu0 0
        %3000 = vmatprep.subr.bf16.mxu0 0
        %3001 = vmatpush1.bf16.msra.mxu0 0
        %3002 = vmatprep.subr.bf16.mxu0 0
        %3003 = vmatpush1.bf16.msra.mxu0 0
        %3004 = vmatprep.subr.bf16.mxu0 0
        %3005 = vmatpush1.bf16.msra.mxu0 0
        %3006 = vmatprep.subr.bf16.mxu0 0
        %3007 = vmatpush1.bf16.msra.mxu0 0
        %3008 = vmatprep.subr.bf16.mxu0 0
        %3009 = vmatpush1.bf16.msra.mxu0 0
        %3010 = vmatprep.subr.bf16.mxu0 0
        %3011 = vmatpush1.bf16.msra.mxu0 0
        %3012 = vmatprep.subr.bf16.mxu0 0
        %3013 = vmatpush1.bf16.msra.mxu0 0
        %3014 = vmatprep.subr.bf16.mxu0 0
        %3015 = vmatpush1.bf16.msra.mxu0 0
        %3016 = vmatprep.subr.bf16.mxu0 0
        %3017 = vmatpush1.bf16.msra.mxu0 0
        %3018 = vmatprep.subr.bf16.mxu0 0
        %3019 = vmatpush1.bf16.msra.mxu0 0
        %3020 = vmatprep.subr.bf16.mxu0 0
        %3021 = vmatpush1.bf16.msra.mxu0 0
        %3022 = vmatprep.mubr.bf16.mxu0 0
        %3023 = vmatmul.mubr.bf16.gmra.mrb[0].mxu0 %v2985
        %v3024 = vpop.f32.mrb[0].mxu0
        %v3025 = vadd.f32 0.0, %v3024
        %v3026 = vpop.f32.mrb[0].mxu0
        %v3027 = vpop.f32.mrb[0].mxu0
        %v3028 = vpop.f32.mrb[0].mxu0
        %3029 = vdwg.mxu0
        %v3030 = vpack.c.bf16 %v3025, %v2979
        %3031 = vst [vmem:[#allocation2 + $0x8] sm:$0xff] %v3030
        %3032 = vmatprep.subr.bf16.mxu0 0
        %3033 = vmatpush1.bf16.xpose.msra.mxu0 %v2313
        %3034 = vmatprep.subr.bf16.mxu0 0
        %3035 = vmatpush1.bf16.xpose.msra.mxu0 0
        %3036 = vmatprep.subr.bf16.mxu0 0
        %3037 = vmatpush1.bf16.xpose.msra.mxu0 0
        %3038 = vmatprep.subr.bf16.mxu0 0
        %3039 = vmatpush1.bf16.xpose.msra.mxu0 0
        %3040 = vmatprep.subr.bf16.mxu0 0
        %3041 = vmatpush1.bf16.xpose.msra.mxu0 0
        %3042 = vmatprep.subr.bf16.mxu0 0
        %3043 = vmatpush1.bf16.xpose.msra.mxu0 0
        %3044 = vmatprep.subr.bf16.mxu0 0
        %3045 = vmatpush1.bf16.xpose.msra.mxu0 0
        %3046 = vmatprep.subr.bf16.mxu0 0
        %3047 = vmatpush1.bf16.xpose.msra.mxu0 0
        %3048 = vmatprep.subr.bf16.mxu0 0
        %3049 = vmatpush1.bf16.xpose.msra.mxu0 0
        %3050 = vmatprep.subr.bf16.mxu0 0
        %3051 = vmatpush1.bf16.xpose.msra.mxu0 0
        %3052 = vmatprep.subr.bf16.mxu0 0
        %3053 = vmatpush1.bf16.xpose.msra.mxu0 0
        %3054 = vmatprep.subr.bf16.mxu0 0
        %3055 = vmatpush1.bf16.xpose.msra.mxu0 0
        %3056 = vmatprep.subr.bf16.mxu0 0
        %3057 = vmatpush1.bf16.xpose.msra.mxu0 0
        %3058 = vmatprep.subr.bf16.mxu0 0
        %3059 = vmatpush1.bf16.xpose.msra.mxu0 0
        %3060 = vmatprep.subr.bf16.mxu0 0
        %3061 = vmatpush1.bf16.xpose.msra.mxu0 0
        %3062 = vmatprep.subr.bf16.mxu0 0
        %3063 = vmatpush1.bf16.xpose.msra.mxu0 0
        %3064 = vmatprep.mubr.bf16.mxu0 0
        %3065 = vmatmul.mubr.bf16.gmra.mrb[0].mxu0 %v2005
        %v3066 = vpop.f32.mrb[0].mxu0
        %v3067 = vadd.f32 %v2632, %v3066
        %v3068 = vpop.f32.mrb[0].mxu0
        %v3069 = vpop.f32.mrb[0].mxu0
        %v3070 = vpop.f32.mrb[0].mxu0
        %3071 = vdwg.mxu0
        %3072 = vmatprep.subr.bf16.mxu0 0
        %3073 = vmatpush1.bf16.xpose.msra.mxu0 %v2317
        %3074 = vmatprep.subr.bf16.mxu0 0
        %3075 = vmatpush1.bf16.xpose.msra.mxu0 0
        %3076 = vmatprep.subr.bf16.mxu0 0
        %3077 = vmatpush1.bf16.xpose.msra.mxu0 0
        %3078 = vmatprep.subr.bf16.mxu0 0
        %3079 = vmatpush1.bf16.xpose.msra.mxu0 0
        %3080 = vmatprep.subr.bf16.mxu0 0
        %3081 = vmatpush1.bf16.xpose.msra.mxu0 0
        %3082 = vmatprep.subr.bf16.mxu0 0
        %3083 = vmatpush1.bf16.xpose.msra.mxu0 0
        %3084 = vmatprep.subr.bf16.mxu0 0
        %3085 = vmatpush1.bf16.xpose.msra.mxu0 0
        %3086 = vmatprep.subr.bf16.mxu0 0
        %3087 = vmatpush1.bf16.xpose.msra.mxu0 0
        %3088 = vmatprep.subr.bf16.mxu0 0
        %3089 = vmatpush1.bf16.xpose.msra.mxu0 0
        %3090 = vmatprep.subr.bf16.mxu0 0
        %3091 = vmatpush1.bf16.xpose.msra.mxu0 0
        %3092 = vmatprep.subr.bf16.mxu0 0
        %3093 = vmatpush1.bf16.xpose.msra.mxu0 0
        %3094 = vmatprep.subr.bf16.mxu0 0
        %3095 = vmatpush1.bf16.xpose.msra.mxu0 0
        %3096 = vmatprep.subr.bf16.mxu0 0
        %3097 = vmatpush1.bf16.xpose.msra.mxu0 0
        %3098 = vmatprep.subr.bf16.mxu0 0
        %3099 = vmatpush1.bf16.xpose.msra.mxu0 0
        %3100 = vmatprep.subr.bf16.mxu0 0
        %3101 = vmatpush1.bf16.xpose.msra.mxu0 0
        %3102 = vmatprep.subr.bf16.mxu0 0
        %3103 = vmatpush1.bf16.xpose.msra.mxu0 0
        %3104 = vmatprep.mubr.bf16.mxu0 0
        %3105 = vmatmul.mubr.bf16.gmra.mrb[0].mxu0 %v2009
        %v3106 = vpop.f32.mrb[0].mxu0
        %v3107 = vadd.f32 %v2632, %v3106
        %v3108 = vpop.f32.mrb[0].mxu0
        %v3109 = vpop.f32.mrb[0].mxu0
        %v3110 = vpop.f32.mrb[0].mxu0
        %3111 = vdwg.mxu0
        %v3112 = vsel %vm2714, %v3067, -inf
        %3113 = vmax.xlane.f32.xlu0 %v3112
        %v3114 = vpop.xlane.xlu0 %3113
        %v3115 = vsel %vm2714, %v3107, -inf
        %3116 = vmax.xlane.f32.xlu0 %v3115
        %v3117 = vpop.xlane.xlu0 %3116
        %v3118 = vsub.f32 %v3067, %v3114
        %v3119 = vsub.f32 %v3107, %v3117
        %v3120 = vmul.f32 %v3118, 1.442695
        %v3121 = vpow.pop %v3120
        %v3122 = vmul.f32 %v3119, 1.442695
        %v3123 = vpow.pop %v3122
        %v3124 = vsel %vm2714, %v3121, 0.0
        %3125 = vadd.xlane.f32.xlu0 %v3124
        %v3126 = vpop.xlane.xlu0 %3125
        %v3127 = vsel %vm2714, %v3123, 0.0
        %3128 = vadd.xlane.f32.xlu0 %v3127
        %v3129 = vpop.xlane.xlu0 %3128
        %v3130 = vrcp.pop %v3126
        %v3131 = vrcp.pop %v3129
        %v3132 = vmul.f32 %v3121, %v3130
        %v3133 = vmul.f32 %v3123, %v3131
        %v3134 = vpack.c.bf16 %v3132, %v3132
        %v3135 = vpack.c.bf16 %v3133, %v3133
        %v3137 = vsel %vm2714, %v3134, 0
        %v3140 = vsel %vm2742, %v2621, 0
        %3142 = vmatprep.subr.bf16.mxu0 0
        %3143 = vmatpush1.bf16.msra.mxu0 %v3140
        %3144 = vmatprep.subr.bf16.mxu0 0
        %3145 = vmatpush1.bf16.msra.mxu0 0
        %3146 = vmatprep.subr.bf16.mxu0 0
        %3147 = vmatpush1.bf16.msra.mxu0 0
        %3148 = vmatprep.subr.bf16.mxu0 0
        %3149 = vmatpush1.bf16.msra.mxu0 0
        %3150 = vmatprep.subr.bf16.mxu0 0
        %3151 = vmatpush1.bf16.msra.mxu0 0
        %3152 = vmatprep.subr.bf16.mxu0 0
        %3153 = vmatpush1.bf16.msra.mxu0 0
        %3154 = vmatprep.subr.bf16.mxu0 0
        %3155 = vmatpush1.bf16.msra.mxu0 0
        %3156 = vmatprep.subr.bf16.mxu0 0
        %3157 = vmatpush1.bf16.msra.mxu0 0
        %3158 = vmatprep.subr.bf16.mxu0 0
        %3159 = vmatpush1.bf16.msra.mxu0 0
        %3160 = vmatprep.subr.bf16.mxu0 0
        %3161 = vmatpush1.bf16.msra.mxu0 0
        %3162 = vmatprep.subr.bf16.mxu0 0
        %3163 = vmatpush1.bf16.msra.mxu0 0
        %3164 = vmatprep.subr.bf16.mxu0 0
        %3165 = vmatpush1.bf16.msra.mxu0 0
        %3166 = vmatprep.subr.bf16.mxu0 0
        %3167 = vmatpush1.bf16.msra.mxu0 0
        %3168 = vmatprep.subr.bf16.mxu0 0
        %3169 = vmatpush1.bf16.msra.mxu0 0
        %3170 = vmatprep.subr.bf16.mxu0 0
        %3171 = vmatpush1.bf16.msra.mxu0 0
        %3172 = vmatprep.subr.bf16.mxu0 0
        %3173 = vmatpush1.bf16.msra.mxu0 0
        %3174 = vmatprep.mubr.bf16.mxu0 0
        %3175 = vmatmul.mubr.bf16.gmra.mrb[0].mxu0 %v3137
        %v3176 = vpop.f32.mrb[0].mxu0
        %v3177 = vadd.f32 0.0, %v3176
        %v3178 = vpop.f32.mrb[0].mxu0
        %v3179 = vpop.f32.mrb[0].mxu0
        %v3180 = vpop.f32.mrb[0].mxu0
        %3181 = vdwg.mxu0
        %v3183 = vsel %vm2714, %v3135, 0
        %v3186 = vsel %vm2742, %v2625, 0
        %3188 = vmatprep.subr.bf16.mxu0 0
        %3189 = vmatpush1.bf16.msra.mxu0 %v3186
        %3190 = vmatprep.subr.bf16.mxu0 0
        %3191 = vmatpush1.bf16.msra.mxu0 0
        %3192 = vmatprep.subr.bf16.mxu0 0
        %3193 = vmatpush1.bf16.msra.mxu0 0
        %3194 = vmatprep.subr.bf16.mxu0 0
        %3195 = vmatpush1.bf16.msra.mxu0 0
        %3196 = vmatprep.subr.bf16.mxu0 0
        %3197 = vmatpush1.bf16.msra.mxu0 0
        %3198 = vmatprep.subr.bf16.mxu0 0
        %3199 = vmatpush1.bf16.msra.mxu0 0
        %3200 = vmatprep.subr.bf16.mxu0 0
        %3201 = vmatpush1.bf16.msra.mxu0 0
        %3202 = vmatprep.subr.bf16.mxu0 0
        %3203 = vmatpush1.bf16.msra.mxu0 0
        %3204 = vmatprep.subr.bf16.mxu0 0
        %3205 = vmatpush1.bf16.msra.mxu0 0
        %3206 = vmatprep.subr.bf16.mxu0 0
        %3207 = vmatpush1.bf16.msra.mxu0 0
        %3208 = vmatprep.subr.bf16.mxu0 0
        %3209 = vmatpush1.bf16.msra.mxu0 0
        %3210 = vmatprep.subr.bf16.mxu0 0
        %3211 = vmatpush1.bf16.msra.mxu0 0
        %3212 = vmatprep.subr.bf16.mxu0 0
        %3213 = vmatpush1.bf16.msra.mxu0 0
        %3214 = vmatprep.subr.bf16.mxu0 0
        %3215 = vmatpush1.bf16.msra.mxu0 0
        %3216 = vmatprep.subr.bf16.mxu0 0
        %3217 = vmatpush1.bf16.msra.mxu0 0
        %3218 = vmatprep.subr.bf16.mxu0 0
        %3219 = vmatpush1.bf16.msra.mxu0 0
        %3220 = vmatprep.mubr.bf16.mxu0 0
        %3221 = vmatmul.mubr.bf16.gmra.mrb[0].mxu0 %v3183
        %v3222 = vpop.f32.mrb[0].mxu0
        %v3223 = vadd.f32 0.0, %v3222
        %v3224 = vpop.f32.mrb[0].mxu0
        %v3225 = vpop.f32.mrb[0].mxu0
        %v3226 = vpop.f32.mrb[0].mxu0
        %3227 = vdwg.mxu0
        %v3228 = vpack.c.bf16 %v3223, %v3177
        %3229 = vst [vmem:[#allocation2 + $0x10] sm:$0xff] %v3228
        %3230 = vmatprep.subr.bf16.mxu0 0
        %3231 = vmatpush1.bf16.xpose.msra.mxu0 %v2314
        %3232 = vmatprep.subr.bf16.mxu0 0
        %3233 = vmatpush1.bf16.xpose.msra.mxu0 0
        %3234 = vmatprep.subr.bf16.mxu0 0
        %3235 = vmatpush1.bf16.xpose.msra.mxu0 0
        %3236 = vmatprep.subr.bf16.mxu0 0
        %3237 = vmatpush1.bf16.xpose.msra.mxu0 0
        %3238 = vmatprep.subr.bf16.mxu0 0
        %3239 = vmatpush1.bf16.xpose.msra.mxu0 0
        %3240 = vmatprep.subr.bf16.mxu0 0
        %3241 = vmatpush1.bf16.xpose.msra.mxu0 0
        %3242 = vmatprep.subr.bf16.mxu0 0
        %3243 = vmatpush1.bf16.xpose.msra.mxu0 0
        %3244 = vmatprep.subr.bf16.mxu0 0
        %3245 = vmatpush1.bf16.xpose.msra.mxu0 0
        %3246 = vmatprep.subr.bf16.mxu0 0
        %3247 = vmatpush1.bf16.xpose.msra.mxu0 0
        %3248 = vmatprep.subr.bf16.mxu0 0
        %3249 = vmatpush1.bf16.xpose.msra.mxu0 0
        %3250 = vmatprep.subr.bf16.mxu0 0
        %3251 = vmatpush1.bf16.xpose.msra.mxu0 0
        %3252 = vmatprep.subr.bf16.mxu0 0
        %3253 = vmatpush1.bf16.xpose.msra.mxu0 0
        %3254 = vmatprep.subr.bf16.mxu0 0
        %3255 = vmatpush1.bf16.xpose.msra.mxu0 0
        %3256 = vmatprep.subr.bf16.mxu0 0
        %3257 = vmatpush1.bf16.xpose.msra.mxu0 0
        %3258 = vmatprep.subr.bf16.mxu0 0
        %3259 = vmatpush1.bf16.xpose.msra.mxu0 0
        %3260 = vmatprep.subr.bf16.mxu0 0
        %3261 = vmatpush1.bf16.xpose.msra.mxu0 0
        %3262 = vmatprep.mubr.bf16.mxu0 0
        %3263 = vmatmul.mubr.bf16.gmra.mrb[0].mxu0 %v2006
        %v3264 = vpop.f32.mrb[0].mxu0
        %v3265 = vadd.f32 %v2632, %v3264
        %v3266 = vpop.f32.mrb[0].mxu0
        %v3267 = vpop.f32.mrb[0].mxu0
        %v3268 = vpop.f32.mrb[0].mxu0
        %3269 = vdwg.mxu0
        %3270 = vmatprep.subr.bf16.mxu0 0
        %3271 = vmatpush1.bf16.xpose.msra.mxu0 %v2318
        %3272 = vmatprep.subr.bf16.mxu0 0
        %3273 = vmatpush1.bf16.xpose.msra.mxu0 0
        %3274 = vmatprep.subr.bf16.mxu0 0
        %3275 = vmatpush1.bf16.xpose.msra.mxu0 0
        %3276 = vmatprep.subr.bf16.mxu0 0
        %3277 = vmatpush1.bf16.xpose.msra.mxu0 0
        %3278 = vmatprep.subr.bf16.mxu0 0
        %3279 = vmatpush1.bf16.xpose.msra.mxu0 0
        %3280 = vmatprep.subr.bf16.mxu0 0
        %3281 = vmatpush1.bf16.xpose.msra.mxu0 0
        %3282 = vmatprep.subr.bf16.mxu0 0
        %3283 = vmatpush1.bf16.xpose.msra.mxu0 0
        %3284 = vmatprep.subr.bf16.mxu0 0
        %3285 = vmatpush1.bf16.xpose.msra.mxu0 0
        %3286 = vmatprep.subr.bf16.mxu0 0
        %3287 = vmatpush1.bf16.xpose.msra.mxu0 0
        %3288 = vmatprep.subr.bf16.mxu0 0
        %3289 = vmatpush1.bf16.xpose.msra.mxu0 0
        %3290 = vmatprep.subr.bf16.mxu0 0
        %3291 = vmatpush1.bf16.xpose.msra.mxu0 0
        %3292 = vmatprep.subr.bf16.mxu0 0
        %3293 = vmatpush1.bf16.xpose.msra.mxu0 0
        %3294 = vmatprep.subr.bf16.mxu0 0
        %3295 = vmatpush1.bf16.xpose.msra.mxu0 0
        %3296 = vmatprep.subr.bf16.mxu0 0
        %3297 = vmatpush1.bf16.xpose.msra.mxu0 0
        %3298 = vmatprep.subr.bf16.mxu0 0
        %3299 = vmatpush1.bf16.xpose.msra.mxu0 0
        %3300 = vmatprep.subr.bf16.mxu0 0
        %3301 = vmatpush1.bf16.xpose.msra.mxu0 0
        %3302 = vmatprep.mubr.bf16.mxu0 0
        %3303 = vmatmul.mubr.bf16.gmra.mrb[0].mxu0 %v2010
        %v3304 = vpop.f32.mrb[0].mxu0
        %v3305 = vadd.f32 %v2632, %v3304
        %v3306 = vpop.f32.mrb[0].mxu0
        %v3307 = vpop.f32.mrb[0].mxu0
        %v3308 = vpop.f32.mrb[0].mxu0
        %3309 = vdwg.mxu0
        %v3310 = vsel %vm2714, %v3265, -inf
        %3311 = vmax.xlane.f32.xlu0 %v3310
        %v3312 = vpop.xlane.xlu0 %3311
        %v3313 = vsel %vm2714, %v3305, -inf
        %3314 = vmax.xlane.f32.xlu0 %v3313
        %v3315 = vpop.xlane.xlu0 %3314
        %v3316 = vsub.f32 %v3265, %v3312
        %v3317 = vsub.f32 %v3305, %v3315
        %v3318 = vmul.f32 %v3316, 1.442695
        %v3319 = vpow.pop %v3318
        %v3320 = vmul.f32 %v3317, 1.442695
        %v3321 = vpow.pop %v3320
        %v3322 = vsel %vm2714, %v3319, 0.0
        %3323 = vadd.xlane.f32.xlu0 %v3322
        %v3324 = vpop.xlane.xlu0 %3323
        %v3325 = vsel %vm2714, %v3321, 0.0
        %3326 = vadd.xlane.f32.xlu0 %v3325
        %v3327 = vpop.xlane.xlu0 %3326
        %v3328 = vrcp.pop %v3324
        %v3329 = vrcp.pop %v3327
        %v3330 = vmul.f32 %v3319, %v3328
        %v3331 = vmul.f32 %v3321, %v3329
        %v3332 = vpack.c.bf16 %v3330, %v3330
        %v3333 = vpack.c.bf16 %v3331, %v3331
        %v3335 = vsel %vm2714, %v3332, 0
        %v3338 = vsel %vm2742, %v2622, 0
        %3340 = vmatprep.subr.bf16.mxu0 0
        %3341 = vmatpush1.bf16.msra.mxu0 %v3338
        %3342 = vmatprep.subr.bf16.mxu0 0
        %3343 = vmatpush1.bf16.msra.mxu0 0
        %3344 = vmatprep.subr.bf16.mxu0 0
        %3345 = vmatpush1.bf16.msra.mxu0 0
        %3346 = vmatprep.subr.bf16.mxu0 0
        %3347 = vmatpush1.bf16.msra.mxu0 0
        %3348 = vmatprep.subr.bf16.mxu0 0
        %3349 = vmatpush1.bf16.msra.mxu0 0
        %3350 = vmatprep.subr.bf16.mxu0 0
        %3351 = vmatpush1.bf16.msra.mxu0 0
        %3352 = vmatprep.subr.bf16.mxu0 0
        %3353 = vmatpush1.bf16.msra.mxu0 0
        %3354 = vmatprep.subr.bf16.mxu0 0
        %3355 = vmatpush1.bf16.msra.mxu0 0
        %3356 = vmatprep.subr.bf16.mxu0 0
        %3357 = vmatpush1.bf16.msra.mxu0 0
        %3358 = vmatprep.subr.bf16.mxu0 0
        %3359 = vmatpush1.bf16.msra.mxu0 0
        %3360 = vmatprep.subr.bf16.mxu0 0
        %3361 = vmatpush1.bf16.msra.mxu0 0
        %3362 = vmatprep.subr.bf16.mxu0 0
        %3363 = vmatpush1.bf16.msra.mxu0 0
        %3364 = vmatprep.subr.bf16.mxu0 0
        %3365 = vmatpush1.bf16.msra.mxu0 0
        %3366 = vmatprep.subr.bf16.mxu0 0
        %3367 = vmatpush1.bf16.msra.mxu0 0
        %3368 = vmatprep.subr.bf16.mxu0 0
        %3369 = vmatpush1.bf16.msra.mxu0 0
        %3370 = vmatprep.subr.bf16.mxu0 0
        %3371 = vmatpush1.bf16.msra.mxu0 0
        %3372 = vmatprep.mubr.bf16.mxu0 0
        %3373 = vmatmul.mubr.bf16.gmra.mrb[0].mxu0 %v3335
        %v3374 = vpop.f32.mrb[0].mxu0
        %v3375 = vadd.f32 0.0, %v3374
        %v3376 = vpop.f32.mrb[0].mxu0
        %v3377 = vpop.f32.mrb[0].mxu0
        %v3378 = vpop.f32.mrb[0].mxu0
        %3379 = vdwg.mxu0
        %v3381 = vsel %vm2714, %v3333, 0
        %v3384 = vsel %vm2742, %v2626, 0
        %3386 = vmatprep.subr.bf16.mxu0 0
        %3387 = vmatpush1.bf16.msra.mxu0 %v3384
        %3388 = vmatprep.subr.bf16.mxu0 0
        %3389 = vmatpush1.bf16.msra.mxu0 0
        %3390 = vmatprep.subr.bf16.mxu0 0
        %3391 = vmatpush1.bf16.msra.mxu0 0
        %3392 = vmatprep.subr.bf16.mxu0 0
        %3393 = vmatpush1.bf16.msra.mxu0 0
        %3394 = vmatprep.subr.bf16.mxu0 0
        %3395 = vmatpush1.bf16.msra.mxu0 0
        %3396 = vmatprep.subr.bf16.mxu0 0
        %3397 = vmatpush1.bf16.msra.mxu0 0
        %3398 = vmatprep.subr.bf16.mxu0 0
        %3399 = vmatpush1.bf16.msra.mxu0 0
        %3400 = vmatprep.subr.bf16.mxu0 0
        %3401 = vmatpush1.bf16.msra.mxu0 0
        %3402 = vmatprep.subr.bf16.mxu0 0
        %3403 = vmatpush1.bf16.msra.mxu0 0
        %3404 = vmatprep.subr.bf16.mxu0 0
        %3405 = vmatpush1.bf16.msra.mxu0 0
        %3406 = vmatprep.subr.bf16.mxu0 0
        %3407 = vmatpush1.bf16.msra.mxu0 0
        %3408 = vmatprep.subr.bf16.mxu0 0
        %3409 = vmatpush1.bf16.msra.mxu0 0
        %3410 = vmatprep.subr.bf16.mxu0 0
        %3411 = vmatpush1.bf16.msra.mxu0 0
        %3412 = vmatprep.subr.bf16.mxu0 0
        %3413 = vmatpush1.bf16.msra.mxu0 0
        %3414 = vmatprep.subr.bf16.mxu0 0
        %3415 = vmatpush1.bf16.msra.mxu0 0
        %3416 = vmatprep.subr.bf16.mxu0 0
        %3417 = vmatpush1.bf16.msra.mxu0 0
        %3418 = vmatprep.mubr.bf16.mxu0 0
        %3419 = vmatmul.mubr.bf16.gmra.mrb[0].mxu0 %v3381
        %v3420 = vpop.f32.mrb[0].mxu0
        %v3421 = vadd.f32 0.0, %v3420
        %v3422 = vpop.f32.mrb[0].mxu0
        %v3423 = vpop.f32.mrb[0].mxu0
        %v3424 = vpop.f32.mrb[0].mxu0
        %3425 = vdwg.mxu0
        %v3426 = vpack.c.bf16 %v3421, %v3375
        %3427 = vst [vmem:[#allocation2 + $0x18] sm:$0xff] %v3426
        %v3428 = vld [vmem:[#allocation2] sm:$0xff]
        %v3429 = vld [vmem:[#allocation2 + $0x8] sm:$0xff]
        %v3430 = vld [vmem:[#allocation2 + $0x10] sm:$0xff]
        %v3431 = vld [vmem:[#allocation2 + $0x18] sm:$0xff]
        %v3432 = vld [vmem:[%s1193] sm:$0xf]
        %v3433 = vld [vmem:[%s1193 + $0x4] sm:$0xf]
        %v3434 = vld [vmem:[%s1193 + $0x8] sm:$0xf]
        %v3435 = vld [vmem:[%s1193 + $0xc] sm:$0xf]
        %v3436 = vld [vmem:[%s1193 + $0x10] sm:$0xf]
        %v3437 = vld [vmem:[%s1193 + $0x14] sm:$0xf]
        %v3438 = vld [vmem:[%s1193 + $0x18] sm:$0xf]
        %v3439 = vld [vmem:[%s1193 + $0x1c] sm:$0xf]
        %v3440 = vld [vmem:[%s1193 + $0x20] sm:$0xf]
        %v3441 = vld [vmem:[%s1193 + $0x24] sm:$0xf]
        %v3442 = vld [vmem:[%s1193 + $0x28] sm:$0xf]
        %v3443 = vld [vmem:[%s1193 + $0x2c] sm:$0xf]
        %v3444 = vld [vmem:[%s1193 + $0x30] sm:$0xf]
        %v3445 = vld [vmem:[%s1193 + $0x34] sm:$0xf]
        %v3446 = vld [vmem:[%s1193 + $0x38] sm:$0xf]
        %v3447 = vld [vmem:[%s1193 + $0x3c] sm:$0xf]
        %v3448 = vld [vmem:[%s1193 + $0x40] sm:$0xf]
        %v3449 = vld [vmem:[%s1193 + $0x44] sm:$0xf]
        %v3450 = vld [vmem:[%s1193 + $0x48] sm:$0xf]
        %v3451 = vld [vmem:[%s1193 + $0x4c] sm:$0xf]
        %v3452 = vld [vmem:[%s1193 + $0x50] sm:$0xf]
        %v3453 = vld [vmem:[%s1193 + $0x54] sm:$0xf]
        %v3454 = vld [vmem:[%s1193 + $0x58] sm:$0xf]
        %v3455 = vld [vmem:[%s1193 + $0x5c] sm:$0xf]
        %v3456 = vld [vmem:[%s1193 + $0x60] sm:$0xf]
        %v3457 = vld [vmem:[%s1193 + $0x64] sm:$0xf]
        %v3458 = vld [vmem:[%s1193 + $0x68] sm:$0xf]
        %v3459 = vld [vmem:[%s1193 + $0x6c] sm:$0xf]
        %v3460 = vld [vmem:[%s1193 + $0x70] sm:$0xf]
        %v3461 = vld [vmem:[%s1193 + $0x74] sm:$0xf]
        %v3462 = vld [vmem:[%s1193 + $0x78] sm:$0xf]
        %v3463 = vld [vmem:[%s1193 + $0x7c] sm:$0xf]
        %v3464 = vld [vmem:[%s1193 + $0x80] sm:$0xf]
        %v3465 = vld [vmem:[%s1193 + $0x84] sm:$0xf]
        %v3466 = vld [vmem:[%s1193 + $0x88] sm:$0xf]
        %v3467 = vld [vmem:[%s1193 + $0x8c] sm:$0xf]
        %v3468 = vld [vmem:[%s1193 + $0x90] sm:$0xf]
        %v3469 = vld [vmem:[%s1193 + $0x94] sm:$0xf]
        %v3470 = vld [vmem:[%s1193 + $0x98] sm:$0xf]
        %v3471 = vld [vmem:[%s1193 + $0x9c] sm:$0xf]
        %v3472 = vld [vmem:[%s1193 + $0xa0] sm:$0xf]
        %v3473 = vld [vmem:[%s1193 + $0xa4] sm:$0xf]
        %v3474 = vld [vmem:[%s1193 + $0xa8] sm:$0xf]
        %v3475 = vld [vmem:[%s1193 + $0xac] sm:$0xf]
        %v3476 = vld [vmem:[%s1193 + $0xb0] sm:$0xf]
        %v3477 = vld [vmem:[%s1193 + $0xb4] sm:$0xf]
        %v3478 = vld [vmem:[%s1193 + $0xb8] sm:$0xf]
        %v3479 = vld [vmem:[%s1193 + $0xbc] sm:$0xf]
        %v3480 = vld [vmem:[%s1193 + $0xc0] sm:$0xf]
        %v3481 = vld [vmem:[%s1193 + $0xc4] sm:$0xf]
        %v3482 = vld [vmem:[%s1193 + $0xc8] sm:$0xf]
        %v3483 = vld [vmem:[%s1193 + $0xcc] sm:$0xf]
        %v3484 = vld [vmem:[%s1193 + $0xd0] sm:$0xf]
        %v3485 = vld [vmem:[%s1193 + $0xd4] sm:$0xf]
        %v3486 = vld [vmem:[%s1193 + $0xd8] sm:$0xf]
        %v3487 = vld [vmem:[%s1193 + $0xdc] sm:$0xf]
        %v3488 = vld [vmem:[%s1193 + $0xe0] sm:$0xf]
        %v3489 = vld [vmem:[%s1193 + $0xe4] sm:$0xf]
        %v3490 = vld [vmem:[%s1193 + $0xe8] sm:$0xf]
        %v3491 = vld [vmem:[%s1193 + $0xec] sm:$0xf]
        %v3492 = vld [vmem:[%s1193 + $0xf0] sm:$0xf]
        %v3493 = vld [vmem:[%s1193 + $0xf4] sm:$0xf]
        %v3494 = vld [vmem:[%s1193 + $0xf8] sm:$0xf]
        %v3495 = vld [vmem:[%s1193 + $0xfc] sm:$0xf]
        %v3496 = vld [vmem:[%s1201] sm:$0x1]
        %v3498 = vlaneseq
        %v3499 = vshrl.u32 %v3498, 7
        %v3500 = vsub.s32 0, %v3499
        %v3501 = vrot.slane %v3496, %v3500
        %v3567 = vunpack.c.l.b16 %v3432
        %v3568 = vunpack.c.l.b16 %v3433
        %v3569 = vunpack.c.l.b16 %v3434
        %v3570 = vunpack.c.l.b16 %v3435
        %v3571 = vunpack.c.l.b16 %v3436
        %v3572 = vunpack.c.l.b16 %v3437
        %v3573 = vunpack.c.l.b16 %v3438
        %v3574 = vunpack.c.l.b16 %v3439
        %v3575 = vunpack.c.l.b16 %v3440
        %v3576 = vunpack.c.l.b16 %v3441
        %v3577 = vunpack.c.l.b16 %v3442
        %v3578 = vunpack.c.l.b16 %v3443
        %v3579 = vunpack.c.l.b16 %v3444
        %v3580 = vunpack.c.l.b16 %v3445
        %v3581 = vunpack.c.l.b16 %v3446
        %v3582 = vunpack.c.l.b16 %v3447
        %v3583 = vunpack.c.l.b16 %v3448
        %v3584 = vunpack.c.l.b16 %v3449
        %v3585 = vunpack.c.l.b16 %v3450
        %v3586 = vunpack.c.l.b16 %v3451
        %v3587 = vunpack.c.l.b16 %v3452
        %v3588 = vunpack.c.l.b16 %v3453
        %v3589 = vunpack.c.l.b16 %v3454
        %v3590 = vunpack.c.l.b16 %v3455
        %v3591 = vunpack.c.l.b16 %v3456
        %v3592 = vunpack.c.l.b16 %v3457
        %v3593 = vunpack.c.l.b16 %v3458
        %v3594 = vunpack.c.l.b16 %v3459
        %v3595 = vunpack.c.l.b16 %v3460
        %v3596 = vunpack.c.l.b16 %v3461
        %v3597 = vunpack.c.l.b16 %v3462
        %v3598 = vunpack.c.l.b16 %v3463
        %v3599 = vunpack.c.l.b16 %v3464
        %v3600 = vunpack.c.l.b16 %v3465
        %v3601 = vunpack.c.l.b16 %v3466
        %v3602 = vunpack.c.l.b16 %v3467
        %v3603 = vunpack.c.l.b16 %v3468
        %v3604 = vunpack.c.l.b16 %v3469
        %v3605 = vunpack.c.l.b16 %v3470
        %v3606 = vunpack.c.l.b16 %v3471
        %v3607 = vunpack.c.l.b16 %v3472
        %v3608 = vunpack.c.l.b16 %v3473
        %v3609 = vunpack.c.l.b16 %v3474
        %v3610 = vunpack.c.l.b16 %v3475
        %v3611 = vunpack.c.l.b16 %v3476
        %v3612 = vunpack.c.l.b16 %v3477
        %v3613 = vunpack.c.l.b16 %v3478
        %v3614 = vunpack.c.l.b16 %v3479
        %v3615 = vunpack.c.l.b16 %v3480
        %v3616 = vunpack.c.l.b16 %v3481
        %v3617 = vunpack.c.l.b16 %v3482
        %v3618 = vunpack.c.l.b16 %v3483
        %v3619 = vunpack.c.l.b16 %v3484
        %v3620 = vunpack.c.l.b16 %v3485
        %v3621 = vunpack.c.l.b16 %v3486
        %v3622 = vunpack.c.l.b16 %v3487
        %v3623 = vunpack.c.l.b16 %v3488
        %v3624 = vunpack.c.l.b16 %v3489
        %v3625 = vunpack.c.l.b16 %v3490
        %v3626 = vunpack.c.l.b16 %v3491
        %v3627 = vunpack.c.l.b16 %v3492
        %v3628 = vunpack.c.l.b16 %v3493
        %v3629 = vunpack.c.l.b16 %v3494
        %v3630 = vunpack.c.l.b16 %v3495
        %v3631 = vpack.c.b16 %v3568, %v3567
        %v3632 = vpack.c.b16 %v3570, %v3569
        %v3633 = vpack.c.b16 %v3572, %v3571
        %v3634 = vpack.c.b16 %v3574, %v3573
        %v3635 = vpack.c.b16 %v3576, %v3575
        %v3636 = vpack.c.b16 %v3578, %v3577
        %v3637 = vpack.c.b16 %v3580, %v3579
        %v3638 = vpack.c.b16 %v3582, %v3581
        %v3639 = vpack.c.b16 %v3584, %v3583
        %v3640 = vpack.c.b16 %v3586, %v3585
        %v3641 = vpack.c.b16 %v3588, %v3587
        %v3642 = vpack.c.b16 %v3590, %v3589
        %v3643 = vpack.c.b16 %v3592, %v3591
        %v3644 = vpack.c.b16 %v3594, %v3593
        %v3645 = vpack.c.b16 %v3596, %v3595
        %v3646 = vpack.c.b16 %v3598, %v3597
        %v3647 = vpack.c.b16 %v3600, %v3599
        %v3648 = vpack.c.b16 %v3602, %v3601
        %v3649 = vpack.c.b16 %v3604, %v3603
        %v3650 = vpack.c.b16 %v3606, %v3605
        %v3651 = vpack.c.b16 %v3608, %v3607
        %v3652 = vpack.c.b16 %v3610, %v3609
        %v3653 = vpack.c.b16 %v3612, %v3611
        %v3654 = vpack.c.b16 %v3614, %v3613
        %v3655 = vpack.c.b16 %v3616, %v3615
        %v3656 = vpack.c.b16 %v3618, %v3617
        %v3657 = vpack.c.b16 %v3620, %v3619
        %v3658 = vpack.c.b16 %v3622, %v3621
        %v3659 = vpack.c.b16 %v3624, %v3623
        %v3660 = vpack.c.b16 %v3626, %v3625
        %v3661 = vpack.c.b16 %v3628, %v3627
        %v3662 = vpack.c.b16 %v3630, %v3629
        %3695 = vmatprep.subr.bf16.mxu0 0
        %3696 = vmatpush1.bf16.msra.mxu0 %v3631
        %3697 = vmatprep.subr.bf16.mxu0 0
        %3698 = vmatpush1.bf16.msra.mxu0 %v3632
        %3699 = vmatprep.subr.bf16.mxu0 0
        %3700 = vmatpush1.bf16.msra.mxu0 %v3633
        %3701 = vmatprep.subr.bf16.mxu0 0
        %3702 = vmatpush1.bf16.msra.mxu0 %v3634
        %3703 = vmatprep.subr.bf16.mxu0 0
        %3704 = vmatpush1.bf16.msra.mxu0 %v3635
        %3705 = vmatprep.subr.bf16.mxu0 0
        %3706 = vmatpush1.bf16.msra.mxu0 %v3636
        %3707 = vmatprep.subr.bf16.mxu0 0
        %3708 = vmatpush1.bf16.msra.mxu0 %v3637
        %3709 = vmatprep.subr.bf16.mxu0 0
        %3710 = vmatpush1.bf16.msra.mxu0 %v3638
        %3711 = vmatprep.subr.bf16.mxu0 0
        %3712 = vmatpush1.bf16.msra.mxu0 %v3639
        %3713 = vmatprep.subr.bf16.mxu0 0
        %3714 = vmatpush1.bf16.msra.mxu0 %v3640
        %3715 = vmatprep.subr.bf16.mxu0 0
        %3716 = vmatpush1.bf16.msra.mxu0 %v3641
        %3717 = vmatprep.subr.bf16.mxu0 0
        %3718 = vmatpush1.bf16.msra.mxu0 %v3642
        %3719 = vmatprep.subr.bf16.mxu0 0
        %3720 = vmatpush1.bf16.msra.mxu0 %v3643
        %3721 = vmatprep.subr.bf16.mxu0 0
        %3722 = vmatpush1.bf16.msra.mxu0 %v3644
        %3723 = vmatprep.subr.bf16.mxu0 0
        %3724 = vmatpush1.bf16.msra.mxu0 %v3645
        %3725 = vmatprep.subr.bf16.mxu0 0
        %3726 = vmatpush1.bf16.msra.mxu0 %v3646
        %3727 = vmatprep.mubr.bf16.mxu0 %v3429
        %3728 = vmatmul.mubr.bf16.gmra.mrb[0].mxu0 %v3428
        %v3729 = vpop.f32.mrb[0].mxu0
        %v3730 = vadd.f32 %v3501, %v3729
        %v3731 = vpop.f32.mrb[0].mxu0
        %v3732 = vpop.f32.mrb[0].mxu0
        %v3733 = vadd.f32 %v3501, %v3732
        %v3734 = vpop.f32.mrb[0].mxu0
        %3735 = vdwg.mxu0
        %3736 = vmatprep.subr.bf16.mxu0 0
        %3737 = vmatpush1.bf16.msra.mxu0 %v3647
        %3738 = vmatprep.subr.bf16.mxu0 0
        %3739 = vmatpush1.bf16.msra.mxu0 %v3648
        %3740 = vmatprep.subr.bf16.mxu0 0
        %3741 = vmatpush1.bf16.msra.mxu0 %v3649
        %3742 = vmatprep.subr.bf16.mxu0 0
        %3743 = vmatpush1.bf16.msra.mxu0 %v3650
        %3744 = vmatprep.subr.bf16.mxu0 0
        %3745 = vmatpush1.bf16.msra.mxu0 %v3651
        %3746 = vmatprep.subr.bf16.mxu0 0
        %3747 = vmatpush1.bf16.msra.mxu0 %v3652
        %3748 = vmatprep.subr.bf16.mxu0 0
        %3749 = vmatpush1.bf16.msra.mxu0 %v3653
        %3750 = vmatprep.subr.bf16.mxu0 0
        %3751 = vmatpush1.bf16.msra.mxu0 %v3654
        %3752 = vmatprep.subr.bf16.mxu0 0
        %3753 = vmatpush1.bf16.msra.mxu0 %v3655
        %3754 = vmatprep.subr.bf16.mxu0 0
        %3755 = vmatpush1.bf16.msra.mxu0 %v3656
        %3756 = vmatprep.subr.bf16.mxu0 0
        %3757 = vmatpush1.bf16.msra.mxu0 %v3657
        %3758 = vmatprep.subr.bf16.mxu0 0
        %3759 = vmatpush1.bf16.msra.mxu0 %v3658
        %3760 = vmatprep.subr.bf16.mxu0 0
        %3761 = vmatpush1.bf16.msra.mxu0 %v3659
        %3762 = vmatprep.subr.bf16.mxu0 0
        %3763 = vmatpush1.bf16.msra.mxu0 %v3660
        %3764 = vmatprep.subr.bf16.mxu0 0
        %3765 = vmatpush1.bf16.msra.mxu0 %v3661
        %3766 = vmatprep.subr.bf16.mxu0 0
        %3767 = vmatpush1.bf16.msra.mxu0 %v3662
        %3768 = vmatprep.mubr.bf16.mxu0 %v3431
        %3769 = vmatmul.mubr.bf16.gmra.mrb[0].mxu0 %v3430
        %v3770 = vpop.f32.mrb[0].mxu0
        %v3771 = vadd.f32 %v3730, %v3770
        %v3772 = vpop.f32.mrb[0].mxu0
        %v3773 = vpop.f32.mrb[0].mxu0
        %v3774 = vadd.f32 %v3733, %v3773
        %v3775 = vpop.f32.mrb[0].mxu0
        %3776 = vdwg.mxu0
        %v3777 = vadd.f32 %v1583, %v3771
        %v3778 = vadd.f32 %v1586, %v3774
        %v3779 = vld [vmem:[%s1446] sm:$0x1]
        %v3780 = vld [vmem:[%s1209] sm:$0x1]
        %3781 = vadd.xlane.f32.xlu0 %v3777
        %v3782 = vpop.xlane.xlu0 %3781
        %3783 = vadd.xlane.f32.xlu0 %v3778
        %v3784 = vpop.xlane.xlu0 %3783
        %v3785 = vrcp.pop 128.0
        %v3786 = vmul.f32 %v3782, %v3785
        %v3787 = vmul.f32 %v3784, %v3785
        %v3788 = vsub.f32 %v3777, %v3786
        %v3789 = vsub.f32 %v3778, %v3787
        %v3790 = vmul.f32 %v3788, %v3788
        %v3791 = vmul.f32 %v3789, %v3789
        %3792 = vadd.xlane.f32.xlu0 %v3790
        %v3793 = vpop.xlane.xlu0 %3792
        %3794 = vadd.xlane.f32.xlu0 %v3791
        %v3795 = vpop.xlane.xlu0 %3794
        %v3796 = vmul.f32 %v3793, %v3785
        %v3797 = vmul.f32 %v3795, %v3785
        %v3798 = vadd.f32 %v3796, 1e-05
        %v3799 = vadd.f32 %v3797, 1e-05
        %v3800 = vrsqrt.pop %v3798
        %v3801 = vrsqrt.pop %v3799
        %v3802 = vmul.f32 %v3788, %v3800
        %v3803 = vmul.f32 %v3789, %v3801
        %v3805 = vlaneseq
        %v3806 = vshrl.u32 %v3805, 7
        %v3807 = vsub.s32 0, %v3806
        %v3808 = vrot.slane %v3779, %v3807
        %v3810 = vmul.f32 %v3802, %v3808
        %v3811 = vmul.f32 %v3803, %v3808
        %v3813 = vlaneseq
        %v3814 = vshrl.u32 %v3813, 7
        %v3815 = vsub.s32 0, %v3814
        %v3816 = vrot.slane %v3780, %v3815
        %v3818 = vadd.f32 %v3810, %v3816
        %v3819 = vadd.f32 %v3811, %v3816
        %v3820 = vpack.c.bf16 %v3819, %v3818
        %v3821 = vld [vmem:[%s1451] sm:$0xf]
        %v3822 = vld [vmem:[%s1451 + $0x4] sm:$0xf]
        %v3823 = vld [vmem:[%s1451 + $0x8] sm:$0xf]
        %v3824 = vld [vmem:[%s1451 + $0xc] sm:$0xf]
        %v3825 = vld [vmem:[%s1451 + $0x10] sm:$0xf]
        %v3826 = vld [vmem:[%s1451 + $0x14] sm:$0xf]
        %v3827 = vld [vmem:[%s1451 + $0x18] sm:$0xf]
        %v3828 = vld [vmem:[%s1451 + $0x1c] sm:$0xf]
        %v3829 = vld [vmem:[%s1451 + $0x20] sm:$0xf]
        %v3830 = vld [vmem:[%s1451 + $0x24] sm:$0xf]
        %v3831 = vld [vmem:[%s1451 + $0x28] sm:$0xf]
        %v3832 = vld [vmem:[%s1451 + $0x2c] sm:$0xf]
        %v3833 = vld [vmem:[%s1451 + $0x30] sm:$0xf]
        %v3834 = vld [vmem:[%s1451 + $0x34] sm:$0xf]
        %v3835 = vld [vmem:[%s1451 + $0x38] sm:$0xf]
        %v3836 = vld [vmem:[%s1451 + $0x3c] sm:$0xf]
        %v3837 = vld [vmem:[%s1217] sm:$0x1]
        %v3839 = vlaneseq
        %v3840 = vshrl.u32 %v3839, 7
        %v3841 = vsub.s32 0, %v3840
        %v3842 = vrot.slane %v3837, %v3841
        %v3860 = vunpack.c.l.b16 %v3821
        %v3861 = vunpack.c.l.b16 %v3822
        %v3862 = vunpack.c.l.b16 %v3823
        %v3863 = vunpack.c.l.b16 %v3824
        %v3864 = vunpack.c.l.b16 %v3825
        %v3865 = vunpack.c.l.b16 %v3826
        %v3866 = vunpack.c.l.b16 %v3827
        %v3867 = vunpack.c.l.b16 %v3828
        %v3868 = vunpack.c.l.b16 %v3829
        %v3869 = vunpack.c.l.b16 %v3830
        %v3870 = vunpack.c.l.b16 %v3831
        %v3871 = vunpack.c.l.b16 %v3832
        %v3872 = vunpack.c.l.b16 %v3833
        %v3873 = vunpack.c.l.b16 %v3834
        %v3874 = vunpack.c.l.b16 %v3835
        %v3875 = vunpack.c.l.b16 %v3836
        %v3876 = vpack.c.b16 %v3861, %v3860
        %v3877 = vpack.c.b16 %v3863, %v3862
        %v3878 = vpack.c.b16 %v3865, %v3864
        %v3879 = vpack.c.b16 %v3867, %v3866
        %v3880 = vpack.c.b16 %v3869, %v3868
        %v3881 = vpack.c.b16 %v3871, %v3870
        %v3882 = vpack.c.b16 %v3873, %v3872
        %v3883 = vpack.c.b16 %v3875, %v3874
        %3892 = vmatprep.subr.bf16.mxu0 0
        %3893 = vmatpush1.bf16.msra.mxu0 %v3876
        %3894 = vmatprep.subr.bf16.mxu0 0
        %3895 = vmatpush1.bf16.msra.mxu0 %v3877
        %3896 = vmatprep.subr.bf16.mxu0 0
        %3897 = vmatpush1.bf16.msra.mxu0 %v3878
        %3898 = vmatprep.subr.bf16.mxu0 0
        %3899 = vmatpush1.bf16.msra.mxu0 %v3879
        %3900 = vmatprep.subr.bf16.mxu0 0
        %3901 = vmatpush1.bf16.msra.mxu0 %v3880
        %3902 = vmatprep.subr.bf16.mxu0 0
        %3903 = vmatpush1.bf16.msra.mxu0 %v3881
        %3904 = vmatprep.subr.bf16.mxu0 0
        %3905 = vmatpush1.bf16.msra.mxu0 %v3882
        %3906 = vmatprep.subr.bf16.mxu0 0
        %3907 = vmatpush1.bf16.msra.mxu0 %v3883
        %3908 = vmatprep.subr.bf16.mxu0 0
        %3909 = vmatpush1.bf16.msra.mxu0 0
        %3910 = vmatprep.subr.bf16.mxu0 0
        %3911 = vmatpush1.bf16.msra.mxu0 0
        %3912 = vmatprep.subr.bf16.mxu0 0
        %3913 = vmatpush1.bf16.msra.mxu0 0
        %3914 = vmatprep.subr.bf16.mxu0 0
        %3915 = vmatpush1.bf16.msra.mxu0 0
        %3916 = vmatprep.subr.bf16.mxu0 0
        %3917 = vmatpush1.bf16.msra.mxu0 0
        %3918 = vmatprep.subr.bf16.mxu0 0
        %3919 = vmatpush1.bf16.msra.mxu0 0
        %3920 = vmatprep.subr.bf16.mxu0 0
        %3921 = vmatpush1.bf16.msra.mxu0 0
        %3922 = vmatprep.subr.bf16.mxu0 0
        %3923 = vmatpush1.bf16.msra.mxu0 0
        %3924 = vmatprep.mubr.bf16.mxu0 0
        %3925 = vmatmul.mubr.bf16.gmra.mrb[0].mxu0 %v3820
        %v3926 = vpop.f32.mrb[0].mxu0
        %v3927 = vadd.f32 %v3842, %v3926
        %v3928 = vpop.f32.mrb[0].mxu0
        %v3929 = vpop.f32.mrb[0].mxu0
        %v3930 = vadd.f32 %v3842, %v3929
        %v3931 = vpop.f32.mrb[0].mxu0
        %3932 = vdwg.mxu0
        %v3933 = vmax.f32 %v3927, 0.0
        %v3934 = vmax.f32 %v3930, 0.0
        %v3935 = vpack.c.bf16 %v3934, %v3933
        %v3936 = vld [vmem:[%s1456] sm:$0xf]
        %v3937 = vld [vmem:[%s1456 + $0x4] sm:$0xf]
        %v3938 = vld [vmem:[%s1456 + $0x8] sm:$0xf]
        %v3939 = vld [vmem:[%s1456 + $0xc] sm:$0xf]
        %v3940 = vld [vmem:[%s1456 + $0x10] sm:$0xf]
        %v3941 = vld [vmem:[%s1456 + $0x14] sm:$0xf]
        %v3942 = vld [vmem:[%s1456 + $0x18] sm:$0xf]
        %v3943 = vld [vmem:[%s1456 + $0x1c] sm:$0xf]
        %v3944 = vld [vmem:[%s1456 + $0x20] sm:$0xf]
        %v3945 = vld [vmem:[%s1456 + $0x24] sm:$0xf]
        %v3946 = vld [vmem:[%s1456 + $0x28] sm:$0xf]
        %v3947 = vld [vmem:[%s1456 + $0x2c] sm:$0xf]
        %v3948 = vld [vmem:[%s1456 + $0x30] sm:$0xf]
        %v3949 = vld [vmem:[%s1456 + $0x34] sm:$0xf]
        %v3950 = vld [vmem:[%s1456 + $0x38] sm:$0xf]
        %v3951 = vld [vmem:[%s1456 + $0x3c] sm:$0xf]
        %v3952 = vld [vmem:[%s1225] sm:$0x1]
        %v3954 = vlaneseq
        %v3955 = vshrl.u32 %v3954, 7
        %v3956 = vsub.s32 0, %v3955
        %v3957 = vrot.slane %v3952, %v3956
        %v3975 = vunpack.c.l.b16 %v3936
        %v3976 = vunpack.c.l.b16 %v3937
        %v3977 = vunpack.c.l.b16 %v3938
        %v3978 = vunpack.c.l.b16 %v3939
        %v3979 = vunpack.c.l.b16 %v3940
        %v3980 = vunpack.c.l.b16 %v3941
        %v3981 = vunpack.c.l.b16 %v3942
        %v3982 = vunpack.c.l.b16 %v3943
        %v3983 = vunpack.c.l.b16 %v3944
        %v3984 = vunpack.c.l.b16 %v3945
        %v3985 = vunpack.c.l.b16 %v3946
        %v3986 = vunpack.c.l.b16 %v3947
        %v3987 = vunpack.c.l.b16 %v3948
        %v3988 = vunpack.c.l.b16 %v3949
        %v3989 = vunpack.c.l.b16 %v3950
        %v3990 = vunpack.c.l.b16 %v3951
        %v3991 = vpack.c.b16 %v3976, %v3975
        %v3992 = vpack.c.b16 %v3978, %v3977
        %v3993 = vpack.c.b16 %v3980, %v3979
        %v3994 = vpack.c.b16 %v3982, %v3981
        %v3995 = vpack.c.b16 %v3984, %v3983
        %v3996 = vpack.c.b16 %v3986, %v3985
        %v3997 = vpack.c.b16 %v3988, %v3987
        %v3998 = vpack.c.b16 %v3990, %v3989
        %4007 = vmatprep.subr.bf16.mxu0 0
        %4008 = vmatpush1.bf16.msra.mxu0 %v3991
        %4009 = vmatprep.subr.bf16.mxu0 0
        %4010 = vmatpush1.bf16.msra.mxu0 %v3992
        %4011 = vmatprep.subr.bf16.mxu0 0
        %4012 = vmatpush1.bf16.msra.mxu0 %v3993
        %4013 = vmatprep.subr.bf16.mxu0 0
        %4014 = vmatpush1.bf16.msra.mxu0 %v3994
        %4015 = vmatprep.subr.bf16.mxu0 0
        %4016 = vmatpush1.bf16.msra.mxu0 %v3995
        %4017 = vmatprep.subr.bf16.mxu0 0
        %4018 = vmatpush1.bf16.msra.mxu0 %v3996
        %4019 = vmatprep.subr.bf16.mxu0 0
        %4020 = vmatpush1.bf16.msra.mxu0 %v3997
        %4021 = vmatprep.subr.bf16.mxu0 0
        %4022 = vmatpush1.bf16.msra.mxu0 %v3998
        %4023 = vmatprep.subr.bf16.mxu0 0
        %4024 = vmatpush1.bf16.msra.mxu0 0
        %4025 = vmatprep.subr.bf16.mxu0 0
        %4026 = vmatpush1.bf16.msra.mxu0 0
        %4027 = vmatprep.subr.bf16.mxu0 0
        %4028 = vmatpush1.bf16.msra.mxu0 0
        %4029 = vmatprep.subr.bf16.mxu0 0
        %4030 = vmatpush1.bf16.msra.mxu0 0
        %4031 = vmatprep.subr.bf16.mxu0 0
        %4032 = vmatpush1.bf16.msra.mxu0 0
        %4033 = vmatprep.subr.bf16.mxu0 0
        %4034 = vmatpush1.bf16.msra.mxu0 0
        %4035 = vmatprep.subr.bf16.mxu0 0
        %4036 = vmatpush1.bf16.msra.mxu0 0
        %4037 = vmatprep.subr.bf16.mxu0 0
        %4038 = vmatpush1.bf16.msra.mxu0 0
        %4039 = vmatprep.mubr.bf16.mxu0 0
        %4040 = vmatmul.mubr.bf16.gmra.mrb[0].mxu0 %v3935
        %v4041 = vpop.f32.mrb[0].mxu0
        %v4042 = vadd.f32 %v3957, %v4041
        %v4043 = vpop.f32.mrb[0].mxu0
        %v4044 = vpop.f32.mrb[0].mxu0
        %v4045 = vadd.f32 %v3957, %v4044
        %v4046 = vpop.f32.mrb[0].mxu0
        %4047 = vdwg.mxu0
        %v4048 = vadd.f32 %v3818, %v4042
        %v4049 = vadd.f32 %v3819, %v4045
        %v4050 = vld [vmem:[%s1233] sm:$0x1]
        %v4051 = vld [vmem:[%s1241] sm:$0x1]
        %4052 = vadd.xlane.f32.xlu0 %v4048
        %v4053 = vpop.xlane.xlu0 %4052
        %4054 = vadd.xlane.f32.xlu0 %v4049
        %v4055 = vpop.xlane.xlu0 %4054
        %v4056 = vmul.f32 %v4053, %v3785
        %v4057 = vmul.f32 %v4055, %v3785
        %v4058 = vsub.f32 %v4048, %v4056
        %v4059 = vsub.f32 %v4049, %v4057
        %v4060 = vmul.f32 %v4058, %v4058
        %v4061 = vmul.f32 %v4059, %v4059
        %4062 = vadd.xlane.f32.xlu0 %v4060
        %v4063 = vpop.xlane.xlu0 %4062
        %4064 = vadd.xlane.f32.xlu0 %v4061
        %v4065 = vpop.xlane.xlu0 %4064
        %v4066 = vmul.f32 %v4063, %v3785
        %v4067 = vmul.f32 %v4065, %v3785
        %v4068 = vadd.f32 %v4066, 1e-05
        %v4069 = vadd.f32 %v4067, 1e-05
        %v4070 = vrsqrt.pop %v4068
        %v4071 = vrsqrt.pop %v4069
        %v4072 = vmul.f32 %v4058, %v4070
        %v4073 = vmul.f32 %v4059, %v4071
        %v4075 = vlaneseq
        %v4076 = vshrl.u32 %v4075, 7
        %v4077 = vsub.s32 0, %v4076
        %v4078 = vrot.slane %v4050, %v4077
        %v4080 = vmul.f32 %v4072, %v4078
        %v4081 = vmul.f32 %v4073, %v4078
        %v4083 = vlaneseq
        %v4084 = vshrl.u32 %v4083, 7
        %v4085 = vsub.s32 0, %v4084
        %v4086 = vrot.slane %v4051, %v4085
        %v4088 = vadd.f32 %v4080, %v4086
        %v4089 = vadd.f32 %v4081, %v4086
        %v4090 = vpack.c.bf16 %v4089, %v4088
        %v4091 = vld [vmem:[%s1461] sm:$0xf]
        %v4092 = vld [vmem:[%s1461 + $0x4] sm:$0xf]
        %v4093 = vld [vmem:[%s1461 + $0x8] sm:$0xf]
        %v4094 = vld [vmem:[%s1461 + $0xc] sm:$0xf]
        %v4095 = vld [vmem:[%s1461 + $0x10] sm:$0xf]
        %v4096 = vld [vmem:[%s1461 + $0x14] sm:$0xf]
        %v4097 = vld [vmem:[%s1461 + $0x18] sm:$0xf]
        %v4098 = vld [vmem:[%s1461 + $0x1c] sm:$0xf]
        %v4099 = vld [vmem:[%s1461 + $0x20] sm:$0xf]
        %v4100 = vld [vmem:[%s1461 + $0x24] sm:$0xf]
        %v4101 = vld [vmem:[%s1461 + $0x28] sm:$0xf]
        %v4102 = vld [vmem:[%s1461 + $0x2c] sm:$0xf]
        %v4103 = vld [vmem:[%s1461 + $0x30] sm:$0xf]
        %v4104 = vld [vmem:[%s1461 + $0x34] sm:$0xf]
        %v4105 = vld [vmem:[%s1461 + $0x38] sm:$0xf]
        %v4106 = vld [vmem:[%s1461 + $0x3c] sm:$0xf]
        %v4107 = vld [vmem:[%s1464] sm:$0x1]
        %v4109 = vlaneseq
        %v4110 = vshrl.u32 %v4109, 7
        %v4111 = vsub.s32 0, %v4110
        %v4112 = vrot.slane %v4107, %v4111
        %v4130 = vunpack.c.l.b16 %v4091
        %v4131 = vunpack.c.l.b16 %v4092
        %v4132 = vunpack.c.l.b16 %v4093
        %v4133 = vunpack.c.l.b16 %v4094
        %v4134 = vunpack.c.l.b16 %v4095
        %v4135 = vunpack.c.l.b16 %v4096
        %v4136 = vunpack.c.l.b16 %v4097
        %v4137 = vunpack.c.l.b16 %v4098
        %v4138 = vunpack.c.l.b16 %v4099
        %v4139 = vunpack.c.l.b16 %v4100
        %v4140 = vunpack.c.l.b16 %v4101
        %v4141 = vunpack.c.l.b16 %v4102
        %v4142 = vunpack.c.l.b16 %v4103
        %v4143 = vunpack.c.l.b16 %v4104
        %v4144 = vunpack.c.l.b16 %v4105
        %v4145 = vunpack.c.l.b16 %v4106
        %v4146 = vpack.c.b16 %v4131, %v4130
        %v4147 = vpack.c.b16 %v4133, %v4132
        %v4148 = vpack.c.b16 %v4135, %v4134
        %v4149 = vpack.c.b16 %v4137, %v4136
        %v4150 = vpack.c.b16 %v4139, %v4138
        %v4151 = vpack.c.b16 %v4141, %v4140
        %v4152 = vpack.c.b16 %v4143, %v4142
        %v4153 = vpack.c.b16 %v4145, %v4144
        %4162 = vmatprep.subr.bf16.mxu0 0
        %4163 = vmatpush1.bf16.msra.mxu0 %v4146
        %4164 = vmatprep.subr.bf16.mxu0 0
        %4165 = vmatpush1.bf16.msra.mxu0 %v4147
        %4166 = vmatprep.subr.bf16.mxu0 0
        %4167 = vmatpush1.bf16.msra.mxu0 %v4148
        %4168 = vmatprep.subr.bf16.mxu0 0
        %4169 = vmatpush1.bf16.msra.mxu0 %v4149
        %4170 = vmatprep.subr.bf16.mxu0 0
        %4171 = vmatpush1.bf16.msra.mxu0 %v4150
        %4172 = vmatprep.subr.bf16.mxu0 0
        %4173 = vmatpush1.bf16.msra.mxu0 %v4151
        %4174 = vmatprep.subr.bf16.mxu0 0
        %4175 = vmatpush1.bf16.msra.mxu0 %v4152
        %4176 = vmatprep.subr.bf16.mxu0 0
        %4177 = vmatpush1.bf16.msra.mxu0 %v4153
        %4178 = vmatprep.subr.bf16.mxu0 0
        %4179 = vmatpush1.bf16.msra.mxu0 0
        %4180 = vmatprep.subr.bf16.mxu0 0
        %4181 = vmatpush1.bf16.msra.mxu0 0
        %4182 = vmatprep.subr.bf16.mxu0 0
        %4183 = vmatpush1.bf16.msra.mxu0 0
        %4184 = vmatprep.subr.bf16.mxu0 0
        %4185 = vmatpush1.bf16.msra.mxu0 0
        %4186 = vmatprep.subr.bf16.mxu0 0
        %4187 = vmatpush1.bf16.msra.mxu0 0
        %4188 = vmatprep.subr.bf16.mxu0 0
        %4189 = vmatpush1.bf16.msra.mxu0 0
        %4190 = vmatprep.subr.bf16.mxu0 0
        %4191 = vmatpush1.bf16.msra.mxu0 0
        %4192 = vmatprep.subr.bf16.mxu0 0
        %4193 = vmatpush1.bf16.msra.mxu0 0
        %4194 = vmatprep.mubr.bf16.mxu0 0
        %4195 = vmatmul.mubr.bf16.gmra.mrb[0].mxu0 %v4090
        %v4196 = vpop.f32.mrb[0].mxu0
        %v4197 = vadd.f32 %v4112, %v4196
        %v4198 = vpop.f32.mrb[0].mxu0
        %v4199 = vpop.f32.mrb[0].mxu0
        %v4200 = vadd.f32 %v4112, %v4199
        %v4201 = vpop.f32.mrb[0].mxu0
        %4202 = vdwg.mxu0
        %v4203 = vmax.f32 %v4197, 0.0
        %v4204 = vmax.f32 %v4200, 0.0
        %4205 = vst [vmem:[%s1469] sm:$0xff] %v4203
        %4206 = vst [vmem:[%s1469 + $0x8] sm:$0xff] %v4204
        %p4207 = scmp.lt.s32.totalorder %s60, 1
        %s4208 = scalar_select %p4207, %s60, 1
        %s4209 = smul.addr %s4208, 2
        %s4210 = smul.addr %s4209, 8
        %s4211 = scalar_lea.vmem %s25, %s4210
        // Predicated region
        $region181: #{invariance_encoder_forward.1} parent=119 // pred_check
          %p4212 = pneg %p734
        $region182: #{invariance_encoder_forward.1} parent=119 // pred_check_branch
          %4214 = sbr.rel (%p4212) target = $region184
        $region183: #{invariance_encoder_forward.1} parent=119 // pred_region
          _
        $region184: #{invariance_encoder_forward.1} parent=119 // pred_fallthru
          _
      $region120: #{invariance_encoder_forward.1} parent=5 // pred_fallthru
        _
      %p4215 = scmp.le.s32.totalorder 2, %s55
      // Predicated region
      $region185: #{invariance_encoder_forward.1} parent=5 // pred_check
        %p4216 = pneg %p4215
      $region186: #{invariance_encoder_forward.1} parent=5 // pred_check_branch
        %4218 = sbr.rel (%p4216) target = $region188
      $region187: #{invariance_encoder_forward.1} parent=5 // pred_region
        %s4219 = ssub.s32 %s55, 2
        // Predicated region
        $region189: #{invariance_encoder_forward.1} parent=187 // pred_check
          %p4220 = pneg %p740
        $region190: #{invariance_encoder_forward.1} parent=187 // pred_check_branch
          %4222 = sbr.rel (%p4220) target = $region192
        $region191: #{invariance_encoder_forward.1} parent=187 // pred_region
          %p4223 = scmp.lt.s32.totalorder %s61, 1
          %s4224 = scalar_select %p4223, %s61, 1
          %s4225 = smul.addr %s4224, 2
          %s4226 = smul.addr %s4225, 8
          %s4227 = scalar_lea.vmem %s25, %s4226
        $region192: #{invariance_encoder_forward.1} parent=187 // pred_fallthru
          _
      $region188: #{invariance_encoder_forward.1} parent=5 // pred_fallthru
        _
    $region6: #{invariance_encoder_forward.1} parent=1 // loop_footer
      %s59 = sadd.s32 1, %s55
    $region7: #{invariance_encoder_forward.1} parent=1 // loop_footer_branch
      %54 = sbr.rel target = $region3
    $region8: #{invariance_encoder_forward.1} parent=1 // loop_exit
      _
    %4228 = vsyncpa [#allocation4], 1
    %s4229 = scalar_lea.sflag [#allocation4], 1
    %4230 = vsyncpa %s4229, 1
    %4231 = vsyncpa [#allocation6], 1
    %s4232 = scalar_lea.sflag [#allocation6], 1
    %4233 = vsyncpa %s4232, 1
    %4234 = vsyncpa [#allocation9], 1
    %s4235 = scalar_lea.sflag [#allocation9], 1
    %4236 = vsyncpa %s4235, 1
    %4237 = vsyncpa [#allocation12], 1
    %s4238 = scalar_lea.sflag [#allocation12], 1
    %4239 = vsyncpa %s4238, 1
    %4240 = vsyncpa [#allocation15], 1
    %s4241 = scalar_lea.sflag [#allocation15], 1
    %4242 = vsyncpa %s4241, 1
    %4243 = vsyncpa [#allocation18], 1
    %s4244 = scalar_lea.sflag [#allocation18], 1
    %4245 = vsyncpa %s4244, 1
    %4246 = vsyncpa [#allocation21], 1
    %s4247 = scalar_lea.sflag [#allocation21], 1
    %4248 = vsyncpa %s4247, 1
    %4249 = vsyncpa [#allocation24], 1
    %s4250 = scalar_lea.sflag [#allocation24], 1
    %4251 = vsyncpa %s4250, 1

</llo_original>
